<compile_context>
chip_gen: v7x
topology: tpu7x:2x2x1
jax: 0.10.0
libtpu: 0.0.40
codegen_flags: <defaults>
</compile_context>

<pallas_src>
import jax
import jax.numpy as jnp
from jax import lax
from jax.experimental import pallas as pl
from jax.experimental.pallas import tpu as pltpu

GEN_EPS = 1e-7       # GENConv message eps
BN_EPS = 1e-5        # BatchNorm1d eps
PN_EPS = 1e-5        # PairNorm eps (PyG)
LANE = 128           # TPU lane width


def _deeper_gcn_kernel(x_ref, s_ref, tt_ref, w1_ref, g_ref, be_ref,
                       w2_ref, b2_ref, t_ref, out_ref):
    n, hp = x_ref.shape
    num_layers = w1_ref.shape[0]

    S16 = s_ref[...]          # (E, N) bf16 one-hot (exact), fed straight to the MXU
    Tt16 = tt_ref[...]        # (N, E) bf16 one-hot (exact)

    h = x_ref[...]            # (N, Hp) f32, loop-carried hidden state

    for l in range(num_layers):          # unrolled: all layers in ONE grid step
        # -------- GENConv: message + softmax aggregation with temperature t --------
        z = jnp.maximum(h, 0.0) + GEN_EPS                              # relu(x)+eps
        # bf16 MXU operands, f32 accumulation: exact gather of bf16-rounded z.
        msg = jnp.dot(S16, z.astype(jnp.bfloat16),
                      preferred_element_type=jnp.float32)              # (E, Hp)
        t = t_ref[l, 0]                                                # SMEM scalar
        # Global per-feature max subtraction: constant within every target group,
        # so the softmax ratio is unchanged, but exp() cannot overflow.
        m = jnp.max(msg, axis=0, keepdims=True)                        # (1, Hp)
        ex = jnp.exp((msg - m) * t)                                    # (E, Hp) <= 1
        # Fused segment sums: one (N,E)x(E,2Hp) matmul yields numerator and
        # denominator at once; the concat/split boundary (Hp) is 128-aligned.
        rhs = jnp.concatenate([(ex * msg).astype(jnp.bfloat16),
                               ex.astype(jnp.bfloat16)], axis=-1)      # (E, 2Hp)
        sums = jnp.dot(Tt16, rhs, preferred_element_type=jnp.float32)  # (N, 2Hp)
        num = sums[:, :hp]
        den = sums[:, hp:]
        den_safe = jnp.where(den > 0.0, den, 1.0)                      # no 0/0 NaNs
        agg = jnp.where(den > 0.0, num / den_safe, 0.0)
        gen_in = agg + h                                               # GENConv residual

        # -------- GENConv MLP: Linear (bias cancelled exactly by train-mode
        # BatchNorm mean subtraction -> dropped) -> BatchNorm -> ReLU -> Linear ----
        y1 = jnp.dot(gen_in, w1_ref[l],
                     preferred_element_type=jnp.float32)               # (N, 2Hp)
        mu = jnp.mean(y1, axis=0, keepdims=True)
        yc = y1 - mu                                                   # reused below
        var = jnp.mean(yc * yc, axis=0, keepdims=True)                 # biased var
        y1 = yc * lax.rsqrt(var + BN_EPS) * g_ref[l] + be_ref[l]
        y1 = jnp.maximum(y1, 0.0)
        h1 = jnp.dot(y1, w2_ref[l],
                     preferred_element_type=jnp.float32) + b2_ref[l]   # (N, Hp)

        # ---------------- PairNorm (mode 'PN', scale=1) ----------------
        cm = jnp.mean(h1, axis=0, keepdims=True)
        hc = h1 - cm
        rn2 = jnp.sum(hc * hc, axis=1, keepdims=True)                  # (N, 1)
        denom = jnp.sqrt(PN_EPS + jnp.mean(rn2, axis=0, keepdims=True))
        h2 = hc / denom

        # -------- ReLU (+ residual for layers >= 1); dropout p=0 -> identity ------
        r = jnp.maximum(h2, 0.0)
        h = r if l == 0 else r + h

    out_ref[...] = h.astype(out_ref.dtype)   # lane-dense (Hp multiple of 128) store


def _round_up(v, m):
    return (v + m - 1) // m * m


def _pad_axis(a, axis, new_size):
    pad = new_size - a.shape[axis]
    if pad == 0:
        return a
    widths = [(0, 0)] * a.ndim
    widths[axis] = (0, pad)
    return jnp.pad(a, widths)


def deeper_gcn_pallas(x, edge_index, params):
    """x: (N, H) float32, edge_index: (2, E) int32, params: dict of stacked weights."""
    n, h = x.shape
    e = edge_index.shape[1]
    hp = max(LANE, _round_up(h, LANE))   # lane-dense feature axis

    src, tgt = edge_index[0], edge_index[1]
    # One-hot gather/scatter matrices in bf16 ({0,1} exact): half the HBM bytes,
    # and consumed directly by the MXU (no in-kernel f32 copies).
    S = jnp.zeros((e, n), jnp.bfloat16).at[jnp.arange(e), src].set(1.0)   # (E, N)
    Tt = jnp.zeros((n, e), jnp.bfloat16).at[tgt, jnp.arange(e)].set(1.0)  # (N, E)
    # TODO(synk): for graphs whose one-hot matrices outgrow VMEM, replace with an
    # index-based gather/segment-sum (scalar-prefetched src/tgt) or stream edge
    # tiles from HBM via pltpu.emit_pipeline with an f32 VMEM accumulator.
    # TODO(synk): at H>=256 stream w1/w2 per layer (pl.Buffered) instead of
    # keeping the full stack resident; on v7x additionally split the node work
    # across both TensorCores (core_map) with a small cross-core stats exchange.

    # Zero-pad the feature axis to a multiple of 128: padded weight rows/cols,
    # beta and b2 are zero, so padded columns stay exactly zero through every
    # layer and the real columns are bit-unaffected, while all vregs, the
    # num|den split and the output store become lane-dense.
    xp = _pad_axis(x.astype(jnp.float32), 1, hp)
    w1 = _pad_axis(_pad_axis(params["w1"], 1, hp), 2, 2 * hp)
    g = _pad_axis(params["gamma"], 2, 2 * hp)
    be = _pad_axis(params["beta"], 2, 2 * hp)
    w2 = _pad_axis(_pad_axis(params["w2"], 1, 2 * hp), 2, hp)
    b2 = _pad_axis(params["b2"], 2, hp)
    t = params["t"]                      # (L, 1) scalars -> SMEM
    # Note: params["b1"] is intentionally NOT passed (cancelled by BatchNorm).

    def vmem():
        return pl.BlockSpec(memory_space=pltpu.MemorySpace.VMEM)

    buffers = (xp, S, Tt, w1, g, be, w2, b2)
    buf_bytes = sum(int(b.size) * b.dtype.itemsize for b in buffers) + n * hp * 4
    # Explicit scoped-VMEM budget: actual buffers + headroom for the unrolled-loop
    # intermediates; never below a sane default, capped at v7x's 64 MiB physical.
    vmem_limit = int(min(max(4 * buf_bytes + (16 << 20), 32 << 20), 64 << 20))

    out_p = pl.pallas_call(
        _deeper_gcn_kernel,
        out_shape=jax.ShapeDtypeStruct((n, hp), jnp.float32),
        in_specs=[
            vmem(),   # x   (N, Hp)
            vmem(),   # S   (E, N)   bf16
            vmem(),   # Tt  (N, E)   bf16
            vmem(),   # w1  (L, Hp, 2Hp)
            vmem(),   # bn gamma (L, 1, 2Hp)
            vmem(),   # bn beta  (L, 1, 2Hp)
            vmem(),   # w2  (L, 2Hp, Hp)
            vmem(),   # b2  (L, 1, Hp)
            pl.BlockSpec(memory_space=pltpu.MemorySpace.SMEM),   # t (L, 1)
        ],
        out_specs=pl.BlockSpec(memory_space=pltpu.MemorySpace.VMEM),
        compiler_params=pltpu.CompilerParams(vmem_limit_bytes=vmem_limit),
    )(xp, S, Tt, w1, g, be, w2, b2, t)
    return out_p[:, :h]


# ----------------------------- references -----------------------------------

def _one_hot_mats(edge_index, n, dtype):
    e = edge_index.shape[1]
    src, tgt = edge_index[0], edge_index[1]
    S = jnp.zeros((e, n), dtype).at[jnp.arange(e), src].set(1.0)
    Tt = jnp.zeros((n, e), dtype).at[tgt, jnp.arange(e)].set(1.0)
    return S, Tt


def deeper_gcn_reference(x, edge_index, params):
    """Full-f32 reference with the module's exact math (Linear bias included)."""
    n, h = x.shape
    S, Tt = _one_hot_mats(edge_index, n, jnp.float32)
    hi = jax.lax.Precision.HIGHEST
    L = params["w1"].shape[0]
    hcur = x
    for l in range(L):
        z = jnp.maximum(hcur, 0.0) + GEN_EPS
        msg = jnp.dot(S, z, precision=hi)
        ex = jnp.exp(msg * params["t"][l, 0])
        num = jnp.dot(Tt, ex * msg, precision=hi)
        den = jnp.dot(Tt, ex, precision=hi)
        den_safe = jnp.where(den > 0.0, den, 1.0)
        agg = jnp.where(den > 0.0, num / den_safe, 0.0)
        gen_in = agg + hcur
        y1 = jnp.dot(gen_in, params["w1"][l], precision=hi) + params["b1"][l, 0]
        mu = jnp.mean(y1, axis=0, keepdims=True)
        var = jnp.mean((y1 - mu) ** 2, axis=0, keepdims=True)
        y1 = (y1 - mu) / jnp.sqrt(var + BN_EPS)
        y1 = y1 * params["gamma"][l, 0] + params["beta"][l, 0]
        y1 = jnp.maximum(y1, 0.0)
        h1 = jnp.dot(y1, params["w2"][l], precision=hi) + params["b2"][l, 0]
        cm = jnp.mean(h1, axis=0, keepdims=True)
        hc = h1 - cm
        denom = jnp.sqrt(PN_EPS + jnp.mean(jnp.sum(hc * hc, axis=1)))
        h2 = hc / denom
        r = jnp.maximum(h2, 0.0)
        hcur = r if l == 0 else r + hcur
    return hcur


def deeper_gcn_matched_reference(x, edge_index, params):
    """Plain-JAX mirror of the kernel's exact math (bf16 MXU operands on the
    gather/scatter matmuls, global-max-stabilized softmax, b1 dropped) — used to
    validate the kernel implementation at matched precision."""
    n, h = x.shape
    S, Tt = _one_hot_mats(edge_index, n, jnp.bfloat16)
    hi = jax.lax.Precision.HIGHEST
    L = params["w1"].shape[0]
    hcur = x
    for l in range(L):
        z = jnp.maximum(hcur, 0.0) + GEN_EPS
        msg = jnp.dot(S, z.astype(jnp.bfloat16), preferred_element_type=jnp.float32)
        t = params["t"][l, 0]
        m = jnp.max(msg, axis=0, keepdims=True)
        ex = jnp.exp((msg - m) * t)
        rhs = jnp.concatenate([(ex * msg).astype(jnp.bfloat16),
                               ex.astype(jnp.bfloat16)], axis=-1)
        sums = jnp.dot(Tt, rhs, preferred_element_type=jnp.float32)
        num, den = sums[:, :h], sums[:, h:]
        den_safe = jnp.where(den > 0.0, den, 1.0)
        agg = jnp.where(den > 0.0, num / den_safe, 0.0)
        gen_in = agg + hcur
        y1 = jnp.dot(gen_in, params["w1"][l], precision=hi)
        mu = jnp.mean(y1, axis=0, keepdims=True)
        yc = y1 - mu
        var = jnp.mean(yc * yc, axis=0, keepdims=True)
        y1 = yc * lax.rsqrt(var + BN_EPS) * params["gamma"][l, 0] + params["beta"][l, 0]
        y1 = jnp.maximum(y1, 0.0)
        h1 = jnp.dot(y1, params["w2"][l], precision=hi) + params["b2"][l, 0]
        cm = jnp.mean(h1, axis=0, keepdims=True)
        hc = h1 - cm
        denom = jnp.sqrt(PN_EPS + jnp.mean(jnp.sum(hc * hc, axis=1)))
        h2 = hc / denom
        r = jnp.maximum(h2, 0.0)
        hcur = r if l == 0 else r + hcur
    return hcur


def make_params(key, num_layers, hidden):
    keys = jax.random.split(key, 3 * num_layers)
    w1, b1, gamma, beta, w2, b2, t = [], [], [], [], [], [], []
    for l in range(num_layers):
        k1, k2, k3 = keys[3 * l], keys[3 * l + 1], keys[3 * l + 2]
        w1.append(jax.random.normal(k1, (hidden, 2 * hidden), jnp.float32) / jnp.sqrt(hidden))
        b1.append(0.01 * jax.random.normal(k3, (1, 2 * hidden), jnp.float32))
        gamma.append(jnp.ones((1, 2 * hidden), jnp.float32))
        beta.append(jnp.zeros((1, 2 * hidden), jnp.float32))
        w2.append(jax.random.normal(k2, (2 * hidden, hidden), jnp.float32) / jnp.sqrt(2 * hidden))
        b2.append(jnp.zeros((1, hidden), jnp.float32))
        t.append(jnp.ones((1,), jnp.float32))          # learn_t init = 1.0
    return {
        "w1": jnp.stack(w1), "b1": jnp.stack(b1),
        "gamma": jnp.stack(gamma), "beta": jnp.stack(beta),
        "w2": jnp.stack(w2), "b2": jnp.stack(b2),
        "t": jnp.stack(t),
    }


if __name__ == "__main__":
    NUM_NODES = 64
    NUM_EDGES = 128
    HIDDEN = 32
    NUM_LAYERS = 5

    key = jax.random.PRNGKey(0)
    kx, ke, kp = jax.random.split(key, 3)

    x = jax.random.normal(kx, (NUM_NODES, HIDDEN), jnp.float32)

    # Edge index (2, E): a ring (so every node has an incoming edge) + random edges.
    ring_src = jnp.arange(NUM_NODES, dtype=jnp.int32)
    ring_tgt = (ring_src + 1) % NUM_NODES
    rnd = jax.random.randint(ke, (2, NUM_EDGES - NUM_NODES), 0, NUM_NODES, dtype=jnp.int32)
    edge_index = jnp.concatenate(
        [jnp.stack([ring_src, ring_tgt]), rnd], axis=1).astype(jnp.int32)   # (2, 128)

    params = make_params(kp, NUM_LAYERS, HIDDEN)

    out = jax.block_until_ready(deeper_gcn_pallas(x, edge_index, params))
    assert out.shape == (NUM_NODES, HIDDEN)

    # 1) implementation correctness at matched precision (tight tolerance)
    ref_match = jax.block_until_ready(deeper_gcn_matched_reference(x, edge_index, params))
    err_match = float(jnp.max(jnp.abs(out - ref_match)))
    assert jnp.allclose(out, ref_match, atol=2e-3, rtol=2e-3), err_match

    # 2) fidelity to the full-f32 module semantics (bf16 MXU operands -> looser)
    ref_exact = jax.block_until_ready(deeper_gcn_reference(x, edge_index, params))
    err_exact = float(jnp.max(jnp.abs(out - ref_exact)))
    assert jnp.allclose(out, ref_exact, atol=3e-2, rtol=3e-2), err_exact

    print("KERNEL_OK")
</pallas_src>

<mosaic_0001>
module attributes {stable_mosaic.version = 11 : i64} {
  func.func @_deeper_gcn_kernel(%arg0: memref<64x128xf32, #tpu.memory_space<vmem>>, %arg1: memref<128x64xbf16, #tpu.memory_space<vmem>>, %arg2: memref<64x128xbf16, #tpu.memory_space<vmem>>, %arg3: memref<5x128x256xf32, #tpu.memory_space<vmem>>, %arg4: memref<5x1x256xf32, #tpu.memory_space<vmem>>, %arg5: memref<5x1x256xf32, #tpu.memory_space<vmem>>, %arg6: memref<5x256x128xf32, #tpu.memory_space<vmem>>, %arg7: memref<5x1x128xf32, #tpu.memory_space<vmem>>, %arg8: memref<5x1xf32, #tpu.memory_space<smem>>, %arg9: memref<64x128xf32, #tpu.memory_space<vmem>>) attributes {dimension_semantics = [], scalar_prefetch = 0 : i64, scratch_operands = 0 : i64, tpu.core_type = #tpu.core_type<tc>} {
    %c0 = arith.constant 0 : index
    %c0_0 = arith.constant 0 : index
    %0 = vector.load %arg1[%c0, %c0_0] : memref<128x64xbf16, #tpu.memory_space<vmem>>, vector<128x64xbf16>
    %c0_1 = arith.constant 0 : index
    %c0_2 = arith.constant 0 : index
    %1 = vector.load %arg2[%c0_1, %c0_2] : memref<64x128xbf16, #tpu.memory_space<vmem>>, vector<64x128xbf16>
    %c0_3 = arith.constant 0 : index
    %c0_4 = arith.constant 0 : index
    %2 = vector.load %arg0[%c0_3, %c0_4] : memref<64x128xf32, #tpu.memory_space<vmem>>, vector<64x128xf32>
    %cst = arith.constant 0.000000e+00 : f32
    %3 = vector.broadcast %cst : f32 to vector<64x128xf32>
    %4 = arith.maximumf %2, %3 : vector<64x128xf32>
    %cst_5 = arith.constant 1.000000e-07 : f32
    %5 = vector.broadcast %cst_5 : f32 to vector<64x128xf32>
    %6 = arith.addf %4, %5 : vector<64x128xf32>
    %7 = arith.truncf %6 : vector<64x128xf32> to vector<64x128xbf16>
    %cst_6 = arith.constant dense<0.000000e+00> : vector<128x128xf32>
    %8 = tpu.matmul %0, %7, %cst_6 {dimension_numbers = #tpu.dot_dimension_numbers<[1], [0], [0], [1], [0, 0, 1, 1], [], []>} : vector<128x64xbf16>, vector<64x128xbf16>, vector<128x128xf32> -> vector<128x128xf32>
    %c0_7 = arith.constant 0 : index
    %c0_8 = arith.constant 0 : index
    %9 = memref.load %arg8[%c0_7, %c0_8] : memref<5x1xf32, #tpu.memory_space<smem>>
    %cst_9 = arith.constant dense<0xFF800000> : vector<128xf32>
    %10 = vector.multi_reduction <maximumf>, %8, %cst_9 [0] : vector<128x128xf32> to vector<128xf32>
    %11 = vector.shape_cast %10 : vector<128xf32> to vector<1x128xf32>
    %12 = vector.broadcast %11 : vector<1x128xf32> to vector<128x128xf32>
    %13 = arith.subf %8, %12 : vector<128x128xf32>
    %14 = vector.broadcast %9 : f32 to vector<128x128xf32>
    %15 = arith.mulf %13, %14 : vector<128x128xf32>
    %16 = math.exp %15 : vector<128x128xf32>
    %17 = arith.mulf %16, %8 : vector<128x128xf32>
    %18 = arith.truncf %17 : vector<128x128xf32> to vector<128x128xbf16>
    %19 = arith.truncf %16 : vector<128x128xf32> to vector<128x128xbf16>
    %20 = tpu.concatenate %18, %19 in 1 : vector<128x128xbf16>, vector<128x128xbf16> -> vector<128x256xbf16>
    %cst_10 = arith.constant dense<0.000000e+00> : vector<64x256xf32>
    %21 = tpu.matmul %1, %20, %cst_10 {dimension_numbers = #tpu.dot_dimension_numbers<[1], [0], [0], [1], [0, 0, 1, 1], [], []>} : vector<64x128xbf16>, vector<128x256xbf16>, vector<64x256xf32> -> vector<64x256xf32>
    %22 = vector.extract_strided_slice %21 {offsets = [0, 0], sizes = [64, 128], strides = [1, 1]} : vector<64x256xf32> to vector<64x128xf32>
    %23 = vector.extract_strided_slice %21 {offsets = [0, 128], sizes = [64, 128], strides = [1, 1]} : vector<64x256xf32> to vector<64x128xf32>
    %cst_11 = arith.constant 0.000000e+00 : f32
    %24 = vector.broadcast %cst_11 : f32 to vector<64x128xf32>
    %25 = arith.cmpf ogt, %23, %24 : vector<64x128xf32>
    %cst_12 = arith.constant 1.000000e+00 : f32
    %26 = vector.broadcast %cst_12 : f32 to vector<64x128xf32>
    %27 = arith.select %25, %23, %26 : vector<64x128xi1>, vector<64x128xf32>
    %cst_13 = arith.constant 0.000000e+00 : f32
    %28 = vector.broadcast %cst_13 : f32 to vector<64x128xf32>
    %29 = arith.cmpf ogt, %23, %28 : vector<64x128xf32>
    %30 = arith.divf %22, %27 : vector<64x128xf32>
    %cst_14 = arith.constant 0.000000e+00 : f32
    %31 = vector.broadcast %cst_14 : f32 to vector<64x128xf32>
    %32 = arith.select %29, %30, %31 : vector<64x128xi1>, vector<64x128xf32>
    %33 = arith.addf %32, %2 : vector<64x128xf32>
    %c0_15 = arith.constant 0 : index
    %c0_16 = arith.constant 0 : index
    %c0_17 = arith.constant 0 : index
    %34 = vector.load %arg3[%c0_15, %c0_16, %c0_17] : memref<5x128x256xf32, #tpu.memory_space<vmem>>, vector<1x128x256xf32>
    %35 = vector.shape_cast %34 : vector<1x128x256xf32> to vector<128x256xf32>
    %cst_18 = arith.constant dense<0.000000e+00> : vector<64x256xf32>
    %36 = tpu.matmul %33, %35, %cst_18 {dimension_numbers = #tpu.dot_dimension_numbers<[1], [0], [0], [1], [0, 0, 1, 1], [], []>} : vector<64x128xf32>, vector<128x256xf32>, vector<64x256xf32> -> vector<64x256xf32>
    %cst_19 = arith.constant dense<0.000000e+00> : vector<256xf32>
    %37 = vector.multi_reduction <add>, %36, %cst_19 [0] : vector<64x256xf32> to vector<256xf32>
    %38 = vector.shape_cast %37 : vector<256xf32> to vector<1x256xf32>
    %cst_20 = arith.constant 6.400000e+01 : f32
    %39 = vector.broadcast %cst_20 : f32 to vector<1x256xf32>
    %40 = arith.divf %38, %39 : vector<1x256xf32>
    %41 = vector.broadcast %40 : vector<1x256xf32> to vector<64x256xf32>
    %42 = arith.subf %36, %41 : vector<64x256xf32>
    %43 = arith.mulf %42, %42 : vector<64x256xf32>
    %cst_21 = arith.constant dense<0.000000e+00> : vector<256xf32>
    %44 = vector.multi_reduction <add>, %43, %cst_21 [0] : vector<64x256xf32> to vector<256xf32>
    %45 = vector.shape_cast %44 : vector<256xf32> to vector<1x256xf32>
    %cst_22 = arith.constant 6.400000e+01 : f32
    %46 = vector.broadcast %cst_22 : f32 to vector<1x256xf32>
    %47 = arith.divf %45, %46 : vector<1x256xf32>
    %cst_23 = arith.constant 9.99999974E-6 : f32
    %48 = vector.broadcast %cst_23 : f32 to vector<1x256xf32>
    %49 = arith.addf %47, %48 : vector<1x256xf32>
    %50 = math.rsqrt %49 : vector<1x256xf32>
    %51 = vector.broadcast %50 : vector<1x256xf32> to vector<64x256xf32>
    %52 = arith.mulf %42, %51 : vector<64x256xf32>
    %c0_24 = arith.constant 0 : index
    %c0_25 = arith.constant 0 : index
    %c0_26 = arith.constant 0 : index
    %53 = vector.load %arg4[%c0_24, %c0_25, %c0_26] : memref<5x1x256xf32, #tpu.memory_space<vmem>>, vector<1x1x256xf32>
    %54 = vector.shape_cast %53 : vector<1x1x256xf32> to vector<1x256xf32>
    %55 = vector.broadcast %54 : vector<1x256xf32> to vector<64x256xf32>
    %56 = arith.mulf %52, %55 : vector<64x256xf32>
    %c0_27 = arith.constant 0 : index
    %c0_28 = arith.constant 0 : index
    %c0_29 = arith.constant 0 : index
    %57 = vector.load %arg5[%c0_27, %c0_28, %c0_29] : memref<5x1x256xf32, #tpu.memory_space<vmem>>, vector<1x1x256xf32>
    %58 = vector.shape_cast %57 : vector<1x1x256xf32> to vector<1x256xf32>
    %59 = vector.broadcast %58 : vector<1x256xf32> to vector<64x256xf32>
    %60 = arith.addf %56, %59 : vector<64x256xf32>
    %cst_30 = arith.constant 0.000000e+00 : f32
    %61 = vector.broadcast %cst_30 : f32 to vector<64x256xf32>
    %62 = arith.maximumf %60, %61 : vector<64x256xf32>
    %c0_31 = arith.constant 0 : index
    %c0_32 = arith.constant 0 : index
    %c0_33 = arith.constant 0 : index
    %63 = vector.load %arg6[%c0_31, %c0_32, %c0_33] : memref<5x256x128xf32, #tpu.memory_space<vmem>>, vector<1x256x128xf32>
    %64 = vector.shape_cast %63 : vector<1x256x128xf32> to vector<256x128xf32>
    %cst_34 = arith.constant dense<0.000000e+00> : vector<64x128xf32>
    %65 = tpu.matmul %62, %64, %cst_34 {dimension_numbers = #tpu.dot_dimension_numbers<[1], [0], [0], [1], [0, 0, 1, 1], [], []>} : vector<64x256xf32>, vector<256x128xf32>, vector<64x128xf32> -> vector<64x128xf32>
    %c0_35 = arith.constant 0 : index
    %c0_36 = arith.constant 0 : index
    %c0_37 = arith.constant 0 : index
    %66 = vector.load %arg7[%c0_35, %c0_36, %c0_37] : memref<5x1x128xf32, #tpu.memory_space<vmem>>, vector<1x1x128xf32>
    %67 = vector.shape_cast %66 : vector<1x1x128xf32> to vector<1x128xf32>
    %68 = vector.broadcast %67 : vector<1x128xf32> to vector<64x128xf32>
    %69 = arith.addf %65, %68 : vector<64x128xf32>
    %cst_38 = arith.constant dense<0.000000e+00> : vector<128xf32>
    %70 = vector.multi_reduction <add>, %69, %cst_38 [0] : vector<64x128xf32> to vector<128xf32>
    %71 = vector.shape_cast %70 : vector<128xf32> to vector<1x128xf32>
    %cst_39 = arith.constant 6.400000e+01 : f32
    %72 = vector.broadcast %cst_39 : f32 to vector<1x128xf32>
    %73 = arith.divf %71, %72 : vector<1x128xf32>
    %74 = vector.broadcast %73 : vector<1x128xf32> to vector<64x128xf32>
    %75 = arith.subf %69, %74 : vector<64x128xf32>
    %76 = arith.mulf %75, %75 : vector<64x128xf32>
    %cst_40 = arith.constant dense<0.000000e+00> : vector<64xf32>
    %77 = vector.multi_reduction <add>, %76, %cst_40 [1] : vector<64x128xf32> to vector<64xf32>
    %78 = vector.shape_cast %77 : vector<64xf32> to vector<64x1xf32>
    %cst_41 = arith.constant dense<0.000000e+00> : vector<1xf32>
    %79 = vector.multi_reduction <add>, %78, %cst_41 [0] : vector<64x1xf32> to vector<1xf32>
    %80 = vector.shape_cast %79 : vector<1xf32> to vector<1x1xf32>
    %cst_42 = arith.constant 6.400000e+01 : f32
    %81 = vector.broadcast %cst_42 : f32 to vector<1x1xf32>
    %82 = arith.divf %80, %81 : vector<1x1xf32>
    %cst_43 = arith.constant 9.99999974E-6 : f32
    %83 = vector.broadcast %cst_43 : f32 to vector<1x1xf32>
    %84 = arith.addf %83, %82 : vector<1x1xf32>
    %85 = math.sqrt %84 : vector<1x1xf32>
    %86 = vector.broadcast %85 : vector<1x1xf32> to vector<64x128xf32>
    %87 = arith.divf %75, %86 : vector<64x128xf32>
    %cst_44 = arith.constant 0.000000e+00 : f32
    %88 = vector.broadcast %cst_44 : f32 to vector<64x128xf32>
    %89 = arith.maximumf %87, %88 : vector<64x128xf32>
    %cst_45 = arith.constant 0.000000e+00 : f32
    %90 = vector.broadcast %cst_45 : f32 to vector<64x128xf32>
    %91 = arith.maximumf %89, %90 : vector<64x128xf32>
    %cst_46 = arith.constant 1.000000e-07 : f32
    %92 = vector.broadcast %cst_46 : f32 to vector<64x128xf32>
    %93 = arith.addf %91, %92 : vector<64x128xf32>
    %94 = arith.truncf %93 : vector<64x128xf32> to vector<64x128xbf16>
    %cst_47 = arith.constant dense<0.000000e+00> : vector<128x128xf32>
    %95 = tpu.matmul %0, %94, %cst_47 {dimension_numbers = #tpu.dot_dimension_numbers<[1], [0], [0], [1], [0, 0, 1, 1], [], []>} : vector<128x64xbf16>, vector<64x128xbf16>, vector<128x128xf32> -> vector<128x128xf32>
    %c1 = arith.constant 1 : index
    %c0_48 = arith.constant 0 : index
    %96 = memref.load %arg8[%c1, %c0_48] : memref<5x1xf32, #tpu.memory_space<smem>>
    %cst_49 = arith.constant dense<0xFF800000> : vector<128xf32>
    %97 = vector.multi_reduction <maximumf>, %95, %cst_49 [0] : vector<128x128xf32> to vector<128xf32>
    %98 = vector.shape_cast %97 : vector<128xf32> to vector<1x128xf32>
    %99 = vector.broadcast %98 : vector<1x128xf32> to vector<128x128xf32>
    %100 = arith.subf %95, %99 : vector<128x128xf32>
    %101 = vector.broadcast %96 : f32 to vector<128x128xf32>
    %102 = arith.mulf %100, %101 : vector<128x128xf32>
    %103 = math.exp %102 : vector<128x128xf32>
    %104 = arith.mulf %103, %95 : vector<128x128xf32>
    %105 = arith.truncf %104 : vector<128x128xf32> to vector<128x128xbf16>
    %106 = arith.truncf %103 : vector<128x128xf32> to vector<128x128xbf16>
    %107 = tpu.concatenate %105, %106 in 1 : vector<128x128xbf16>, vector<128x128xbf16> -> vector<128x256xbf16>
    %cst_50 = arith.constant dense<0.000000e+00> : vector<64x256xf32>
    %108 = tpu.matmul %1, %107, %cst_50 {dimension_numbers = #tpu.dot_dimension_numbers<[1], [0], [0], [1], [0, 0, 1, 1], [], []>} : vector<64x128xbf16>, vector<128x256xbf16>, vector<64x256xf32> -> vector<64x256xf32>
    %109 = vector.extract_strided_slice %108 {offsets = [0, 0], sizes = [64, 128], strides = [1, 1]} : vector<64x256xf32> to vector<64x128xf32>
    %110 = vector.extract_strided_slice %108 {offsets = [0, 128], sizes = [64, 128], strides = [1, 1]} : vector<64x256xf32> to vector<64x128xf32>
    %cst_51 = arith.constant 0.000000e+00 : f32
    %111 = vector.broadcast %cst_51 : f32 to vector<64x128xf32>
    %112 = arith.cmpf ogt, %110, %111 : vector<64x128xf32>
    %cst_52 = arith.constant 1.000000e+00 : f32
    %113 = vector.broadcast %cst_52 : f32 to vector<64x128xf32>
    %114 = arith.select %112, %110, %113 : vector<64x128xi1>, vector<64x128xf32>
    %cst_53 = arith.constant 0.000000e+00 : f32
    %115 = vector.broadcast %cst_53 : f32 to vector<64x128xf32>
    %116 = arith.cmpf ogt, %110, %115 : vector<64x128xf32>
    %117 = arith.divf %109, %114 : vector<64x128xf32>
    %cst_54 = arith.constant 0.000000e+00 : f32
    %118 = vector.broadcast %cst_54 : f32 to vector<64x128xf32>
    %119 = arith.select %116, %117, %118 : vector<64x128xi1>, vector<64x128xf32>
    %120 = arith.addf %119, %89 : vector<64x128xf32>
    %c1_55 = arith.constant 1 : index
    %c0_56 = arith.constant 0 : index
    %c0_57 = arith.constant 0 : index
    %121 = vector.load %arg3[%c1_55, %c0_56, %c0_57] : memref<5x128x256xf32, #tpu.memory_space<vmem>>, vector<1x128x256xf32>
    %122 = vector.shape_cast %121 : vector<1x128x256xf32> to vector<128x256xf32>
    %cst_58 = arith.constant dense<0.000000e+00> : vector<64x256xf32>
    %123 = tpu.matmul %120, %122, %cst_58 {dimension_numbers = #tpu.dot_dimension_numbers<[1], [0], [0], [1], [0, 0, 1, 1], [], []>} : vector<64x128xf32>, vector<128x256xf32>, vector<64x256xf32> -> vector<64x256xf32>
    %cst_59 = arith.constant dense<0.000000e+00> : vector<256xf32>
    %124 = vector.multi_reduction <add>, %123, %cst_59 [0] : vector<64x256xf32> to vector<256xf32>
    %125 = vector.shape_cast %124 : vector<256xf32> to vector<1x256xf32>
    %cst_60 = arith.constant 6.400000e+01 : f32
    %126 = vector.broadcast %cst_60 : f32 to vector<1x256xf32>
    %127 = arith.divf %125, %126 : vector<1x256xf32>
    %128 = vector.broadcast %127 : vector<1x256xf32> to vector<64x256xf32>
    %129 = arith.subf %123, %128 : vector<64x256xf32>
    %130 = arith.mulf %129, %129 : vector<64x256xf32>
    %cst_61 = arith.constant dense<0.000000e+00> : vector<256xf32>
    %131 = vector.multi_reduction <add>, %130, %cst_61 [0] : vector<64x256xf32> to vector<256xf32>
    %132 = vector.shape_cast %131 : vector<256xf32> to vector<1x256xf32>
    %cst_62 = arith.constant 6.400000e+01 : f32
    %133 = vector.broadcast %cst_62 : f32 to vector<1x256xf32>
    %134 = arith.divf %132, %133 : vector<1x256xf32>
    %cst_63 = arith.constant 9.99999974E-6 : f32
    %135 = vector.broadcast %cst_63 : f32 to vector<1x256xf32>
    %136 = arith.addf %134, %135 : vector<1x256xf32>
    %137 = math.rsqrt %136 : vector<1x256xf32>
    %138 = vector.broadcast %137 : vector<1x256xf32> to vector<64x256xf32>
    %139 = arith.mulf %129, %138 : vector<64x256xf32>
    %c1_64 = arith.constant 1 : index
    %c0_65 = arith.constant 0 : index
    %c0_66 = arith.constant 0 : index
    %140 = vector.load %arg4[%c1_64, %c0_65, %c0_66] : memref<5x1x256xf32, #tpu.memory_space<vmem>>, vector<1x1x256xf32>
    %141 = vector.shape_cast %140 : vector<1x1x256xf32> to vector<1x256xf32>
    %142 = vector.broadcast %141 : vector<1x256xf32> to vector<64x256xf32>
    %143 = arith.mulf %139, %142 : vector<64x256xf32>
    %c1_67 = arith.constant 1 : index
    %c0_68 = arith.constant 0 : index
    %c0_69 = arith.constant 0 : index
    %144 = vector.load %arg5[%c1_67, %c0_68, %c0_69] : memref<5x1x256xf32, #tpu.memory_space<vmem>>, vector<1x1x256xf32>
    %145 = vector.shape_cast %144 : vector<1x1x256xf32> to vector<1x256xf32>
    %146 = vector.broadcast %145 : vector<1x256xf32> to vector<64x256xf32>
    %147 = arith.addf %143, %146 : vector<64x256xf32>
    %cst_70 = arith.constant 0.000000e+00 : f32
    %148 = vector.broadcast %cst_70 : f32 to vector<64x256xf32>
    %149 = arith.maximumf %147, %148 : vector<64x256xf32>
    %c1_71 = arith.constant 1 : index
    %c0_72 = arith.constant 0 : index
    %c0_73 = arith.constant 0 : index
    %150 = vector.load %arg6[%c1_71, %c0_72, %c0_73] : memref<5x256x128xf32, #tpu.memory_space<vmem>>, vector<1x256x128xf32>
    %151 = vector.shape_cast %150 : vector<1x256x128xf32> to vector<256x128xf32>
    %cst_74 = arith.constant dense<0.000000e+00> : vector<64x128xf32>
    %152 = tpu.matmul %149, %151, %cst_74 {dimension_numbers = #tpu.dot_dimension_numbers<[1], [0], [0], [1], [0, 0, 1, 1], [], []>} : vector<64x256xf32>, vector<256x128xf32>, vector<64x128xf32> -> vector<64x128xf32>
    %c1_75 = arith.constant 1 : index
    %c0_76 = arith.constant 0 : index
    %c0_77 = arith.constant 0 : index
    %153 = vector.load %arg7[%c1_75, %c0_76, %c0_77] : memref<5x1x128xf32, #tpu.memory_space<vmem>>, vector<1x1x128xf32>
    %154 = vector.shape_cast %153 : vector<1x1x128xf32> to vector<1x128xf32>
    %155 = vector.broadcast %154 : vector<1x128xf32> to vector<64x128xf32>
    %156 = arith.addf %152, %155 : vector<64x128xf32>
    %cst_78 = arith.constant dense<0.000000e+00> : vector<128xf32>
    %157 = vector.multi_reduction <add>, %156, %cst_78 [0] : vector<64x128xf32> to vector<128xf32>
    %158 = vector.shape_cast %157 : vector<128xf32> to vector<1x128xf32>
    %cst_79 = arith.constant 6.400000e+01 : f32
    %159 = vector.broadcast %cst_79 : f32 to vector<1x128xf32>
    %160 = arith.divf %158, %159 : vector<1x128xf32>
    %161 = vector.broadcast %160 : vector<1x128xf32> to vector<64x128xf32>
    %162 = arith.subf %156, %161 : vector<64x128xf32>
    %163 = arith.mulf %162, %162 : vector<64x128xf32>
    %cst_80 = arith.constant dense<0.000000e+00> : vector<64xf32>
    %164 = vector.multi_reduction <add>, %163, %cst_80 [1] : vector<64x128xf32> to vector<64xf32>
    %165 = vector.shape_cast %164 : vector<64xf32> to vector<64x1xf32>
    %cst_81 = arith.constant dense<0.000000e+00> : vector<1xf32>
    %166 = vector.multi_reduction <add>, %165, %cst_81 [0] : vector<64x1xf32> to vector<1xf32>
    %167 = vector.shape_cast %166 : vector<1xf32> to vector<1x1xf32>
    %cst_82 = arith.constant 6.400000e+01 : f32
    %168 = vector.broadcast %cst_82 : f32 to vector<1x1xf32>
    %169 = arith.divf %167, %168 : vector<1x1xf32>
    %cst_83 = arith.constant 9.99999974E-6 : f32
    %170 = vector.broadcast %cst_83 : f32 to vector<1x1xf32>
    %171 = arith.addf %170, %169 : vector<1x1xf32>
    %172 = math.sqrt %171 : vector<1x1xf32>
    %173 = vector.broadcast %172 : vector<1x1xf32> to vector<64x128xf32>
    %174 = arith.divf %162, %173 : vector<64x128xf32>
    %cst_84 = arith.constant 0.000000e+00 : f32
    %175 = vector.broadcast %cst_84 : f32 to vector<64x128xf32>
    %176 = arith.maximumf %174, %175 : vector<64x128xf32>
    %177 = arith.addf %176, %89 : vector<64x128xf32>
    %cst_85 = arith.constant 0.000000e+00 : f32
    %178 = vector.broadcast %cst_85 : f32 to vector<64x128xf32>
    %179 = arith.maximumf %177, %178 : vector<64x128xf32>
    %cst_86 = arith.constant 1.000000e-07 : f32
    %180 = vector.broadcast %cst_86 : f32 to vector<64x128xf32>
    %181 = arith.addf %179, %180 : vector<64x128xf32>
    %182 = arith.truncf %181 : vector<64x128xf32> to vector<64x128xbf16>
    %cst_87 = arith.constant dense<0.000000e+00> : vector<128x128xf32>
    %183 = tpu.matmul %0, %182, %cst_87 {dimension_numbers = #tpu.dot_dimension_numbers<[1], [0], [0], [1], [0, 0, 1, 1], [], []>} : vector<128x64xbf16>, vector<64x128xbf16>, vector<128x128xf32> -> vector<128x128xf32>
    %c2 = arith.constant 2 : index
    %c0_88 = arith.constant 0 : index
    %184 = memref.load %arg8[%c2, %c0_88] : memref<5x1xf32, #tpu.memory_space<smem>>
    %cst_89 = arith.constant dense<0xFF800000> : vector<128xf32>
    %185 = vector.multi_reduction <maximumf>, %183, %cst_89 [0] : vector<128x128xf32> to vector<128xf32>
    %186 = vector.shape_cast %185 : vector<128xf32> to vector<1x128xf32>
    %187 = vector.broadcast %186 : vector<1x128xf32> to vector<128x128xf32>
    %188 = arith.subf %183, %187 : vector<128x128xf32>
    %189 = vector.broadcast %184 : f32 to vector<128x128xf32>
    %190 = arith.mulf %188, %189 : vector<128x128xf32>
    %191 = math.exp %190 : vector<128x128xf32>
    %192 = arith.mulf %191, %183 : vector<128x128xf32>
    %193 = arith.truncf %192 : vector<128x128xf32> to vector<128x128xbf16>
    %194 = arith.truncf %191 : vector<128x128xf32> to vector<128x128xbf16>
    %195 = tpu.concatenate %193, %194 in 1 : vector<128x128xbf16>, vector<128x128xbf16> -> vector<128x256xbf16>
    %cst_90 = arith.constant dense<0.000000e+00> : vector<64x256xf32>
    %196 = tpu.matmul %1, %195, %cst_90 {dimension_numbers = #tpu.dot_dimension_numbers<[1], [0], [0], [1], [0, 0, 1, 1], [], []>} : vector<64x128xbf16>, vector<128x256xbf16>, vector<64x256xf32> -> vector<64x256xf32>
    %197 = vector.extract_strided_slice %196 {offsets = [0, 0], sizes = [64, 128], strides = [1, 1]} : vector<64x256xf32> to vector<64x128xf32>
    %198 = vector.extract_strided_slice %196 {offsets = [0, 128], sizes = [64, 128], strides = [1, 1]} : vector<64x256xf32> to vector<64x128xf32>
    %cst_91 = arith.constant 0.000000e+00 : f32
    %199 = vector.broadcast %cst_91 : f32 to vector<64x128xf32>
    %200 = arith.cmpf ogt, %198, %199 : vector<64x128xf32>
    %cst_92 = arith.constant 1.000000e+00 : f32
    %201 = vector.broadcast %cst_92 : f32 to vector<64x128xf32>
    %202 = arith.select %200, %198, %201 : vector<64x128xi1>, vector<64x128xf32>
    %cst_93 = arith.constant 0.000000e+00 : f32
    %203 = vector.broadcast %cst_93 : f32 to vector<64x128xf32>
    %204 = arith.cmpf ogt, %198, %203 : vector<64x128xf32>
    %205 = arith.divf %197, %202 : vector<64x128xf32>
    %cst_94 = arith.constant 0.000000e+00 : f32
    %206 = vector.broadcast %cst_94 : f32 to vector<64x128xf32>
    %207 = arith.select %204, %205, %206 : vector<64x128xi1>, vector<64x128xf32>
    %208 = arith.addf %207, %177 : vector<64x128xf32>
    %c2_95 = arith.constant 2 : index
    %c0_96 = arith.constant 0 : index
    %c0_97 = arith.constant 0 : index
    %209 = vector.load %arg3[%c2_95, %c0_96, %c0_97] : memref<5x128x256xf32, #tpu.memory_space<vmem>>, vector<1x128x256xf32>
    %210 = vector.shape_cast %209 : vector<1x128x256xf32> to vector<128x256xf32>
    %cst_98 = arith.constant dense<0.000000e+00> : vector<64x256xf32>
    %211 = tpu.matmul %208, %210, %cst_98 {dimension_numbers = #tpu.dot_dimension_numbers<[1], [0], [0], [1], [0, 0, 1, 1], [], []>} : vector<64x128xf32>, vector<128x256xf32>, vector<64x256xf32> -> vector<64x256xf32>
    %cst_99 = arith.constant dense<0.000000e+00> : vector<256xf32>
    %212 = vector.multi_reduction <add>, %211, %cst_99 [0] : vector<64x256xf32> to vector<256xf32>
    %213 = vector.shape_cast %212 : vector<256xf32> to vector<1x256xf32>
    %cst_100 = arith.constant 6.400000e+01 : f32
    %214 = vector.broadcast %cst_100 : f32 to vector<1x256xf32>
    %215 = arith.divf %213, %214 : vector<1x256xf32>
    %216 = vector.broadcast %215 : vector<1x256xf32> to vector<64x256xf32>
    %217 = arith.subf %211, %216 : vector<64x256xf32>
    %218 = arith.mulf %217, %217 : vector<64x256xf32>
    %cst_101 = arith.constant dense<0.000000e+00> : vector<256xf32>
    %219 = vector.multi_reduction <add>, %218, %cst_101 [0] : vector<64x256xf32> to vector<256xf32>
    %220 = vector.shape_cast %219 : vector<256xf32> to vector<1x256xf32>
    %cst_102 = arith.constant 6.400000e+01 : f32
    %221 = vector.broadcast %cst_102 : f32 to vector<1x256xf32>
    %222 = arith.divf %220, %221 : vector<1x256xf32>
    %cst_103 = arith.constant 9.99999974E-6 : f32
    %223 = vector.broadcast %cst_103 : f32 to vector<1x256xf32>
    %224 = arith.addf %222, %223 : vector<1x256xf32>
    %225 = math.rsqrt %224 : vector<1x256xf32>
    %226 = vector.broadcast %225 : vector<1x256xf32> to vector<64x256xf32>
    %227 = arith.mulf %217, %226 : vector<64x256xf32>
    %c2_104 = arith.constant 2 : index
    %c0_105 = arith.constant 0 : index
    %c0_106 = arith.constant 0 : index
    %228 = vector.load %arg4[%c2_104, %c0_105, %c0_106] : memref<5x1x256xf32, #tpu.memory_space<vmem>>, vector<1x1x256xf32>
    %229 = vector.shape_cast %228 : vector<1x1x256xf32> to vector<1x256xf32>
    %230 = vector.broadcast %229 : vector<1x256xf32> to vector<64x256xf32>
    %231 = arith.mulf %227, %230 : vector<64x256xf32>
    %c2_107 = arith.constant 2 : index
    %c0_108 = arith.constant 0 : index
    %c0_109 = arith.constant 0 : index
    %232 = vector.load %arg5[%c2_107, %c0_108, %c0_109] : memref<5x1x256xf32, #tpu.memory_space<vmem>>, vector<1x1x256xf32>
    %233 = vector.shape_cast %232 : vector<1x1x256xf32> to vector<1x256xf32>
    %234 = vector.broadcast %233 : vector<1x256xf32> to vector<64x256xf32>
    %235 = arith.addf %231, %234 : vector<64x256xf32>
    %cst_110 = arith.constant 0.000000e+00 : f32
    %236 = vector.broadcast %cst_110 : f32 to vector<64x256xf32>
    %237 = arith.maximumf %235, %236 : vector<64x256xf32>
    %c2_111 = arith.constant 2 : index
    %c0_112 = arith.constant 0 : index
    %c0_113 = arith.constant 0 : index
    %238 = vector.load %arg6[%c2_111, %c0_112, %c0_113] : memref<5x256x128xf32, #tpu.memory_space<vmem>>, vector<1x256x128xf32>
    %239 = vector.shape_cast %238 : vector<1x256x128xf32> to vector<256x128xf32>
    %cst_114 = arith.constant dense<0.000000e+00> : vector<64x128xf32>
    %240 = tpu.matmul %237, %239, %cst_114 {dimension_numbers = #tpu.dot_dimension_numbers<[1], [0], [0], [1], [0, 0, 1, 1], [], []>} : vector<64x256xf32>, vector<256x128xf32>, vector<64x128xf32> -> vector<64x128xf32>
    %c2_115 = arith.constant 2 : index
    %c0_116 = arith.constant 0 : index
    %c0_117 = arith.constant 0 : index
    %241 = vector.load %arg7[%c2_115, %c0_116, %c0_117] : memref<5x1x128xf32, #tpu.memory_space<vmem>>, vector<1x1x128xf32>
    %242 = vector.shape_cast %241 : vector<1x1x128xf32> to vector<1x128xf32>
    %243 = vector.broadcast %242 : vector<1x128xf32> to vector<64x128xf32>
    %244 = arith.addf %240, %243 : vector<64x128xf32>
    %cst_118 = arith.constant dense<0.000000e+00> : vector<128xf32>
    %245 = vector.multi_reduction <add>, %244, %cst_118 [0] : vector<64x128xf32> to vector<128xf32>
    %246 = vector.shape_cast %245 : vector<128xf32> to vector<1x128xf32>
    %cst_119 = arith.constant 6.400000e+01 : f32
    %247 = vector.broadcast %cst_119 : f32 to vector<1x128xf32>
    %248 = arith.divf %246, %247 : vector<1x128xf32>
    %249 = vector.broadcast %248 : vector<1x128xf32> to vector<64x128xf32>
    %250 = arith.subf %244, %249 : vector<64x128xf32>
    %251 = arith.mulf %250, %250 : vector<64x128xf32>
    %cst_120 = arith.constant dense<0.000000e+00> : vector<64xf32>
    %252 = vector.multi_reduction <add>, %251, %cst_120 [1] : vector<64x128xf32> to vector<64xf32>
    %253 = vector.shape_cast %252 : vector<64xf32> to vector<64x1xf32>
    %cst_121 = arith.constant dense<0.000000e+00> : vector<1xf32>
    %254 = vector.multi_reduction <add>, %253, %cst_121 [0] : vector<64x1xf32> to vector<1xf32>
    %255 = vector.shape_cast %254 : vector<1xf32> to vector<1x1xf32>
    %cst_122 = arith.constant 6.400000e+01 : f32
    %256 = vector.broadcast %cst_122 : f32 to vector<1x1xf32>
    %257 = arith.divf %255, %256 : vector<1x1xf32>
    %cst_123 = arith.constant 9.99999974E-6 : f32
    %258 = vector.broadcast %cst_123 : f32 to vector<1x1xf32>
    %259 = arith.addf %258, %257 : vector<1x1xf32>
    %260 = math.sqrt %259 : vector<1x1xf32>
    %261 = vector.broadcast %260 : vector<1x1xf32> to vector<64x128xf32>
    %262 = arith.divf %250, %261 : vector<64x128xf32>
    %cst_124 = arith.constant 0.000000e+00 : f32
    %263 = vector.broadcast %cst_124 : f32 to vector<64x128xf32>
    %264 = arith.maximumf %262, %263 : vector<64x128xf32>
    %265 = arith.addf %264, %177 : vector<64x128xf32>
    %cst_125 = arith.constant 0.000000e+00 : f32
    %266 = vector.broadcast %cst_125 : f32 to vector<64x128xf32>
    %267 = arith.maximumf %265, %266 : vector<64x128xf32>
    %cst_126 = arith.constant 1.000000e-07 : f32
    %268 = vector.broadcast %cst_126 : f32 to vector<64x128xf32>
    %269 = arith.addf %267, %268 : vector<64x128xf32>
    %270 = arith.truncf %269 : vector<64x128xf32> to vector<64x128xbf16>
    %cst_127 = arith.constant dense<0.000000e+00> : vector<128x128xf32>
    %271 = tpu.matmul %0, %270, %cst_127 {dimension_numbers = #tpu.dot_dimension_numbers<[1], [0], [0], [1], [0, 0, 1, 1], [], []>} : vector<128x64xbf16>, vector<64x128xbf16>, vector<128x128xf32> -> vector<128x128xf32>
    %c3 = arith.constant 3 : index
    %c0_128 = arith.constant 0 : index
    %272 = memref.load %arg8[%c3, %c0_128] : memref<5x1xf32, #tpu.memory_space<smem>>
    %cst_129 = arith.constant dense<0xFF800000> : vector<128xf32>
    %273 = vector.multi_reduction <maximumf>, %271, %cst_129 [0] : vector<128x128xf32> to vector<128xf32>
    %274 = vector.shape_cast %273 : vector<128xf32> to vector<1x128xf32>
    %275 = vector.broadcast %274 : vector<1x128xf32> to vector<128x128xf32>
    %276 = arith.subf %271, %275 : vector<128x128xf32>
    %277 = vector.broadcast %272 : f32 to vector<128x128xf32>
    %278 = arith.mulf %276, %277 : vector<128x128xf32>
    %279 = math.exp %278 : vector<128x128xf32>
    %280 = arith.mulf %279, %271 : vector<128x128xf32>
    %281 = arith.truncf %280 : vector<128x128xf32> to vector<128x128xbf16>
    %282 = arith.truncf %279 : vector<128x128xf32> to vector<128x128xbf16>
    %283 = tpu.concatenate %281, %282 in 1 : vector<128x128xbf16>, vector<128x128xbf16> -> vector<128x256xbf16>
    %cst_130 = arith.constant dense<0.000000e+00> : vector<64x256xf32>
    %284 = tpu.matmul %1, %283, %cst_130 {dimension_numbers = #tpu.dot_dimension_numbers<[1], [0], [0], [1], [0, 0, 1, 1], [], []>} : vector<64x128xbf16>, vector<128x256xbf16>, vector<64x256xf32> -> vector<64x256xf32>
    %285 = vector.extract_strided_slice %284 {offsets = [0, 0], sizes = [64, 128], strides = [1, 1]} : vector<64x256xf32> to vector<64x128xf32>
    %286 = vector.extract_strided_slice %284 {offsets = [0, 128], sizes = [64, 128], strides = [1, 1]} : vector<64x256xf32> to vector<64x128xf32>
    %cst_131 = arith.constant 0.000000e+00 : f32
    %287 = vector.broadcast %cst_131 : f32 to vector<64x128xf32>
    %288 = arith.cmpf ogt, %286, %287 : vector<64x128xf32>
    %cst_132 = arith.constant 1.000000e+00 : f32
    %289 = vector.broadcast %cst_132 : f32 to vector<64x128xf32>
    %290 = arith.select %288, %286, %289 : vector<64x128xi1>, vector<64x128xf32>
    %cst_133 = arith.constant 0.000000e+00 : f32
    %291 = vector.broadcast %cst_133 : f32 to vector<64x128xf32>
    %292 = arith.cmpf ogt, %286, %291 : vector<64x128xf32>
    %293 = arith.divf %285, %290 : vector<64x128xf32>
    %cst_134 = arith.constant 0.000000e+00 : f32
    %294 = vector.broadcast %cst_134 : f32 to vector<64x128xf32>
    %295 = arith.select %292, %293, %294 : vector<64x128xi1>, vector<64x128xf32>
    %296 = arith.addf %295, %265 : vector<64x128xf32>
    %c3_135 = arith.constant 3 : index
    %c0_136 = arith.constant 0 : index
    %c0_137 = arith.constant 0 : index
    %297 = vector.load %arg3[%c3_135, %c0_136, %c0_137] : memref<5x128x256xf32, #tpu.memory_space<vmem>>, vector<1x128x256xf32>
    %298 = vector.shape_cast %297 : vector<1x128x256xf32> to vector<128x256xf32>
    %cst_138 = arith.constant dense<0.000000e+00> : vector<64x256xf32>
    %299 = tpu.matmul %296, %298, %cst_138 {dimension_numbers = #tpu.dot_dimension_numbers<[1], [0], [0], [1], [0, 0, 1, 1], [], []>} : vector<64x128xf32>, vector<128x256xf32>, vector<64x256xf32> -> vector<64x256xf32>
    %cst_139 = arith.constant dense<0.000000e+00> : vector<256xf32>
    %300 = vector.multi_reduction <add>, %299, %cst_139 [0] : vector<64x256xf32> to vector<256xf32>
    %301 = vector.shape_cast %300 : vector<256xf32> to vector<1x256xf32>
    %cst_140 = arith.constant 6.400000e+01 : f32
    %302 = vector.broadcast %cst_140 : f32 to vector<1x256xf32>
    %303 = arith.divf %301, %302 : vector<1x256xf32>
    %304 = vector.broadcast %303 : vector<1x256xf32> to vector<64x256xf32>
    %305 = arith.subf %299, %304 : vector<64x256xf32>
    %306 = arith.mulf %305, %305 : vector<64x256xf32>
    %cst_141 = arith.constant dense<0.000000e+00> : vector<256xf32>
    %307 = vector.multi_reduction <add>, %306, %cst_141 [0] : vector<64x256xf32> to vector<256xf32>
    %308 = vector.shape_cast %307 : vector<256xf32> to vector<1x256xf32>
    %cst_142 = arith.constant 6.400000e+01 : f32
    %309 = vector.broadcast %cst_142 : f32 to vector<1x256xf32>
    %310 = arith.divf %308, %309 : vector<1x256xf32>
    %cst_143 = arith.constant 9.99999974E-6 : f32
    %311 = vector.broadcast %cst_143 : f32 to vector<1x256xf32>
    %312 = arith.addf %310, %311 : vector<1x256xf32>
    %313 = math.rsqrt %312 : vector<1x256xf32>
    %314 = vector.broadcast %313 : vector<1x256xf32> to vector<64x256xf32>
    %315 = arith.mulf %305, %314 : vector<64x256xf32>
    %c3_144 = arith.constant 3 : index
    %c0_145 = arith.constant 0 : index
    %c0_146 = arith.constant 0 : index
    %316 = vector.load %arg4[%c3_144, %c0_145, %c0_146] : memref<5x1x256xf32, #tpu.memory_space<vmem>>, vector<1x1x256xf32>
    %317 = vector.shape_cast %316 : vector<1x1x256xf32> to vector<1x256xf32>
    %318 = vector.broadcast %317 : vector<1x256xf32> to vector<64x256xf32>
    %319 = arith.mulf %315, %318 : vector<64x256xf32>
    %c3_147 = arith.constant 3 : index
    %c0_148 = arith.constant 0 : index
    %c0_149 = arith.constant 0 : index
    %320 = vector.load %arg5[%c3_147, %c0_148, %c0_149] : memref<5x1x256xf32, #tpu.memory_space<vmem>>, vector<1x1x256xf32>
    %321 = vector.shape_cast %320 : vector<1x1x256xf32> to vector<1x256xf32>
    %322 = vector.broadcast %321 : vector<1x256xf32> to vector<64x256xf32>
    %323 = arith.addf %319, %322 : vector<64x256xf32>
    %cst_150 = arith.constant 0.000000e+00 : f32
    %324 = vector.broadcast %cst_150 : f32 to vector<64x256xf32>
    %325 = arith.maximumf %323, %324 : vector<64x256xf32>
    %c3_151 = arith.constant 3 : index
    %c0_152 = arith.constant 0 : index
    %c0_153 = arith.constant 0 : index
    %326 = vector.load %arg6[%c3_151, %c0_152, %c0_153] : memref<5x256x128xf32, #tpu.memory_space<vmem>>, vector<1x256x128xf32>
    %327 = vector.shape_cast %326 : vector<1x256x128xf32> to vector<256x128xf32>
    %cst_154 = arith.constant dense<0.000000e+00> : vector<64x128xf32>
    %328 = tpu.matmul %325, %327, %cst_154 {dimension_numbers = #tpu.dot_dimension_numbers<[1], [0], [0], [1], [0, 0, 1, 1], [], []>} : vector<64x256xf32>, vector<256x128xf32>, vector<64x128xf32> -> vector<64x128xf32>
    %c3_155 = arith.constant 3 : index
    %c0_156 = arith.constant 0 : index
    %c0_157 = arith.constant 0 : index
    %329 = vector.load %arg7[%c3_155, %c0_156, %c0_157] : memref<5x1x128xf32, #tpu.memory_space<vmem>>, vector<1x1x128xf32>
    %330 = vector.shape_cast %329 : vector<1x1x128xf32> to vector<1x128xf32>
    %331 = vector.broadcast %330 : vector<1x128xf32> to vector<64x128xf32>
    %332 = arith.addf %328, %331 : vector<64x128xf32>
    %cst_158 = arith.constant dense<0.000000e+00> : vector<128xf32>
    %333 = vector.multi_reduction <add>, %332, %cst_158 [0] : vector<64x128xf32> to vector<128xf32>
    %334 = vector.shape_cast %333 : vector<128xf32> to vector<1x128xf32>
    %cst_159 = arith.constant 6.400000e+01 : f32
    %335 = vector.broadcast %cst_159 : f32 to vector<1x128xf32>
    %336 = arith.divf %334, %335 : vector<1x128xf32>
    %337 = vector.broadcast %336 : vector<1x128xf32> to vector<64x128xf32>
    %338 = arith.subf %332, %337 : vector<64x128xf32>
    %339 = arith.mulf %338, %338 : vector<64x128xf32>
    %cst_160 = arith.constant dense<0.000000e+00> : vector<64xf32>
    %340 = vector.multi_reduction <add>, %339, %cst_160 [1] : vector<64x128xf32> to vector<64xf32>
    %341 = vector.shape_cast %340 : vector<64xf32> to vector<64x1xf32>
    %cst_161 = arith.constant dense<0.000000e+00> : vector<1xf32>
    %342 = vector.multi_reduction <add>, %341, %cst_161 [0] : vector<64x1xf32> to vector<1xf32>
    %343 = vector.shape_cast %342 : vector<1xf32> to vector<1x1xf32>
    %cst_162 = arith.constant 6.400000e+01 : f32
    %344 = vector.broadcast %cst_162 : f32 to vector<1x1xf32>
    %345 = arith.divf %343, %344 : vector<1x1xf32>
    %cst_163 = arith.constant 9.99999974E-6 : f32
    %346 = vector.broadcast %cst_163 : f32 to vector<1x1xf32>
    %347 = arith.addf %346, %345 : vector<1x1xf32>
    %348 = math.sqrt %347 : vector<1x1xf32>
    %349 = vector.broadcast %348 : vector<1x1xf32> to vector<64x128xf32>
    %350 = arith.divf %338, %349 : vector<64x128xf32>
    %cst_164 = arith.constant 0.000000e+00 : f32
    %351 = vector.broadcast %cst_164 : f32 to vector<64x128xf32>
    %352 = arith.maximumf %350, %351 : vector<64x128xf32>
    %353 = arith.addf %352, %265 : vector<64x128xf32>
    %cst_165 = arith.constant 0.000000e+00 : f32
    %354 = vector.broadcast %cst_165 : f32 to vector<64x128xf32>
    %355 = arith.maximumf %353, %354 : vector<64x128xf32>
    %cst_166 = arith.constant 1.000000e-07 : f32
    %356 = vector.broadcast %cst_166 : f32 to vector<64x128xf32>
    %357 = arith.addf %355, %356 : vector<64x128xf32>
    %358 = arith.truncf %357 : vector<64x128xf32> to vector<64x128xbf16>
    %cst_167 = arith.constant dense<0.000000e+00> : vector<128x128xf32>
    %359 = tpu.matmul %0, %358, %cst_167 {dimension_numbers = #tpu.dot_dimension_numbers<[1], [0], [0], [1], [0, 0, 1, 1], [], []>} : vector<128x64xbf16>, vector<64x128xbf16>, vector<128x128xf32> -> vector<128x128xf32>
    %c4 = arith.constant 4 : index
    %c0_168 = arith.constant 0 : index
    %360 = memref.load %arg8[%c4, %c0_168] : memref<5x1xf32, #tpu.memory_space<smem>>
    %cst_169 = arith.constant dense<0xFF800000> : vector<128xf32>
    %361 = vector.multi_reduction <maximumf>, %359, %cst_169 [0] : vector<128x128xf32> to vector<128xf32>
    %362 = vector.shape_cast %361 : vector<128xf32> to vector<1x128xf32>
    %363 = vector.broadcast %362 : vector<1x128xf32> to vector<128x128xf32>
    %364 = arith.subf %359, %363 : vector<128x128xf32>
    %365 = vector.broadcast %360 : f32 to vector<128x128xf32>
    %366 = arith.mulf %364, %365 : vector<128x128xf32>
    %367 = math.exp %366 : vector<128x128xf32>
    %368 = arith.mulf %367, %359 : vector<128x128xf32>
    %369 = arith.truncf %368 : vector<128x128xf32> to vector<128x128xbf16>
    %370 = arith.truncf %367 : vector<128x128xf32> to vector<128x128xbf16>
    %371 = tpu.concatenate %369, %370 in 1 : vector<128x128xbf16>, vector<128x128xbf16> -> vector<128x256xbf16>
    %cst_170 = arith.constant dense<0.000000e+00> : vector<64x256xf32>
    %372 = tpu.matmul %1, %371, %cst_170 {dimension_numbers = #tpu.dot_dimension_numbers<[1], [0], [0], [1], [0, 0, 1, 1], [], []>} : vector<64x128xbf16>, vector<128x256xbf16>, vector<64x256xf32> -> vector<64x256xf32>
    %373 = vector.extract_strided_slice %372 {offsets = [0, 0], sizes = [64, 128], strides = [1, 1]} : vector<64x256xf32> to vector<64x128xf32>
    %374 = vector.extract_strided_slice %372 {offsets = [0, 128], sizes = [64, 128], strides = [1, 1]} : vector<64x256xf32> to vector<64x128xf32>
    %cst_171 = arith.constant 0.000000e+00 : f32
    %375 = vector.broadcast %cst_171 : f32 to vector<64x128xf32>
    %376 = arith.cmpf ogt, %374, %375 : vector<64x128xf32>
    %cst_172 = arith.constant 1.000000e+00 : f32
    %377 = vector.broadcast %cst_172 : f32 to vector<64x128xf32>
    %378 = arith.select %376, %374, %377 : vector<64x128xi1>, vector<64x128xf32>
    %cst_173 = arith.constant 0.000000e+00 : f32
    %379 = vector.broadcast %cst_173 : f32 to vector<64x128xf32>
    %380 = arith.cmpf ogt, %374, %379 : vector<64x128xf32>
    %381 = arith.divf %373, %378 : vector<64x128xf32>
    %cst_174 = arith.constant 0.000000e+00 : f32
    %382 = vector.broadcast %cst_174 : f32 to vector<64x128xf32>
    %383 = arith.select %380, %381, %382 : vector<64x128xi1>, vector<64x128xf32>
    %384 = arith.addf %383, %353 : vector<64x128xf32>
    %c4_175 = arith.constant 4 : index
    %c0_176 = arith.constant 0 : index
    %c0_177 = arith.constant 0 : index
    %385 = vector.load %arg3[%c4_175, %c0_176, %c0_177] : memref<5x128x256xf32, #tpu.memory_space<vmem>>, vector<1x128x256xf32>
    %386 = vector.shape_cast %385 : vector<1x128x256xf32> to vector<128x256xf32>
    %cst_178 = arith.constant dense<0.000000e+00> : vector<64x256xf32>
    %387 = tpu.matmul %384, %386, %cst_178 {dimension_numbers = #tpu.dot_dimension_numbers<[1], [0], [0], [1], [0, 0, 1, 1], [], []>} : vector<64x128xf32>, vector<128x256xf32>, vector<64x256xf32> -> vector<64x256xf32>
    %cst_179 = arith.constant dense<0.000000e+00> : vector<256xf32>
    %388 = vector.multi_reduction <add>, %387, %cst_179 [0] : vector<64x256xf32> to vector<256xf32>
    %389 = vector.shape_cast %388 : vector<256xf32> to vector<1x256xf32>
    %cst_180 = arith.constant 6.400000e+01 : f32
    %390 = vector.broadcast %cst_180 : f32 to vector<1x256xf32>
    %391 = arith.divf %389, %390 : vector<1x256xf32>
    %392 = vector.broadcast %391 : vector<1x256xf32> to vector<64x256xf32>
    %393 = arith.subf %387, %392 : vector<64x256xf32>
    %394 = arith.mulf %393, %393 : vector<64x256xf32>
    %cst_181 = arith.constant dense<0.000000e+00> : vector<256xf32>
    %395 = vector.multi_reduction <add>, %394, %cst_181 [0] : vector<64x256xf32> to vector<256xf32>
    %396 = vector.shape_cast %395 : vector<256xf32> to vector<1x256xf32>
    %cst_182 = arith.constant 6.400000e+01 : f32
    %397 = vector.broadcast %cst_182 : f32 to vector<1x256xf32>
    %398 = arith.divf %396, %397 : vector<1x256xf32>
    %cst_183 = arith.constant 9.99999974E-6 : f32
    %399 = vector.broadcast %cst_183 : f32 to vector<1x256xf32>
    %400 = arith.addf %398, %399 : vector<1x256xf32>
    %401 = math.rsqrt %400 : vector<1x256xf32>
    %402 = vector.broadcast %401 : vector<1x256xf32> to vector<64x256xf32>
    %403 = arith.mulf %393, %402 : vector<64x256xf32>
    %c4_184 = arith.constant 4 : index
    %c0_185 = arith.constant 0 : index
    %c0_186 = arith.constant 0 : index
    %404 = vector.load %arg4[%c4_184, %c0_185, %c0_186] : memref<5x1x256xf32, #tpu.memory_space<vmem>>, vector<1x1x256xf32>
    %405 = vector.shape_cast %404 : vector<1x1x256xf32> to vector<1x256xf32>
    %406 = vector.broadcast %405 : vector<1x256xf32> to vector<64x256xf32>
    %407 = arith.mulf %403, %406 : vector<64x256xf32>
    %c4_187 = arith.constant 4 : index
    %c0_188 = arith.constant 0 : index
    %c0_189 = arith.constant 0 : index
    %408 = vector.load %arg5[%c4_187, %c0_188, %c0_189] : memref<5x1x256xf32, #tpu.memory_space<vmem>>, vector<1x1x256xf32>
    %409 = vector.shape_cast %408 : vector<1x1x256xf32> to vector<1x256xf32>
    %410 = vector.broadcast %409 : vector<1x256xf32> to vector<64x256xf32>
    %411 = arith.addf %407, %410 : vector<64x256xf32>
    %cst_190 = arith.constant 0.000000e+00 : f32
    %412 = vector.broadcast %cst_190 : f32 to vector<64x256xf32>
    %413 = arith.maximumf %411, %412 : vector<64x256xf32>
    %c4_191 = arith.constant 4 : index
    %c0_192 = arith.constant 0 : index
    %c0_193 = arith.constant 0 : index
    %414 = vector.load %arg6[%c4_191, %c0_192, %c0_193] : memref<5x256x128xf32, #tpu.memory_space<vmem>>, vector<1x256x128xf32>
    %415 = vector.shape_cast %414 : vector<1x256x128xf32> to vector<256x128xf32>
    %cst_194 = arith.constant dense<0.000000e+00> : vector<64x128xf32>
    %416 = tpu.matmul %413, %415, %cst_194 {dimension_numbers = #tpu.dot_dimension_numbers<[1], [0], [0], [1], [0, 0, 1, 1], [], []>} : vector<64x256xf32>, vector<256x128xf32>, vector<64x128xf32> -> vector<64x128xf32>
    %c4_195 = arith.constant 4 : index
    %c0_196 = arith.constant 0 : index
    %c0_197 = arith.constant 0 : index
    %417 = vector.load %arg7[%c4_195, %c0_196, %c0_197] : memref<5x1x128xf32, #tpu.memory_space<vmem>>, vector<1x1x128xf32>
    %418 = vector.shape_cast %417 : vector<1x1x128xf32> to vector<1x128xf32>
    %419 = vector.broadcast %418 : vector<1x128xf32> to vector<64x128xf32>
    %420 = arith.addf %416, %419 : vector<64x128xf32>
    %cst_198 = arith.constant dense<0.000000e+00> : vector<128xf32>
    %421 = vector.multi_reduction <add>, %420, %cst_198 [0] : vector<64x128xf32> to vector<128xf32>
    %422 = vector.shape_cast %421 : vector<128xf32> to vector<1x128xf32>
    %cst_199 = arith.constant 6.400000e+01 : f32
    %423 = vector.broadcast %cst_199 : f32 to vector<1x128xf32>
    %424 = arith.divf %422, %423 : vector<1x128xf32>
    %425 = vector.broadcast %424 : vector<1x128xf32> to vector<64x128xf32>
    %426 = arith.subf %420, %425 : vector<64x128xf32>
    %427 = arith.mulf %426, %426 : vector<64x128xf32>
    %cst_200 = arith.constant dense<0.000000e+00> : vector<64xf32>
    %428 = vector.multi_reduction <add>, %427, %cst_200 [1] : vector<64x128xf32> to vector<64xf32>
    %429 = vector.shape_cast %428 : vector<64xf32> to vector<64x1xf32>
    %cst_201 = arith.constant dense<0.000000e+00> : vector<1xf32>
    %430 = vector.multi_reduction <add>, %429, %cst_201 [0] : vector<64x1xf32> to vector<1xf32>
    %431 = vector.shape_cast %430 : vector<1xf32> to vector<1x1xf32>
    %cst_202 = arith.constant 6.400000e+01 : f32
    %432 = vector.broadcast %cst_202 : f32 to vector<1x1xf32>
    %433 = arith.divf %431, %432 : vector<1x1xf32>
    %cst_203 = arith.constant 9.99999974E-6 : f32
    %434 = vector.broadcast %cst_203 : f32 to vector<1x1xf32>
    %435 = arith.addf %434, %433 : vector<1x1xf32>
    %436 = math.sqrt %435 : vector<1x1xf32>
    %437 = vector.broadcast %436 : vector<1x1xf32> to vector<64x128xf32>
    %438 = arith.divf %426, %437 : vector<64x128xf32>
    %cst_204 = arith.constant 0.000000e+00 : f32
    %439 = vector.broadcast %cst_204 : f32 to vector<64x128xf32>
    %440 = arith.maximumf %438, %439 : vector<64x128xf32>
    %441 = arith.addf %440, %353 : vector<64x128xf32>
    %c0_205 = arith.constant 0 : index
    %c0_206 = arith.constant 0 : index
    %442 = vector.load %arg9[%c0_205, %c0_206] : memref<64x128xf32, #tpu.memory_space<vmem>>, vector<64x128xf32>
    tpu.vector_store %arg9[%c0_205, %c0_206], %441 {strides = array<i32>} : memref<64x128xf32, #tpu.memory_space<vmem>>, vector<64x128xf32>,
    return
  }
}

</mosaic_0001>

<llo_original>
// kernel: tpu_custom_call.1
$region0: #{tpu_custom_call.1}
  #allocation0 [shape = 'u32[]', space=smem, size = 0x4, offset = 0x4, fixed_abs, tag = 'smem constant byte address 0x4 - core index']
  #allocation1 [shape = 'u32[144,128]{1,0:T(1,128)}', space=vmem, size = 0x12000, scoped, tag = 'internal scratch']
  %s0 = inlined_call_operand.vmem [shape: f32[64,128], index: 0, kind: input, shape index: {}]
  %s1 = inlined_call_operand.vmem [shape: bf16[128,64], index: 1, kind: input, shape index: {}]
  %s2 = inlined_call_operand.vmem [shape: bf16[64,128], index: 2, kind: input, shape index: {}]
  %s3 = inlined_call_operand.hbm [shape: f32[5,128,256], index: 3, kind: input, shape index: {}]
  %s4 = inlined_call_operand.vmem [shape: f32[5,1,256], index: 4, kind: input, shape index: {}]
  %s5 = inlined_call_operand.vmem [shape: f32[5,1,256], index: 5, kind: input, shape index: {}]
  %s6 = inlined_call_operand.hbm [shape: f32[5,256,128], index: 6, kind: input, shape index: {}]
  %s7 = inlined_call_operand.vmem [shape: f32[5,1,128], index: 7, kind: input, shape index: {}]
  %s8 = inlined_call_operand.vmem [shape: f32[5,1], index: 8, kind: input, shape index: {}]
  %s9 = inlined_call_operand.hbm [shape: f32[64,128], index: 9, kind: output, shape index: {}]
  %s10 = sld [smem:[#allocation0]]
  $region58: #{tpu_custom_call.1} parent=0
    _
  %s12 = ssub.s32 1, %s10
  %s13 = scalar_select 0, %s12, %s10
  $region1: #{tpu_custom_call.1} parent=0
    #allocation2 [shape = 'u8[655360]{0}', space=vmem, size = 0xa0000, scoped, tag = 'input window, operand 3, single buffered']
    #allocation3 [shape = 's32[1]{0}', space=sflag, size = 0x4, scoped, tag = 'scoped memory for tpu_custom_call.1']
    #allocation4 [shape = 's32[1]{0}', space=sflag, size = 0x4, scoped, tag = 'scoped memory for tpu_custom_call.1']
    #allocation5 [shape = 's32[1]{0}', space=sflag, size = 0x4, scoped, tag = 'scoped memory for tpu_custom_call.1']
    #allocation6 [shape = 'u8[655360]{0}', space=vmem, size = 0xa0000, scoped, tag = 'input window, operand 6, single buffered']
    #allocation7 [shape = 's32[1]{0}', space=sflag, size = 0x4, scoped, tag = 'scoped memory for tpu_custom_call.1']
    #allocation8 [shape = 'u8[4096]{0}', space=smem, size = 0x1000, scoped, tag = 'input window, operand 8, single buffered']
    #allocation9 [shape = 'u8[32768]{0}', space=vmem, size = 0x8000, scoped, tag = 'output window, operand 0, single buffered']
    %14 = vsyncpa [#allocation3], 0
    %15 = vsyncpa [#allocation7], 0
    %16 = vsyncpa [#allocation5], 0
    %17 = vsyncpa [#allocation4], 0
    // Predicated region
    $region2: #{tpu_custom_call.1} parent=1 // pred_check
      _
    $region3: #{tpu_custom_call.1} parent=1 // pred_check_branch
      %19 = sbr.rel (0) target = $region5
    $region4: #{tpu_custom_call.1} parent=1 // pred_region
      _
    $region5: #{tpu_custom_call.1} parent=1 // pred_fallthru
      _
    // Predicated region
    $region6: #{tpu_custom_call.1} parent=1 // pred_check
      _
    $region7: #{tpu_custom_call.1} parent=1 // pred_check_branch
      %21 = sbr.rel (0) target = $region9
    $region8: #{tpu_custom_call.1} parent=1 // pred_region
      _
    $region9: #{tpu_custom_call.1} parent=1 // pred_fallthru
      _
    // Predicated region
    $region10: #{tpu_custom_call.1} parent=1 // pred_check
      _
    $region11: #{tpu_custom_call.1} parent=1 // pred_check_branch
      %23 = sbr.rel (0) target = $region13
    $region12: #{tpu_custom_call.1} parent=1 // pred_region
      _
    $region13: #{tpu_custom_call.1} parent=1 // pred_fallthru
      _
    // Predicated region
    $region14: #{tpu_custom_call.1} parent=1 // pred_check
      _
    $region15: #{tpu_custom_call.1} parent=1 // pred_check_branch
      %25 = sbr.rel (0) target = $region17
    $region16: #{tpu_custom_call.1} parent=1 // pred_region
      %s27 = ssub.s32 20480, 20480
      %28 = vsyncadd [#allocation3], %s27
      %s29 = sshll.u32 [#allocation2], 4
      %s30 = int_to_ptr.vmem [resolvable:$true] %s29
      %35 = dma.hbm_to_vmem [thread:$0]  %s3, 20480, %s30, [#allocation3], 256, 256, 16
    $region17: #{tpu_custom_call.1} parent=1 // pred_fallthru
      _
    // Predicated region
    $region18: #{tpu_custom_call.1} parent=1 // pred_check
      _
    $region19: #{tpu_custom_call.1} parent=1 // pred_check_branch
      %37 = sbr.rel (0) target = $region21
    $region20: #{tpu_custom_call.1} parent=1 // pred_region
      _
    $region21: #{tpu_custom_call.1} parent=1 // pred_fallthru
      _
    // Predicated region
    $region22: #{tpu_custom_call.1} parent=1 // pred_check
      _
    $region23: #{tpu_custom_call.1} parent=1 // pred_check_branch
      %39 = sbr.rel (0) target = $region25
    $region24: #{tpu_custom_call.1} parent=1 // pred_region
      _
    $region25: #{tpu_custom_call.1} parent=1 // pred_fallthru
      _
    // Predicated region
    $region26: #{tpu_custom_call.1} parent=1 // pred_check
      _
    $region27: #{tpu_custom_call.1} parent=1 // pred_check_branch
      %41 = sbr.rel (0) target = $region29
    $region28: #{tpu_custom_call.1} parent=1 // pred_region
      %s43 = ssub.s32 20480, 20480
      %44 = vsyncadd [#allocation7], %s43
      %s45 = sshll.u32 [#allocation6], 4
      %s46 = int_to_ptr.vmem [resolvable:$true] %s45
      %51 = dma.hbm_to_vmem [thread:$0]  %s6, 20480, %s46, [#allocation7], 128, 128, 8
    $region29: #{tpu_custom_call.1} parent=1 // pred_fallthru
      _
    // Predicated region
    $region30: #{tpu_custom_call.1} parent=1 // pred_check
      _
    $region31: #{tpu_custom_call.1} parent=1 // pred_check_branch
      %53 = sbr.rel (0) target = $region33
    $region32: #{tpu_custom_call.1} parent=1 // pred_region
      _
    $region33: #{tpu_custom_call.1} parent=1 // pred_fallthru
      _
    // Predicated region
    $region34: #{tpu_custom_call.1} parent=1 // pred_check
      _
    $region35: #{tpu_custom_call.1} parent=1 // pred_check_branch
      %55 = sbr.rel (0) target = $region37
    $region36: #{tpu_custom_call.1} parent=1 // pred_region
      %s57 = ssub.s32 128, 128
      %58 = vsyncadd [#allocation5], %s57
      %s60 = sshll.u32 %s8, 4
      %s61 = int_to_ptr.vmem [resolvable:$true] %s60
      %63 = dma.vmem_to_smem %s61, 128, [#allocation8], [#allocation5]
    $region37: #{tpu_custom_call.1} parent=1 // pred_fallthru
      _
    // Predicated region
    $region38: #{tpu_custom_call.1} parent=1 // pred_check
      _
    $region39: #{tpu_custom_call.1} parent=1 // pred_check_branch
      %65 = sbr.rel (0) target = $region41
    $region40: #{tpu_custom_call.1} parent=1 // pred_region
      %66 = dma.done [#allocation3], 20480
    $region41: #{tpu_custom_call.1} parent=1 // pred_fallthru
      _
    // Predicated region
    $region42: #{tpu_custom_call.1} parent=1 // pred_check
      _
    $region43: #{tpu_custom_call.1} parent=1 // pred_check_branch
      %68 = sbr.rel (0) target = $region45
    $region44: #{tpu_custom_call.1} parent=1 // pred_region
      %69 = dma.done [#allocation7], 20480
    $region45: #{tpu_custom_call.1} parent=1 // pred_fallthru
      _
    // Predicated region
    $region46: #{tpu_custom_call.1} parent=1 // pred_check
      _
    $region47: #{tpu_custom_call.1} parent=1 // pred_check_branch
      %71 = sbr.rel (0) target = $region49
    $region48: #{tpu_custom_call.1} parent=1 // pred_region
      %72 = dma.done [#allocation5], 128
    $region49: #{tpu_custom_call.1} parent=1 // pred_fallthru
      _
    %73 = sfence
    %v75 = vld [vmem:[%s1] sm:$0xf]
    %v76 = vld [vmem:[%s1 + $0x4] sm:$0xf]
    %v77 = vld [vmem:[%s1 + $0x8] sm:$0xf]
    %v78 = vld [vmem:[%s1 + $0xc] sm:$0xf]
    %v79 = vld [vmem:[%s1 + $0x10] sm:$0xf]
    %v80 = vld [vmem:[%s1 + $0x14] sm:$0xf]
    %v81 = vld [vmem:[%s1 + $0x18] sm:$0xf]
    %v82 = vld [vmem:[%s1 + $0x1c] sm:$0xf]
    %v83 = vld [vmem:[%s1 + $0x20] sm:$0xf]
    %v84 = vld [vmem:[%s1 + $0x24] sm:$0xf]
    %v85 = vld [vmem:[%s1 + $0x28] sm:$0xf]
    %v86 = vld [vmem:[%s1 + $0x2c] sm:$0xf]
    %v87 = vld [vmem:[%s1 + $0x30] sm:$0xf]
    %v88 = vld [vmem:[%s1 + $0x34] sm:$0xf]
    %v89 = vld [vmem:[%s1 + $0x38] sm:$0xf]
    %v90 = vld [vmem:[%s1 + $0x3c] sm:$0xf]
    %v91 = vld [vmem:[%s2] sm:$0xf]
    %v92 = vld [vmem:[%s2 + $0x4] sm:$0xf]
    %v93 = vld [vmem:[%s2 + $0x8] sm:$0xf]
    %v94 = vld [vmem:[%s2 + $0xc] sm:$0xf]
    %v95 = vld [vmem:[%s2 + $0x10] sm:$0xf]
    %v96 = vld [vmem:[%s2 + $0x14] sm:$0xf]
    %v97 = vld [vmem:[%s2 + $0x18] sm:$0xf]
    %v98 = vld [vmem:[%s2 + $0x1c] sm:$0xf]
    %v99 = vld [vmem:[%s0] sm:$0xff]
    %v100 = vld [vmem:[%s0 + $0x8] sm:$0xff]
    %v101 = vld [vmem:[%s0 + $0x10] sm:$0xff]
    %v102 = vld [vmem:[%s0 + $0x18] sm:$0xff]
    %v103 = vld [vmem:[%s0 + $0x20] sm:$0xff]
    %v104 = vld [vmem:[%s0 + $0x28] sm:$0xff]
    %v105 = vld [vmem:[%s0 + $0x30] sm:$0xff]
    %v106 = vld [vmem:[%s0 + $0x38] sm:$0xff]
    %v107 = vmax.f32 %v99, 0.0
    %v108 = vmax.f32 %v100, 0.0
    %v109 = vmax.f32 %v101, 0.0
    %v110 = vmax.f32 %v102, 0.0
    %v111 = vmax.f32 %v103, 0.0
    %v112 = vmax.f32 %v104, 0.0
    %v113 = vmax.f32 %v105, 0.0
    %v114 = vmax.f32 %v106, 0.0
    %v115 = vadd.f32 %v107, 1e-07
    %v116 = vadd.f32 %v108, 1e-07
    %v117 = vadd.f32 %v109, 1e-07
    %v118 = vadd.f32 %v110, 1e-07
    %v119 = vadd.f32 %v111, 1e-07
    %v120 = vadd.f32 %v112, 1e-07
    %v121 = vadd.f32 %v113, 1e-07
    %v122 = vadd.f32 %v114, 1e-07
    %v123 = vpack.c.bf16 %v116, %v115
    %v124 = vpack.c.bf16 %v118, %v117
    %v125 = vpack.c.bf16 %v120, %v119
    %v126 = vpack.c.bf16 %v122, %v121
    %v143 = vunpack.c.l.b16 %v75
    %v144 = vunpack.c.l.b16 %v76
    %v145 = vunpack.c.l.b16 %v77
    %v146 = vunpack.c.l.b16 %v78
    %v147 = vunpack.c.l.b16 %v79
    %v148 = vunpack.c.l.b16 %v80
    %v149 = vunpack.c.l.b16 %v81
    %v150 = vunpack.c.l.b16 %v82
    %v151 = vunpack.c.l.b16 %v83
    %v152 = vunpack.c.l.b16 %v84
    %v153 = vunpack.c.l.b16 %v85
    %v154 = vunpack.c.l.b16 %v86
    %v155 = vunpack.c.l.b16 %v87
    %v156 = vunpack.c.l.b16 %v88
    %v157 = vunpack.c.l.b16 %v89
    %v158 = vunpack.c.l.b16 %v90
    %v159 = vpack.c.b16 %v144, %v143
    %v160 = vpack.c.b16 %v146, %v145
    %v161 = vpack.c.b16 %v148, %v147
    %v162 = vpack.c.b16 %v150, %v149
    %v163 = vpack.c.b16 %v152, %v151
    %v164 = vpack.c.b16 %v154, %v153
    %v165 = vpack.c.b16 %v156, %v155
    %v166 = vpack.c.b16 %v158, %v157
    %vm167 = vcmask 523264
    %v169 = vsel %vm167, %v159, 0
    %v172 = vsel %vm167, %v160, 0
    %v175 = vsel %vm167, %v161, 0
    %v178 = vsel %vm167, %v162, 0
    %v181 = vsel %vm167, %v163, 0
    %v184 = vsel %vm167, %v164, 0
    %v187 = vsel %vm167, %v165, 0
    %v190 = vsel %vm167, %v166, 0
    %192 = vmatprep.subr.bf16.mxu0 0
    %193 = vmatpush1.bf16.msra.mxu0 %v123
    %194 = vmatprep.subr.bf16.mxu0 0
    %195 = vmatpush1.bf16.msra.mxu0 %v124
    %196 = vmatprep.subr.bf16.mxu0 0
    %197 = vmatpush1.bf16.msra.mxu0 %v125
    %198 = vmatprep.subr.bf16.mxu0 0
    %199 = vmatpush1.bf16.msra.mxu0 %v126
    %200 = vmatprep.subr.bf16.mxu0 0
    %201 = vmatpush1.bf16.msra.mxu0 0
    %202 = vmatprep.subr.bf16.mxu0 0
    %203 = vmatpush1.bf16.msra.mxu0 0
    %204 = vmatprep.subr.bf16.mxu0 0
    %205 = vmatpush1.bf16.msra.mxu0 0
    %206 = vmatprep.subr.bf16.mxu0 0
    %207 = vmatpush1.bf16.msra.mxu0 0
    %208 = vmatprep.subr.bf16.mxu0 0
    %209 = vmatpush1.bf16.msra.mxu0 0
    %210 = vmatprep.subr.bf16.mxu0 0
    %211 = vmatpush1.bf16.msra.mxu0 0
    %212 = vmatprep.subr.bf16.mxu0 0
    %213 = vmatpush1.bf16.msra.mxu0 0
    %214 = vmatprep.subr.bf16.mxu0 0
    %215 = vmatpush1.bf16.msra.mxu0 0
    %216 = vmatprep.subr.bf16.mxu0 0
    %217 = vmatpush1.bf16.msra.mxu0 0
    %218 = vmatprep.subr.bf16.mxu0 0
    %219 = vmatpush1.bf16.msra.mxu0 0
    %220 = vmatprep.subr.bf16.mxu0 0
    %221 = vmatpush1.bf16.msra.mxu0 0
    %222 = vmatprep.subr.bf16.mxu0 0
    %223 = vmatpush1.bf16.msra.mxu0 0
    %224 = vmatprep.mubr.bf16.mxu0 0
    %225 = vmatmul.mubr.bf16.gmra.mrb[0].mxu0 %v169
    %v226 = vpop.f32.mrb[0].mxu0
    %v227 = vadd.f32 0.0, %v226
    %v228 = vpop.f32.mrb[0].mxu0
    %v229 = vpop.f32.mrb[0].mxu0
    %v230 = vadd.f32 0.0, %v229
    %v231 = vpop.f32.mrb[0].mxu0
    %232 = vmatprep.mubr.bf16.mxu0 0
    %233 = vmatmul.mubr.bf16.gmra.mrb[0].mxu0 %v172
    %v234 = vpop.f32.mrb[0].mxu0
    %v235 = vadd.f32 0.0, %v234
    %v236 = vpop.f32.mrb[0].mxu0
    %v237 = vpop.f32.mrb[0].mxu0
    %v238 = vadd.f32 0.0, %v237
    %v239 = vpop.f32.mrb[0].mxu0
    %240 = vmatprep.mubr.bf16.mxu0 0
    %241 = vmatmul.mubr.bf16.gmra.mrb[0].mxu0 %v175
    %v242 = vpop.f32.mrb[0].mxu0
    %v243 = vadd.f32 0.0, %v242
    %v244 = vpop.f32.mrb[0].mxu0
    %v245 = vpop.f32.mrb[0].mxu0
    %v246 = vadd.f32 0.0, %v245
    %v247 = vpop.f32.mrb[0].mxu0
    %248 = vmatprep.mubr.bf16.mxu0 0
    %249 = vmatmul.mubr.bf16.gmra.mrb[0].mxu0 %v178
    %v250 = vpop.f32.mrb[0].mxu0
    %v251 = vadd.f32 0.0, %v250
    %v252 = vpop.f32.mrb[0].mxu0
    %v253 = vpop.f32.mrb[0].mxu0
    %v254 = vadd.f32 0.0, %v253
    %v255 = vpop.f32.mrb[0].mxu0
    %256 = vmatprep.mubr.bf16.mxu0 0
    %257 = vmatmul.mubr.bf16.gmra.mrb[0].mxu0 %v181
    %v258 = vpop.f32.mrb[0].mxu0
    %v259 = vadd.f32 0.0, %v258
    %v260 = vpop.f32.mrb[0].mxu0
    %v261 = vpop.f32.mrb[0].mxu0
    %v262 = vadd.f32 0.0, %v261
    %v263 = vpop.f32.mrb[0].mxu0
    %264 = vmatprep.mubr.bf16.mxu0 0
    %265 = vmatmul.mubr.bf16.gmra.mrb[0].mxu0 %v184
    %v266 = vpop.f32.mrb[0].mxu0
    %v267 = vadd.f32 0.0, %v266
    %v268 = vpop.f32.mrb[0].mxu0
    %v269 = vpop.f32.mrb[0].mxu0
    %v270 = vadd.f32 0.0, %v269
    %v271 = vpop.f32.mrb[0].mxu0
    %272 = vmatprep.mubr.bf16.mxu0 0
    %273 = vmatmul.mubr.bf16.gmra.mrb[0].mxu0 %v187
    %v274 = vpop.f32.mrb[0].mxu0
    %v275 = vadd.f32 0.0, %v274
    %v276 = vpop.f32.mrb[0].mxu0
    %v277 = vpop.f32.mrb[0].mxu0
    %v278 = vadd.f32 0.0, %v277
    %v279 = vpop.f32.mrb[0].mxu0
    %280 = vmatprep.mubr.bf16.mxu0 0
    %281 = vmatmul.mubr.bf16.gmra.mrb[0].mxu0 %v190
    %v282 = vpop.f32.mrb[0].mxu0
    %v283 = vadd.f32 0.0, %v282
    %v284 = vpop.f32.mrb[0].mxu0
    %v285 = vpop.f32.mrb[0].mxu0
    %v286 = vadd.f32 0.0, %v285
    %v287 = vpop.f32.mrb[0].mxu0
    %288 = vdwg.mxu0
    %s289 = sld [smem:[#allocation8]]
    %v290 = vmax.f32 %v227, %v243
    %v291 = vmax.f32 %v230, %v246
    %v292 = vmax.f32 %v235, %v251
    %v293 = vmax.f32 %v238, %v254
    %v294 = vmax.f32 %v290, %v259
    %v295 = vmax.f32 %v291, %v262
    %v296 = vmax.f32 %v292, %v267
    %v297 = vmax.f32 %v293, %v270
    %v298 = vmax.f32 %v294, %v275
    %v299 = vmax.f32 %v295, %v278
    %v300 = vmax.f32 %v296, %v283
    %v301 = vmax.f32 %v297, %v286
    %v302 = vmax.f32 %v298, %v299
    %v303 = vmax.f32 %v300, %v301
    %v304 = vmax.f32 %v302, %v303
    %v305 = vrot.slane %v304, 4
    %v306 = vmax.f32 %v304, %v305
    %v307 = vrot.slane %v306, 2
    %v308 = vmax.f32 %v306, %v307
    %v309 = vrot.slane %v308, 1
    %v310 = vmax.f32 %v308, %v309
    %v311 = vsub.f32 %v227, %v310
    %v312 = vsub.f32 %v230, %v310
    %v313 = vsub.f32 %v235, %v310
    %v314 = vsub.f32 %v238, %v310
    %v315 = vsub.f32 %v243, %v310
    %v316 = vsub.f32 %v246, %v310
    %v317 = vsub.f32 %v251, %v310
    %v318 = vsub.f32 %v254, %v310
    %v319 = vsub.f32 %v259, %v310
    %v320 = vsub.f32 %v262, %v310
    %v321 = vsub.f32 %v267, %v310
    %v322 = vsub.f32 %v270, %v310
    %v323 = vsub.f32 %v275, %v310
    %v324 = vsub.f32 %v278, %v310
    %v325 = vsub.f32 %v283, %v310
    %v326 = vsub.f32 %v286, %v310
    %v327 = vstv %s289
    %v328 = vmul.f32 %v311, %v327
    %v329 = vmul.f32 %v312, %v327
    %v330 = vmul.f32 %v313, %v327
    %v331 = vmul.f32 %v314, %v327
    %v332 = vmul.f32 %v315, %v327
    %v333 = vmul.f32 %v316, %v327
    %v334 = vmul.f32 %v317, %v327
    %v335 = vmul.f32 %v318, %v327
    %v336 = vmul.f32 %v319, %v327
    %v337 = vmul.f32 %v320, %v327
    %v338 = vmul.f32 %v321, %v327
    %v339 = vmul.f32 %v322, %v327
    %v340 = vmul.f32 %v323, %v327
    %v341 = vmul.f32 %v324, %v327
    %v342 = vmul.f32 %v325, %v327
    %v343 = vmul.f32 %v326, %v327
    %v344 = vmul.f32 %v328, 1.442695
    %v345 = vpow.pop %v344
    %v346 = vmul.f32 %v329, 1.442695
    %v347 = vpow.pop %v346
    %v348 = vmul.f32 %v330, 1.442695
    %v349 = vpow.pop %v348
    %v350 = vmul.f32 %v331, 1.442695
    %v351 = vpow.pop %v350
    %v352 = vmul.f32 %v332, 1.442695
    %v353 = vpow.pop %v352
    %v354 = vmul.f32 %v333, 1.442695
    %v355 = vpow.pop %v354
    %v356 = vmul.f32 %v334, 1.442695
    %v357 = vpow.pop %v356
    %v358 = vmul.f32 %v335, 1.442695
    %v359 = vpow.pop %v358
    %v360 = vmul.f32 %v336, 1.442695
    %v361 = vpow.pop %v360
    %v362 = vmul.f32 %v337, 1.442695
    %v363 = vpow.pop %v362
    %v364 = vmul.f32 %v338, 1.442695
    %v365 = vpow.pop %v364
    %v366 = vmul.f32 %v339, 1.442695
    %v367 = vpow.pop %v366
    %v368 = vmul.f32 %v340, 1.442695
    %v369 = vpow.pop %v368
    %v370 = vmul.f32 %v341, 1.442695
    %v371 = vpow.pop %v370
    %v372 = vmul.f32 %v342, 1.442695
    %v373 = vpow.pop %v372
    %v374 = vmul.f32 %v343, 1.442695
    %v375 = vpow.pop %v374
    %v376 = vmul.f32 %v345, %v227
    %v377 = vmul.f32 %v347, %v230
    %v378 = vmul.f32 %v349, %v235
    %v379 = vmul.f32 %v351, %v238
    %v380 = vmul.f32 %v353, %v243
    %v381 = vmul.f32 %v355, %v246
    %v382 = vmul.f32 %v357, %v251
    %v383 = vmul.f32 %v359, %v254
    %v384 = vmul.f32 %v361, %v259
    %v385 = vmul.f32 %v363, %v262
    %v386 = vmul.f32 %v365, %v267
    %v387 = vmul.f32 %v367, %v270
    %v388 = vmul.f32 %v369, %v275
    %v389 = vmul.f32 %v371, %v278
    %v390 = vmul.f32 %v373, %v283
    %v391 = vmul.f32 %v375, %v286
    %v392 = vpack.c.bf16 %v377, %v376
    %v393 = vpack.c.bf16 %v379, %v378
    %v394 = vpack.c.bf16 %v381, %v380
    %v395 = vpack.c.bf16 %v383, %v382
    %v396 = vpack.c.bf16 %v385, %v384
    %v397 = vpack.c.bf16 %v387, %v386
    %v398 = vpack.c.bf16 %v389, %v388
    %v399 = vpack.c.bf16 %v391, %v390
    %v400 = vpack.c.bf16 %v347, %v345
    %v401 = vpack.c.bf16 %v351, %v349
    %v402 = vpack.c.bf16 %v355, %v353
    %v403 = vpack.c.bf16 %v359, %v357
    %v404 = vpack.c.bf16 %v363, %v361
    %v405 = vpack.c.bf16 %v367, %v365
    %v406 = vpack.c.bf16 %v371, %v369
    %v407 = vpack.c.bf16 %v375, %v373
    %v416 = vunpack.c.l.b16 %v91
    %v417 = vunpack.c.l.b16 %v92
    %v418 = vunpack.c.l.b16 %v93
    %v419 = vunpack.c.l.b16 %v94
    %v420 = vunpack.c.l.b16 %v95
    %v421 = vunpack.c.l.b16 %v96
    %v422 = vunpack.c.l.b16 %v97
    %v423 = vunpack.c.l.b16 %v98
    %v424 = vpack.c.b16 %v417, %v416
    %v425 = vpack.c.b16 %v419, %v418
    %v426 = vpack.c.b16 %v421, %v420
    %v427 = vpack.c.b16 %v423, %v422
    %432 = vmatprep.subr.bf16.mxu0 %v400
    %433 = vmatpush1.bf16.msra.mxu0 %v392
    %434 = vmatprep.subr.bf16.mxu0 %v401
    %435 = vmatpush1.bf16.msra.mxu0 %v393
    %436 = vmatprep.subr.bf16.mxu0 %v402
    %437 = vmatpush1.bf16.msra.mxu0 %v394
    %438 = vmatprep.subr.bf16.mxu0 %v403
    %439 = vmatpush1.bf16.msra.mxu0 %v395
    %440 = vmatprep.subr.bf16.mxu0 %v404
    %441 = vmatpush1.bf16.msra.mxu0 %v396
    %442 = vmatprep.subr.bf16.mxu0 %v405
    %443 = vmatpush1.bf16.msra.mxu0 %v397
    %444 = vmatprep.subr.bf16.mxu0 %v406
    %445 = vmatpush1.bf16.msra.mxu0 %v398
    %446 = vmatprep.subr.bf16.mxu0 %v407
    %447 = vmatpush1.bf16.msra.mxu0 %v399
    %448 = vmatprep.subr.bf16.mxu0 0
    %449 = vmatpush1.bf16.msra.mxu0 0
    %450 = vmatprep.subr.bf16.mxu0 0
    %451 = vmatpush1.bf16.msra.mxu0 0
    %452 = vmatprep.subr.bf16.mxu0 0
    %453 = vmatpush1.bf16.msra.mxu0 0
    %454 = vmatprep.subr.bf16.mxu0 0
    %455 = vmatpush1.bf16.msra.mxu0 0
    %456 = vmatprep.subr.bf16.mxu0 0
    %457 = vmatpush1.bf16.msra.mxu0 0
    %458 = vmatprep.subr.bf16.mxu0 0
    %459 = vmatpush1.bf16.msra.mxu0 0
    %460 = vmatprep.subr.bf16.mxu0 0
    %461 = vmatpush1.bf16.msra.mxu0 0
    %462 = vmatprep.subr.bf16.mxu0 0
    %463 = vmatpush1.bf16.msra.mxu0 0
    %464 = vmatprep.mubr.bf16.mxu0 0
    %465 = vmatmul.mubr.bf16.gmra.mrb[0].mxu0 %v424
    %v466 = vpop.f32.mrb[0].mxu0
    %v467 = vadd.f32 0.0, %v466
    %v468 = vpop.f32.mrb[0].mxu0
    %v469 = vadd.f32 0.0, %v468
    %v470 = vpop.f32.mrb[0].mxu0
    %v471 = vadd.f32 0.0, %v470
    %v472 = vpop.f32.mrb[0].mxu0
    %v473 = vadd.f32 0.0, %v472
    %474 = vmatprep.mubr.bf16.mxu0 0
    %475 = vmatmul.mubr.bf16.gmra.mrb[0].mxu0 %v425
    %v476 = vpop.f32.mrb[0].mxu0
    %v477 = vadd.f32 0.0, %v476
    %v478 = vpop.f32.mrb[0].mxu0
    %v479 = vadd.f32 0.0, %v478
    %v480 = vpop.f32.mrb[0].mxu0
    %v481 = vadd.f32 0.0, %v480
    %v482 = vpop.f32.mrb[0].mxu0
    %v483 = vadd.f32 0.0, %v482
    %484 = vmatprep.mubr.bf16.mxu0 0
    %485 = vmatmul.mubr.bf16.gmra.mrb[0].mxu0 %v426
    %v486 = vpop.f32.mrb[0].mxu0
    %v487 = vadd.f32 0.0, %v486
    %v488 = vpop.f32.mrb[0].mxu0
    %v489 = vadd.f32 0.0, %v488
    %v490 = vpop.f32.mrb[0].mxu0
    %v491 = vadd.f32 0.0, %v490
    %v492 = vpop.f32.mrb[0].mxu0
    %v493 = vadd.f32 0.0, %v492
    %494 = vmatprep.mubr.bf16.mxu0 0
    %495 = vmatmul.mubr.bf16.gmra.mrb[0].mxu0 %v427
    %v496 = vpop.f32.mrb[0].mxu0
    %v497 = vadd.f32 0.0, %v496
    %v498 = vpop.f32.mrb[0].mxu0
    %v499 = vadd.f32 0.0, %v498
    %v500 = vpop.f32.mrb[0].mxu0
    %v501 = vadd.f32 0.0, %v500
    %v502 = vpop.f32.mrb[0].mxu0
    %v503 = vadd.f32 0.0, %v502
    %504 = vdwg.mxu0
    %vm505 = vcmp.gt.f32.partialorder %v469, 0.0
    %vm506 = vcmp.gt.f32.partialorder %v473, 0.0
    %vm507 = vcmp.gt.f32.partialorder %v479, 0.0
    %vm508 = vcmp.gt.f32.partialorder %v483, 0.0
    %vm509 = vcmp.gt.f32.partialorder %v489, 0.0
    %vm510 = vcmp.gt.f32.partialorder %v493, 0.0
    %vm511 = vcmp.gt.f32.partialorder %v499, 0.0
    %vm512 = vcmp.gt.f32.partialorder %v503, 0.0
    %v513 = vsel %vm505, %v469, 1.0
    %v514 = vsel %vm506, %v473, 1.0
    %v515 = vsel %vm507, %v479, 1.0
    %v516 = vsel %vm508, %v483, 1.0
    %v517 = vsel %vm509, %v489, 1.0
    %v518 = vsel %vm510, %v493, 1.0
    %v519 = vsel %vm511, %v499, 1.0
    %v520 = vsel %vm512, %v503, 1.0
    %v521 = vrcp.pop %v513
    %v522 = vmul.f32 %v467, %v521
    %v523 = vrcp.pop %v514
    %v524 = vmul.f32 %v471, %v523
    %v525 = vrcp.pop %v515
    %v526 = vmul.f32 %v477, %v525
    %v527 = vrcp.pop %v516
    %v528 = vmul.f32 %v481, %v527
    %v529 = vrcp.pop %v517
    %v530 = vmul.f32 %v487, %v529
    %v531 = vrcp.pop %v518
    %v532 = vmul.f32 %v491, %v531
    %v533 = vrcp.pop %v519
    %v534 = vmul.f32 %v497, %v533
    %v535 = vrcp.pop %v520
    %v536 = vmul.f32 %v501, %v535
    %v537 = vsel %vm505, %v522, 0.0
    %v538 = vsel %vm506, %v524, 0.0
    %v539 = vsel %vm507, %v526, 0.0
    %v540 = vsel %vm508, %v528, 0.0
    %v541 = vsel %vm509, %v530, 0.0
    %v542 = vsel %vm510, %v532, 0.0
    %v543 = vsel %vm511, %v534, 0.0
    %v544 = vsel %vm512, %v536, 0.0
    %v545 = vadd.f32 %v537, %v99
    %v546 = vadd.f32 %v538, %v100
    %v547 = vadd.f32 %v539, %v101
    %v548 = vadd.f32 %v540, %v102
    %v549 = vadd.f32 %v541, %v103
    %v550 = vadd.f32 %v542, %v104
    %v551 = vadd.f32 %v543, %v105
    %v552 = vadd.f32 %v544, %v106
    %v553 = vld [vmem:[#allocation2] sm:$0xff]
    %v554 = vld [vmem:[#allocation2 + $0x8] sm:$0xff]
    %v555 = vld [vmem:[#allocation2 + $0x10] sm:$0xff]
    %v556 = vld [vmem:[#allocation2 + $0x18] sm:$0xff]
    %v557 = vld [vmem:[#allocation2 + $0x20] sm:$0xff]
    %v558 = vld [vmem:[#allocation2 + $0x28] sm:$0xff]
    %v559 = vld [vmem:[#allocation2 + $0x30] sm:$0xff]
    %v560 = vld [vmem:[#allocation2 + $0x38] sm:$0xff]
    %v561 = vld [vmem:[#allocation2 + $0x40] sm:$0xff]
    %v562 = vld [vmem:[#allocation2 + $0x48] sm:$0xff]
    %v563 = vld [vmem:[#allocation2 + $0x50] sm:$0xff]
    %v564 = vld [vmem:[#allocation2 + $0x58] sm:$0xff]
    %v565 = vld [vmem:[#allocation2 + $0x60] sm:$0xff]
    %v566 = vld [vmem:[#allocation2 + $0x68] sm:$0xff]
    %v567 = vld [vmem:[#allocation2 + $0x70] sm:$0xff]
    %v568 = vld [vmem:[#allocation2 + $0x78] sm:$0xff]
    %v569 = vld [vmem:[#allocation2 + $0x80] sm:$0xff]
    %v570 = vld [vmem:[#allocation2 + $0x88] sm:$0xff]
    %v571 = vld [vmem:[#allocation2 + $0x90] sm:$0xff]
    %v572 = vld [vmem:[#allocation2 + $0x98] sm:$0xff]
    %v573 = vld [vmem:[#allocation2 + $0xa0] sm:$0xff]
    %v574 = vld [vmem:[#allocation2 + $0xa8] sm:$0xff]
    %v575 = vld [vmem:[#allocation2 + $0xb0] sm:$0xff]
    %v576 = vld [vmem:[#allocation2 + $0xb8] sm:$0xff]
    %v577 = vld [vmem:[#allocation2 + $0xc0] sm:$0xff]
    %v578 = vld [vmem:[#allocation2 + $0xc8] sm:$0xff]
    %v579 = vld [vmem:[#allocation2 + $0xd0] sm:$0xff]
    %v580 = vld [vmem:[#allocation2 + $0xd8] sm:$0xff]
    %v581 = vld [vmem:[#allocation2 + $0xe0] sm:$0xff]
    %v582 = vld [vmem:[#allocation2 + $0xe8] sm:$0xff]
    %v583 = vld [vmem:[#allocation2 + $0xf0] sm:$0xff]
    %v584 = vld [vmem:[#allocation2 + $0xf8] sm:$0xff]
    %585 = vmatprep.subr.mxu0 %v554
    %586 = vmatpush1.msra.mxu0 %v553
    %587 = vmatprep.subr.mxu0 %v556
    %588 = vmatpush1.msra.mxu0 %v555
    %589 = vmatprep.subr.mxu0 %v558
    %590 = vmatpush1.msra.mxu0 %v557
    %591 = vmatprep.subr.mxu0 %v560
    %592 = vmatpush1.msra.mxu0 %v559
    %593 = vmatprep.subr.mxu0 %v562
    %594 = vmatpush1.msra.mxu0 %v561
    %595 = vmatprep.subr.mxu0 %v564
    %596 = vmatpush1.msra.mxu0 %v563
    %597 = vmatprep.subr.mxu0 %v566
    %598 = vmatpush1.msra.mxu0 %v565
    %599 = vmatprep.subr.mxu0 %v568
    %600 = vmatpush1.msra.mxu0 %v567
    %601 = vmatprep.subr.mxu0 %v570
    %602 = vmatpush1.msra.mxu0 %v569
    %603 = vmatprep.subr.mxu0 %v572
    %604 = vmatpush1.msra.mxu0 %v571
    %605 = vmatprep.subr.mxu0 %v574
    %606 = vmatpush1.msra.mxu0 %v573
    %607 = vmatprep.subr.mxu0 %v576
    %608 = vmatpush1.msra.mxu0 %v575
    %609 = vmatprep.subr.mxu0 %v578
    %610 = vmatpush1.msra.mxu0 %v577
    %611 = vmatprep.subr.mxu0 %v580
    %612 = vmatpush1.msra.mxu0 %v579
    %613 = vmatprep.subr.mxu0 %v582
    %614 = vmatpush1.msra.mxu0 %v581
    %615 = vmatprep.subr.mxu0 %v584
    %616 = vmatpush1.msra.mxu0 %v583
    %617 = vmatprep.subr.mxu0 0.0
    %618 = vmatpush1.msra.mxu0 0.0
    %619 = vmatprep.subr.mxu0 0.0
    %620 = vmatpush1.msra.mxu0 0.0
    %621 = vmatprep.subr.mxu0 0.0
    %622 = vmatpush1.msra.mxu0 0.0
    %623 = vmatprep.subr.mxu0 0.0
    %624 = vmatpush1.msra.mxu0 0.0
    %625 = vmatprep.subr.mxu0 0.0
    %626 = vmatpush1.msra.mxu0 0.0
    %627 = vmatprep.subr.mxu0 0.0
    %628 = vmatpush1.msra.mxu0 0.0
    %629 = vmatprep.subr.mxu0 0.0
    %630 = vmatpush1.msra.mxu0 0.0
    %631 = vmatprep.subr.mxu0 0.0
    %632 = vmatpush1.msra.mxu0 0.0
    %633 = vmatprep.subr.mxu0 0.0
    %634 = vmatpush1.msra.mxu0 0.0
    %635 = vmatprep.subr.mxu0 0.0
    %636 = vmatpush1.msra.mxu0 0.0
    %637 = vmatprep.subr.mxu0 0.0
    %638 = vmatpush1.msra.mxu0 0.0
    %639 = vmatprep.subr.mxu0 0.0
    %640 = vmatpush1.msra.mxu0 0.0
    %641 = vmatprep.subr.mxu0 0.0
    %642 = vmatpush1.msra.mxu0 0.0
    %643 = vmatprep.subr.mxu0 0.0
    %644 = vmatpush1.msra.mxu0 0.0
    %645 = vmatprep.subr.mxu0 0.0
    %646 = vmatpush1.msra.mxu0 0.0
    %647 = vmatprep.subr.mxu0 0.0
    %648 = vmatpush1.msra.mxu0 0.0
    %649 = vmatprep.mubr.f32.mxu0 0.0
    %650 = vmatmul.mubr.f32.gmra.mrb[0].mxu0 %v545
    %v651 = vpop.f32.mrb[0].mxu0
    %v652 = vadd.f32 0.0, %v651
    %v653 = vpop.f32.mrb[0].mxu0
    %v654 = vadd.f32 0.0, %v653
    %655 = vmatprep.mubr.f32.mxu0 0.0
    %656 = vmatmul.mubr.f32.gmra.mrb[0].mxu0 %v546
    %v657 = vpop.f32.mrb[0].mxu0
    %v658 = vadd.f32 0.0, %v657
    %v659 = vpop.f32.mrb[0].mxu0
    %v660 = vadd.f32 0.0, %v659
    %661 = vmatprep.mubr.f32.mxu0 0.0
    %662 = vmatmul.mubr.f32.gmra.mrb[0].mxu0 %v547
    %v663 = vpop.f32.mrb[0].mxu0
    %v664 = vadd.f32 0.0, %v663
    %v665 = vpop.f32.mrb[0].mxu0
    %v666 = vadd.f32 0.0, %v665
    %667 = vmatprep.mubr.f32.mxu0 0.0
    %668 = vmatmul.mubr.f32.gmra.mrb[0].mxu0 %v548
    %v669 = vpop.f32.mrb[0].mxu0
    %v670 = vadd.f32 0.0, %v669
    %v671 = vpop.f32.mrb[0].mxu0
    %v672 = vadd.f32 0.0, %v671
    %673 = vmatprep.mubr.f32.mxu0 0.0
    %674 = vmatmul.mubr.f32.gmra.mrb[0].mxu0 %v549
    %v675 = vpop.f32.mrb[0].mxu0
    %v676 = vadd.f32 0.0, %v675
    %v677 = vpop.f32.mrb[0].mxu0
    %v678 = vadd.f32 0.0, %v677
    %679 = vmatprep.mubr.f32.mxu0 0.0
    %680 = vmatmul.mubr.f32.gmra.mrb[0].mxu0 %v550
    %v681 = vpop.f32.mrb[0].mxu0
    %v682 = vadd.f32 0.0, %v681
    %v683 = vpop.f32.mrb[0].mxu0
    %v684 = vadd.f32 0.0, %v683
    %685 = vmatprep.mubr.f32.mxu0 0.0
    %686 = vmatmul.mubr.f32.gmra.mrb[0].mxu0 %v551
    %v687 = vpop.f32.mrb[0].mxu0
    %v688 = vadd.f32 0.0, %v687
    %v689 = vpop.f32.mrb[0].mxu0
    %v690 = vadd.f32 0.0, %v689
    %691 = vmatprep.mubr.f32.mxu0 0.0
    %692 = vmatmul.mubr.f32.gmra.mrb[0].mxu0 %v552
    %v693 = vpop.f32.mrb[0].mxu0
    %v694 = vadd.f32 0.0, %v693
    %v695 = vpop.f32.mrb[0].mxu0
    %v696 = vadd.f32 0.0, %v695
    %697 = vdwg.mxu0
    %v698 = vadd.f32 %v652, %v658
    %v699 = vadd.f32 %v698, %v664
    %v700 = vadd.f32 %v699, %v670
    %v701 = vadd.f32 %v700, %v676
    %v702 = vadd.f32 %v701, %v682
    %v703 = vadd.f32 %v702, %v688
    %v704 = vadd.f32 %v703, %v694
    %v705 = vrot.slane %v704, 4
    %v706 = vadd.f32 %v704, %v705
    %v707 = vrot.slane %v706, 2
    %v708 = vadd.f32 %v706, %v707
    %v709 = vrot.slane %v708, 1
    %v710 = vadd.f32 %v708, %v709
    %v711 = vadd.f32 %v654, %v660
    %v712 = vadd.f32 %v711, %v666
    %v713 = vadd.f32 %v712, %v672
    %v714 = vadd.f32 %v713, %v678
    %v715 = vadd.f32 %v714, %v684
    %v716 = vadd.f32 %v715, %v690
    %v717 = vadd.f32 %v716, %v696
    %v718 = vrot.slane %v717, 4
    %v719 = vadd.f32 %v717, %v718
    %v720 = vrot.slane %v719, 2
    %v721 = vadd.f32 %v719, %v720
    %v722 = vrot.slane %v721, 1
    %v723 = vadd.f32 %v721, %v722
    %v724 = vrcp.pop 64.0
    %v725 = vmul.f32 %v710, %v724
    %v726 = vmul.f32 %v723, %v724
    %v727 = vsub.f32 %v652, %v725
    %v728 = vsub.f32 %v654, %v726
    %v729 = vsub.f32 %v658, %v725
    %v730 = vsub.f32 %v660, %v726
    %v731 = vsub.f32 %v664, %v725
    %v732 = vsub.f32 %v666, %v726
    %v733 = vsub.f32 %v670, %v725
    %v734 = vsub.f32 %v672, %v726
    %v735 = vsub.f32 %v676, %v725
    %v736 = vsub.f32 %v678, %v726
    %v737 = vsub.f32 %v682, %v725
    %v738 = vsub.f32 %v684, %v726
    %v739 = vsub.f32 %v688, %v725
    %v740 = vsub.f32 %v690, %v726
    %v741 = vsub.f32 %v694, %v725
    %v742 = vsub.f32 %v696, %v726
    %v743 = vmul.f32 %v727, %v727
    %v744 = vmul.f32 %v728, %v728
    %v745 = vmul.f32 %v729, %v729
    %v746 = vmul.f32 %v730, %v730
    %v747 = vmul.f32 %v731, %v731
    %v748 = vmul.f32 %v732, %v732
    %v749 = vmul.f32 %v733, %v733
    %v750 = vmul.f32 %v734, %v734
    %v751 = vmul.f32 %v735, %v735
    %v752 = vmul.f32 %v736, %v736
    %v753 = vmul.f32 %v737, %v737
    %v754 = vmul.f32 %v738, %v738
    %v755 = vmul.f32 %v739, %v739
    %v756 = vmul.f32 %v740, %v740
    %v757 = vmul.f32 %v741, %v741
    %v758 = vmul.f32 %v742, %v742
    %v759 = vadd.f32 %v743, %v745
    %v760 = vadd.f32 %v759, %v747
    %v761 = vadd.f32 %v760, %v749
    %v762 = vadd.f32 %v761, %v751
    %v763 = vadd.f32 %v762, %v753
    %v764 = vadd.f32 %v763, %v755
    %v765 = vadd.f32 %v764, %v757
    %v766 = vrot.slane %v765, 4
    %v767 = vadd.f32 %v765, %v766
    %v768 = vrot.slane %v767, 2
    %v769 = vadd.f32 %v767, %v768
    %v770 = vrot.slane %v769, 1
    %v771 = vadd.f32 %v769, %v770
    %v772 = vadd.f32 %v744, %v746
    %v773 = vadd.f32 %v772, %v748
    %v774 = vadd.f32 %v773, %v750
    %v775 = vadd.f32 %v774, %v752
    %v776 = vadd.f32 %v775, %v754
    %v777 = vadd.f32 %v776, %v756
    %v778 = vadd.f32 %v777, %v758
    %v779 = vrot.slane %v778, 4
    %v780 = vadd.f32 %v778, %v779
    %v781 = vrot.slane %v780, 2
    %v782 = vadd.f32 %v780, %v781
    %v783 = vrot.slane %v782, 1
    %v784 = vadd.f32 %v782, %v783
    %v785 = vmul.f32 %v771, %v724
    %v786 = vmul.f32 %v784, %v724
    %v787 = vadd.f32 %v785, 1e-05
    %v788 = vadd.f32 %v786, 1e-05
    %v789 = vrsqrt.pop %v787
    %v790 = vrsqrt.pop %v788
    %v791 = vmul.f32 %v727, %v789
    %v792 = vmul.f32 %v728, %v790
    %v793 = vmul.f32 %v729, %v789
    %v794 = vmul.f32 %v730, %v790
    %v795 = vmul.f32 %v731, %v789
    %v796 = vmul.f32 %v732, %v790
    %v797 = vmul.f32 %v733, %v789
    %v798 = vmul.f32 %v734, %v790
    %v799 = vmul.f32 %v735, %v789
    %v800 = vmul.f32 %v736, %v790
    %v801 = vmul.f32 %v737, %v789
    %v802 = vmul.f32 %v738, %v790
    %v803 = vmul.f32 %v739, %v789
    %v804 = vmul.f32 %v740, %v790
    %v805 = vmul.f32 %v741, %v789
    %v806 = vmul.f32 %v742, %v790
    %v807 = vld [vmem:[%s4] sm:$0x3]
    %v809 = vlaneseq
    %v810 = vshrl.u32 %v809, 7
    %v811 = vsub.s32 0, %v810
    %v812 = vrot.slane %v807, %v811
    %v813 = vlaneseq
    %v814 = vshrl.u32 %v813, 7
    %v815 = vsub.s32 1, %v814
    %v816 = vrot.slane %v807, %v815
    %v819 = vmul.f32 %v791, %v812
    %v820 = vmul.f32 %v792, %v816
    %v821 = vmul.f32 %v793, %v812
    %v822 = vmul.f32 %v794, %v816
    %v823 = vmul.f32 %v795, %v812
    %v824 = vmul.f32 %v796, %v816
    %v825 = vmul.f32 %v797, %v812
    %v826 = vmul.f32 %v798, %v816
    %v827 = vmul.f32 %v799, %v812
    %v828 = vmul.f32 %v800, %v816
    %v829 = vmul.f32 %v801, %v812
    %v830 = vmul.f32 %v802, %v816
    %v831 = vmul.f32 %v803, %v812
    %v832 = vmul.f32 %v804, %v816
    %v833 = vmul.f32 %v805, %v812
    %v834 = vmul.f32 %v806, %v816
    %v835 = vld [vmem:[%s5] sm:$0x3]
    %v837 = vlaneseq
    %v838 = vshrl.u32 %v837, 7
    %v839 = vsub.s32 0, %v838
    %v840 = vrot.slane %v835, %v839
    %v841 = vlaneseq
    %v842 = vshrl.u32 %v841, 7
    %v843 = vsub.s32 1, %v842
    %v844 = vrot.slane %v835, %v843
    %v847 = vadd.f32 %v819, %v840
    %v848 = vadd.f32 %v820, %v844
    %v849 = vadd.f32 %v821, %v840
    %v850 = vadd.f32 %v822, %v844
    %v851 = vadd.f32 %v823, %v840
    %v852 = vadd.f32 %v824, %v844
    %v853 = vadd.f32 %v825, %v840
    %v854 = vadd.f32 %v826, %v844
    %v855 = vadd.f32 %v827, %v840
    %v856 = vadd.f32 %v828, %v844
    %v857 = vadd.f32 %v829, %v840
    %v858 = vadd.f32 %v830, %v844
    %v859 = vadd.f32 %v831, %v840
    %v860 = vadd.f32 %v832, %v844
    %v861 = vadd.f32 %v833, %v840
    %v862 = vadd.f32 %v834, %v844
    %v863 = vmax.f32 %v847, 0.0
    %v864 = vmax.f32 %v848, 0.0
    %v865 = vmax.f32 %v849, 0.0
    %v866 = vmax.f32 %v850, 0.0
    %v867 = vmax.f32 %v851, 0.0
    %v868 = vmax.f32 %v852, 0.0
    %v869 = vmax.f32 %v853, 0.0
    %v870 = vmax.f32 %v854, 0.0
    %v871 = vmax.f32 %v855, 0.0
    %v872 = vmax.f32 %v856, 0.0
    %v873 = vmax.f32 %v857, 0.0
    %v874 = vmax.f32 %v858, 0.0
    %v875 = vmax.f32 %v859, 0.0
    %v876 = vmax.f32 %v860, 0.0
    %v877 = vmax.f32 %v861, 0.0
    %v878 = vmax.f32 %v862, 0.0
    %v879 = vld [vmem:[#allocation6] sm:$0xff]
    %v880 = vld [vmem:[#allocation6 + $0x8] sm:$0xff]
    %v881 = vld [vmem:[#allocation6 + $0x10] sm:$0xff]
    %v882 = vld [vmem:[#allocation6 + $0x18] sm:$0xff]
    %v883 = vld [vmem:[#allocation6 + $0x20] sm:$0xff]
    %v884 = vld [vmem:[#allocation6 + $0x28] sm:$0xff]
    %v885 = vld [vmem:[#allocation6 + $0x30] sm:$0xff]
    %v886 = vld [vmem:[#allocation6 + $0x38] sm:$0xff]
    %v887 = vld [vmem:[#allocation6 + $0x40] sm:$0xff]
    %v888 = vld [vmem:[#allocation6 + $0x48] sm:$0xff]
    %v889 = vld [vmem:[#allocation6 + $0x50] sm:$0xff]
    %v890 = vld [vmem:[#allocation6 + $0x58] sm:$0xff]
    %v891 = vld [vmem:[#allocation6 + $0x60] sm:$0xff]
    %v892 = vld [vmem:[#allocation6 + $0x68] sm:$0xff]
    %v893 = vld [vmem:[#allocation6 + $0x70] sm:$0xff]
    %v894 = vld [vmem:[#allocation6 + $0x78] sm:$0xff]
    %v895 = vld [vmem:[#allocation6 + $0x80] sm:$0xff]
    %v896 = vld [vmem:[#allocation6 + $0x88] sm:$0xff]
    %v897 = vld [vmem:[#allocation6 + $0x90] sm:$0xff]
    %v898 = vld [vmem:[#allocation6 + $0x98] sm:$0xff]
    %v899 = vld [vmem:[#allocation6 + $0xa0] sm:$0xff]
    %v900 = vld [vmem:[#allocation6 + $0xa8] sm:$0xff]
    %v901 = vld [vmem:[#allocation6 + $0xb0] sm:$0xff]
    %v902 = vld [vmem:[#allocation6 + $0xb8] sm:$0xff]
    %v903 = vld [vmem:[#allocation6 + $0xc0] sm:$0xff]
    %v904 = vld [vmem:[#allocation6 + $0xc8] sm:$0xff]
    %v905 = vld [vmem:[#allocation6 + $0xd0] sm:$0xff]
    %v906 = vld [vmem:[#allocation6 + $0xd8] sm:$0xff]
    %v907 = vld [vmem:[#allocation6 + $0xe0] sm:$0xff]
    %v908 = vld [vmem:[#allocation6 + $0xe8] sm:$0xff]
    %v909 = vld [vmem:[#allocation6 + $0xf0] sm:$0xff]
    %v910 = vld [vmem:[#allocation6 + $0xf8] sm:$0xff]
    %v911 = vld [vmem:[%s7] sm:$0x1]
    %v913 = vlaneseq
    %v914 = vshrl.u32 %v913, 7
    %v915 = vsub.s32 0, %v914
    %v916 = vrot.slane %v911, %v915
    %918 = vmatprep.subr.mxu0 0.0
    %919 = vmatpush1.msra.mxu0 %v879
    %920 = vmatprep.subr.mxu0 0.0
    %921 = vmatpush1.msra.mxu0 %v880
    %922 = vmatprep.subr.mxu0 0.0
    %923 = vmatpush1.msra.mxu0 %v881
    %924 = vmatprep.subr.mxu0 0.0
    %925 = vmatpush1.msra.mxu0 %v882
    %926 = vmatprep.subr.mxu0 0.0
    %927 = vmatpush1.msra.mxu0 %v883
    %928 = vmatprep.subr.mxu0 0.0
    %929 = vmatpush1.msra.mxu0 %v884
    %930 = vmatprep.subr.mxu0 0.0
    %931 = vmatpush1.msra.mxu0 %v885
    %932 = vmatprep.subr.mxu0 0.0
    %933 = vmatpush1.msra.mxu0 %v886
    %934 = vmatprep.subr.mxu0 0.0
    %935 = vmatpush1.msra.mxu0 %v887
    %936 = vmatprep.subr.mxu0 0.0
    %937 = vmatpush1.msra.mxu0 %v888
    %938 = vmatprep.subr.mxu0 0.0
    %939 = vmatpush1.msra.mxu0 %v889
    %940 = vmatprep.subr.mxu0 0.0
    %941 = vmatpush1.msra.mxu0 %v890
    %942 = vmatprep.subr.mxu0 0.0
    %943 = vmatpush1.msra.mxu0 %v891
    %944 = vmatprep.subr.mxu0 0.0
    %945 = vmatpush1.msra.mxu0 %v892
    %946 = vmatprep.subr.mxu0 0.0
    %947 = vmatpush1.msra.mxu0 %v893
    %948 = vmatprep.subr.mxu0 0.0
    %949 = vmatpush1.msra.mxu0 %v894
    %950 = vmatprep.subr.mxu0 0.0
    %951 = vmatpush1.msra.mxu0 %v895
    %952 = vmatprep.subr.mxu0 0.0
    %953 = vmatpush1.msra.mxu0 %v896
    %954 = vmatprep.subr.mxu0 0.0
    %955 = vmatpush1.msra.mxu0 %v897
    %956 = vmatprep.subr.mxu0 0.0
    %957 = vmatpush1.msra.mxu0 %v898
    %958 = vmatprep.subr.mxu0 0.0
    %959 = vmatpush1.msra.mxu0 %v899
    %960 = vmatprep.subr.mxu0 0.0
    %961 = vmatpush1.msra.mxu0 %v900
    %962 = vmatprep.subr.mxu0 0.0
    %963 = vmatpush1.msra.mxu0 %v901
    %964 = vmatprep.subr.mxu0 0.0
    %965 = vmatpush1.msra.mxu0 %v902
    %966 = vmatprep.subr.mxu0 0.0
    %967 = vmatpush1.msra.mxu0 %v903
    %968 = vmatprep.subr.mxu0 0.0
    %969 = vmatpush1.msra.mxu0 %v904
    %970 = vmatprep.subr.mxu0 0.0
    %971 = vmatpush1.msra.mxu0 %v905
    %972 = vmatprep.subr.mxu0 0.0
    %973 = vmatpush1.msra.mxu0 %v906
    %974 = vmatprep.subr.mxu0 0.0
    %975 = vmatpush1.msra.mxu0 %v907
    %976 = vmatprep.subr.mxu0 0.0
    %977 = vmatpush1.msra.mxu0 %v908
    %978 = vmatprep.subr.mxu0 0.0
    %979 = vmatpush1.msra.mxu0 %v909
    %980 = vmatprep.subr.mxu0 0.0
    %981 = vmatpush1.msra.mxu0 %v910
    %982 = vmatprep.mubr.f32.mxu0 %v864
    %983 = vmatmul.mubr.f32.gmra.mrb[0].mxu0 %v863
    %v984 = vpop.f32.mrb[0].mxu0
    %v985 = vadd.f32 %v916, %v984
    %v986 = vpop.f32.mrb[0].mxu0
    %987 = vmatprep.mubr.f32.mxu0 %v866
    %988 = vmatmul.mubr.f32.gmra.mrb[0].mxu0 %v865
    %v989 = vpop.f32.mrb[0].mxu0
    %v990 = vadd.f32 %v916, %v989
    %v991 = vpop.f32.mrb[0].mxu0
    %992 = vmatprep.mubr.f32.mxu0 %v868
    %993 = vmatmul.mubr.f32.gmra.mrb[0].mxu0 %v867
    %v994 = vpop.f32.mrb[0].mxu0
    %v995 = vadd.f32 %v916, %v994
    %v996 = vpop.f32.mrb[0].mxu0
    %997 = vmatprep.mubr.f32.mxu0 %v870
    %998 = vmatmul.mubr.f32.gmra.mrb[0].mxu0 %v869
    %v999 = vpop.f32.mrb[0].mxu0
    %v1000 = vadd.f32 %v916, %v999
    %v1001 = vpop.f32.mrb[0].mxu0
    %1002 = vmatprep.mubr.f32.mxu0 %v872
    %1003 = vmatmul.mubr.f32.gmra.mrb[0].mxu0 %v871
    %v1004 = vpop.f32.mrb[0].mxu0
    %v1005 = vadd.f32 %v916, %v1004
    %v1006 = vpop.f32.mrb[0].mxu0
    %1007 = vmatprep.mubr.f32.mxu0 %v874
    %1008 = vmatmul.mubr.f32.gmra.mrb[0].mxu0 %v873
    %v1009 = vpop.f32.mrb[0].mxu0
    %v1010 = vadd.f32 %v916, %v1009
    %v1011 = vpop.f32.mrb[0].mxu0
    %1012 = vmatprep.mubr.f32.mxu0 %v876
    %1013 = vmatmul.mubr.f32.gmra.mrb[0].mxu0 %v875
    %v1014 = vpop.f32.mrb[0].mxu0
    %v1015 = vadd.f32 %v916, %v1014
    %v1016 = vpop.f32.mrb[0].mxu0
    %1017 = vmatprep.mubr.f32.mxu0 %v878
    %1018 = vmatmul.mubr.f32.gmra.mrb[0].mxu0 %v877
    %v1019 = vpop.f32.mrb[0].mxu0
    %v1020 = vadd.f32 %v916, %v1019
    %v1021 = vpop.f32.mrb[0].mxu0
    %1022 = vdwg.mxu0
    %v1023 = vadd.f32 %v985, %v990
    %v1024 = vadd.f32 %v1023, %v995
    %v1025 = vadd.f32 %v1024, %v1000
    %v1026 = vadd.f32 %v1025, %v1005
    %v1027 = vadd.f32 %v1026, %v1010
    %v1028 = vadd.f32 %v1027, %v1015
    %v1029 = vadd.f32 %v1028, %v1020
    %v1030 = vrot.slane %v1029, 4
    %v1031 = vadd.f32 %v1029, %v1030
    %v1032 = vrot.slane %v1031, 2
    %v1033 = vadd.f32 %v1031, %v1032
    %v1034 = vrot.slane %v1033, 1
    %v1035 = vadd.f32 %v1033, %v1034
    %v1036 = vmul.f32 %v1035, %v724
    %v1037 = vsub.f32 %v985, %v1036
    %v1038 = vsub.f32 %v990, %v1036
    %v1039 = vsub.f32 %v995, %v1036
    %v1040 = vsub.f32 %v1000, %v1036
    %v1041 = vsub.f32 %v1005, %v1036
    %v1042 = vsub.f32 %v1010, %v1036
    %v1043 = vsub.f32 %v1015, %v1036
    %v1044 = vsub.f32 %v1020, %v1036
    %v1045 = vmul.f32 %v1037, %v1037
    %v1046 = vmul.f32 %v1038, %v1038
    %v1047 = vmul.f32 %v1039, %v1039
    %v1048 = vmul.f32 %v1040, %v1040
    %v1049 = vmul.f32 %v1041, %v1041
    %v1050 = vmul.f32 %v1042, %v1042
    %v1051 = vmul.f32 %v1043, %v1043
    %v1052 = vmul.f32 %v1044, %v1044
    %1053 = vadd.xlane.f32.xlu0 %v1045
    %v1054 = vpop.xlane.xlu0 %1053
    %1055 = vadd.xlane.f32.xlu0 %v1046
    %v1056 = vpop.xlane.xlu0 %1055
    %1057 = vadd.xlane.f32.xlu0 %v1047
    %v1058 = vpop.xlane.xlu0 %1057
    %1059 = vadd.xlane.f32.xlu0 %v1048
    %v1060 = vpop.xlane.xlu0 %1059
    %1061 = vadd.xlane.f32.xlu0 %v1049
    %v1062 = vpop.xlane.xlu0 %1061
    %1063 = vadd.xlane.f32.xlu0 %v1050
    %v1064 = vpop.xlane.xlu0 %1063
    %1065 = vadd.xlane.f32.xlu0 %v1051
    %v1066 = vpop.xlane.xlu0 %1065
    %1067 = vadd.xlane.f32.xlu0 %v1052
    %v1068 = vpop.xlane.xlu0 %1067
    %v1069 = vadd.f32 %v1054, %v1056
    %v1070 = vadd.f32 %v1069, %v1058
    %v1071 = vadd.f32 %v1070, %v1060
    %v1072 = vadd.f32 %v1071, %v1062
    %v1073 = vadd.f32 %v1072, %v1064
    %v1074 = vadd.f32 %v1073, %v1066
    %v1075 = vadd.f32 %v1074, %v1068
    %v1076 = vrot.slane %v1075, 4
    %v1077 = vadd.f32 %v1075, %v1076
    %v1078 = vrot.slane %v1077, 2
    %v1079 = vadd.f32 %v1077, %v1078
    %v1080 = vrot.slane %v1079, 1
    %v1081 = vadd.f32 %v1079, %v1080
    %v1082 = vmul.f32 %v1081, %v724
    %v1083 = vadd.f32 %v1082, 1e-05
    %v1084 = vrsqrt.pop %v1083
    %v1085 = vmul.f32 %v1083, %v1084
    %vm1086 = vcmp.eq.f32.partialorder %v1083, inf
    %v1087 = vsel %vm1086, %v1083, %v1085
    %vm1088 = vcmp.eq.f32.partialorder %v1083, 0.0
    %v1089 = vand.u32 %v1083, 2147483648
    %v1090 = vsel %vm1088, %v1089, %v1087
    %v1091 = vrcp.pop %v1090
    %v1092 = vmul.f32 %v1037, %v1091
    %v1093 = vmul.f32 %v1038, %v1091
    %v1094 = vmul.f32 %v1039, %v1091
    %v1095 = vmul.f32 %v1040, %v1091
    %v1096 = vmul.f32 %v1041, %v1091
    %v1097 = vmul.f32 %v1042, %v1091
    %v1098 = vmul.f32 %v1043, %v1091
    %v1099 = vmul.f32 %v1044, %v1091
    %v1100 = vmax.f32 %v1092, 0.0
    %v1101 = vmax.f32 %v1093, 0.0
    %v1102 = vmax.f32 %v1094, 0.0
    %v1103 = vmax.f32 %v1095, 0.0
    %v1104 = vmax.f32 %v1096, 0.0
    %v1105 = vmax.f32 %v1097, 0.0
    %v1106 = vmax.f32 %v1098, 0.0
    %v1107 = vmax.f32 %v1099, 0.0
    %v1108 = vmax.f32 %v1100, 0.0
    %v1109 = vmax.f32 %v1101, 0.0
    %v1110 = vmax.f32 %v1102, 0.0
    %v1111 = vmax.f32 %v1103, 0.0
    %v1112 = vmax.f32 %v1104, 0.0
    %v1113 = vmax.f32 %v1105, 0.0
    %v1114 = vmax.f32 %v1106, 0.0
    %v1115 = vmax.f32 %v1107, 0.0
    %v1116 = vadd.f32 %v1108, 1e-07
    %v1117 = vadd.f32 %v1109, 1e-07
    %v1118 = vadd.f32 %v1110, 1e-07
    %v1119 = vadd.f32 %v1111, 1e-07
    %v1120 = vadd.f32 %v1112, 1e-07
    %v1121 = vadd.f32 %v1113, 1e-07
    %v1122 = vadd.f32 %v1114, 1e-07
    %v1123 = vadd.f32 %v1115, 1e-07
    %v1124 = vpack.c.bf16 %v1117, %v1116
    %v1125 = vpack.c.bf16 %v1119, %v1118
    %v1126 = vpack.c.bf16 %v1121, %v1120
    %v1127 = vpack.c.bf16 %v1123, %v1122
    %1128 = vmatprep.subr.bf16.mxu0 0
    %1129 = vmatpush1.bf16.msra.mxu0 %v1124
    %1130 = vmatprep.subr.bf16.mxu0 0
    %1131 = vmatpush1.bf16.msra.mxu0 %v1125
    %1132 = vmatprep.subr.bf16.mxu0 0
    %1133 = vmatpush1.bf16.msra.mxu0 %v1126
    %1134 = vmatprep.subr.bf16.mxu0 0
    %1135 = vmatpush1.bf16.msra.mxu0 %v1127
    %1136 = vmatprep.subr.bf16.mxu0 0
    %1137 = vmatpush1.bf16.msra.mxu0 0
    %1138 = vmatprep.subr.bf16.mxu0 0
    %1139 = vmatpush1.bf16.msra.mxu0 0
    %1140 = vmatprep.subr.bf16.mxu0 0
    %1141 = vmatpush1.bf16.msra.mxu0 0
    %1142 = vmatprep.subr.bf16.mxu0 0
    %1143 = vmatpush1.bf16.msra.mxu0 0
    %1144 = vmatprep.subr.bf16.mxu0 0
    %1145 = vmatpush1.bf16.msra.mxu0 0
    %1146 = vmatprep.subr.bf16.mxu0 0
    %1147 = vmatpush1.bf16.msra.mxu0 0
    %1148 = vmatprep.subr.bf16.mxu0 0
    %1149 = vmatpush1.bf16.msra.mxu0 0
    %1150 = vmatprep.subr.bf16.mxu0 0
    %1151 = vmatpush1.bf16.msra.mxu0 0
    %1152 = vmatprep.subr.bf16.mxu0 0
    %1153 = vmatpush1.bf16.msra.mxu0 0
    %1154 = vmatprep.subr.bf16.mxu0 0
    %1155 = vmatpush1.bf16.msra.mxu0 0
    %1156 = vmatprep.subr.bf16.mxu0 0
    %1157 = vmatpush1.bf16.msra.mxu0 0
    %1158 = vmatprep.subr.bf16.mxu0 0
    %1159 = vmatpush1.bf16.msra.mxu0 0
    %1160 = vmatprep.mubr.bf16.mxu0 0
    %1161 = vmatmul.mubr.bf16.gmra.mrb[0].mxu0 %v169
    %v1162 = vpop.f32.mrb[0].mxu0
    %v1163 = vadd.f32 0.0, %v1162
    %v1164 = vpop.f32.mrb[0].mxu0
    %v1165 = vpop.f32.mrb[0].mxu0
    %v1166 = vadd.f32 0.0, %v1165
    %v1167 = vpop.f32.mrb[0].mxu0
    %1168 = vmatprep.mubr.bf16.mxu0 0
    %1169 = vmatmul.mubr.bf16.gmra.mrb[0].mxu0 %v172
    %v1170 = vpop.f32.mrb[0].mxu0
    %v1171 = vadd.f32 0.0, %v1170
    %v1172 = vpop.f32.mrb[0].mxu0
    %v1173 = vpop.f32.mrb[0].mxu0
    %v1174 = vadd.f32 0.0, %v1173
    %v1175 = vpop.f32.mrb[0].mxu0
    %1176 = vmatprep.mubr.bf16.mxu0 0
    %1177 = vmatmul.mubr.bf16.gmra.mrb[0].mxu0 %v175
    %v1178 = vpop.f32.mrb[0].mxu0
    %v1179 = vadd.f32 0.0, %v1178
    %v1180 = vpop.f32.mrb[0].mxu0
    %v1181 = vpop.f32.mrb[0].mxu0
    %v1182 = vadd.f32 0.0, %v1181
    %v1183 = vpop.f32.mrb[0].mxu0
    %1184 = vmatprep.mubr.bf16.mxu0 0
    %1185 = vmatmul.mubr.bf16.gmra.mrb[0].mxu0 %v178
    %v1186 = vpop.f32.mrb[0].mxu0
    %v1187 = vadd.f32 0.0, %v1186
    %v1188 = vpop.f32.mrb[0].mxu0
    %v1189 = vpop.f32.mrb[0].mxu0
    %v1190 = vadd.f32 0.0, %v1189
    %v1191 = vpop.f32.mrb[0].mxu0
    %1192 = vmatprep.mubr.bf16.mxu0 0
    %1193 = vmatmul.mubr.bf16.gmra.mrb[0].mxu0 %v181
    %v1194 = vpop.f32.mrb[0].mxu0
    %v1195 = vadd.f32 0.0, %v1194
    %v1196 = vpop.f32.mrb[0].mxu0
    %v1197 = vpop.f32.mrb[0].mxu0
    %v1198 = vadd.f32 0.0, %v1197
    %v1199 = vpop.f32.mrb[0].mxu0
    %1200 = vmatprep.mubr.bf16.mxu0 0
    %1201 = vmatmul.mubr.bf16.gmra.mrb[0].mxu0 %v184
    %v1202 = vpop.f32.mrb[0].mxu0
    %v1203 = vadd.f32 0.0, %v1202
    %v1204 = vpop.f32.mrb[0].mxu0
    %v1205 = vpop.f32.mrb[0].mxu0
    %v1206 = vadd.f32 0.0, %v1205
    %v1207 = vpop.f32.mrb[0].mxu0
    %1208 = vmatprep.mubr.bf16.mxu0 0
    %1209 = vmatmul.mubr.bf16.gmra.mrb[0].mxu0 %v187
    %v1210 = vpop.f32.mrb[0].mxu0
    %v1211 = vadd.f32 0.0, %v1210
    %v1212 = vpop.f32.mrb[0].mxu0
    %v1213 = vpop.f32.mrb[0].mxu0
    %v1214 = vadd.f32 0.0, %v1213
    %v1215 = vpop.f32.mrb[0].mxu0
    %1216 = vmatprep.mubr.bf16.mxu0 0
    %1217 = vmatmul.mubr.bf16.gmra.mrb[0].mxu0 %v190
    %v1218 = vpop.f32.mrb[0].mxu0
    %v1219 = vadd.f32 0.0, %v1218
    %v1220 = vpop.f32.mrb[0].mxu0
    %v1221 = vpop.f32.mrb[0].mxu0
    %v1222 = vadd.f32 0.0, %v1221
    %v1223 = vpop.f32.mrb[0].mxu0
    %1224 = vdwg.mxu0
    %s1225 = sld [smem:[#allocation8 + $0x80]]
    %v1226 = vmax.f32 %v1163, %v1179
    %v1227 = vmax.f32 %v1166, %v1182
    %v1228 = vmax.f32 %v1171, %v1187
    %v1229 = vmax.f32 %v1174, %v1190
    %v1230 = vmax.f32 %v1226, %v1195
    %v1231 = vmax.f32 %v1227, %v1198
    %v1232 = vmax.f32 %v1228, %v1203
    %v1233 = vmax.f32 %v1229, %v1206
    %v1234 = vmax.f32 %v1230, %v1211
    %v1235 = vmax.f32 %v1231, %v1214
    %v1236 = vmax.f32 %v1232, %v1219
    %v1237 = vmax.f32 %v1233, %v1222
    %v1238 = vmax.f32 %v1234, %v1235
    %v1239 = vmax.f32 %v1236, %v1237
    %v1240 = vmax.f32 %v1238, %v1239
    %v1241 = vrot.slane %v1240, 4
    %v1242 = vmax.f32 %v1240, %v1241
    %v1243 = vrot.slane %v1242, 2
    %v1244 = vmax.f32 %v1242, %v1243
    %v1245 = vrot.slane %v1244, 1
    %v1246 = vmax.f32 %v1244, %v1245
    %v1247 = vsub.f32 %v1163, %v1246
    %v1248 = vsub.f32 %v1166, %v1246
    %v1249 = vsub.f32 %v1171, %v1246
    %v1250 = vsub.f32 %v1174, %v1246
    %v1251 = vsub.f32 %v1179, %v1246
    %v1252 = vsub.f32 %v1182, %v1246
    %v1253 = vsub.f32 %v1187, %v1246
    %v1254 = vsub.f32 %v1190, %v1246
    %v1255 = vsub.f32 %v1195, %v1246
    %v1256 = vsub.f32 %v1198, %v1246
    %v1257 = vsub.f32 %v1203, %v1246
    %v1258 = vsub.f32 %v1206, %v1246
    %v1259 = vsub.f32 %v1211, %v1246
    %v1260 = vsub.f32 %v1214, %v1246
    %v1261 = vsub.f32 %v1219, %v1246
    %v1262 = vsub.f32 %v1222, %v1246
    %v1263 = vstv %s1225
    %v1264 = vmul.f32 %v1247, %v1263
    %v1265 = vmul.f32 %v1248, %v1263
    %v1266 = vmul.f32 %v1249, %v1263
    %v1267 = vmul.f32 %v1250, %v1263
    %v1268 = vmul.f32 %v1251, %v1263
    %v1269 = vmul.f32 %v1252, %v1263
    %v1270 = vmul.f32 %v1253, %v1263
    %v1271 = vmul.f32 %v1254, %v1263
    %v1272 = vmul.f32 %v1255, %v1263
    %v1273 = vmul.f32 %v1256, %v1263
    %v1274 = vmul.f32 %v1257, %v1263
    %v1275 = vmul.f32 %v1258, %v1263
    %v1276 = vmul.f32 %v1259, %v1263
    %v1277 = vmul.f32 %v1260, %v1263
    %v1278 = vmul.f32 %v1261, %v1263
    %v1279 = vmul.f32 %v1262, %v1263
    %v1280 = vmul.f32 %v1264, 1.442695
    %v1281 = vpow.pop %v1280
    %v1282 = vmul.f32 %v1265, 1.442695
    %v1283 = vpow.pop %v1282
    %v1284 = vmul.f32 %v1266, 1.442695
    %v1285 = vpow.pop %v1284
    %v1286 = vmul.f32 %v1267, 1.442695
    %v1287 = vpow.pop %v1286
    %v1288 = vmul.f32 %v1268, 1.442695
    %v1289 = vpow.pop %v1288
    %v1290 = vmul.f32 %v1269, 1.442695
    %v1291 = vpow.pop %v1290
    %v1292 = vmul.f32 %v1270, 1.442695
    %v1293 = vpow.pop %v1292
    %v1294 = vmul.f32 %v1271, 1.442695
    %v1295 = vpow.pop %v1294
    %v1296 = vmul.f32 %v1272, 1.442695
    %v1297 = vpow.pop %v1296
    %v1298 = vmul.f32 %v1273, 1.442695
    %v1299 = vpow.pop %v1298
    %v1300 = vmul.f32 %v1274, 1.442695
    %v1301 = vpow.pop %v1300
    %v1302 = vmul.f32 %v1275, 1.442695
    %v1303 = vpow.pop %v1302
    %v1304 = vmul.f32 %v1276, 1.442695
    %v1305 = vpow.pop %v1304
    %v1306 = vmul.f32 %v1277, 1.442695
    %v1307 = vpow.pop %v1306
    %v1308 = vmul.f32 %v1278, 1.442695
    %v1309 = vpow.pop %v1308
    %v1310 = vmul.f32 %v1279, 1.442695
    %v1311 = vpow.pop %v1310
    %v1312 = vmul.f32 %v1281, %v1163
    %v1313 = vmul.f32 %v1283, %v1166
    %v1314 = vmul.f32 %v1285, %v1171
    %v1315 = vmul.f32 %v1287, %v1174
    %v1316 = vmul.f32 %v1289, %v1179
    %v1317 = vmul.f32 %v1291, %v1182
    %v1318 = vmul.f32 %v1293, %v1187
    %v1319 = vmul.f32 %v1295, %v1190
    %v1320 = vmul.f32 %v1297, %v1195
    %v1321 = vmul.f32 %v1299, %v1198
    %v1322 = vmul.f32 %v1301, %v1203
    %v1323 = vmul.f32 %v1303, %v1206
    %v1324 = vmul.f32 %v1305, %v1211
    %v1325 = vmul.f32 %v1307, %v1214
    %v1326 = vmul.f32 %v1309, %v1219
    %v1327 = vmul.f32 %v1311, %v1222
    %v1328 = vpack.c.bf16 %v1313, %v1312
    %v1329 = vpack.c.bf16 %v1315, %v1314
    %v1330 = vpack.c.bf16 %v1317, %v1316
    %v1331 = vpack.c.bf16 %v1319, %v1318
    %v1332 = vpack.c.bf16 %v1321, %v1320
    %v1333 = vpack.c.bf16 %v1323, %v1322
    %v1334 = vpack.c.bf16 %v1325, %v1324
    %v1335 = vpack.c.bf16 %v1327, %v1326
    %v1336 = vpack.c.bf16 %v1283, %v1281
    %v1337 = vpack.c.bf16 %v1287, %v1285
    %v1338 = vpack.c.bf16 %v1291, %v1289
    %v1339 = vpack.c.bf16 %v1295, %v1293
    %v1340 = vpack.c.bf16 %v1299, %v1297
    %v1341 = vpack.c.bf16 %v1303, %v1301
    %v1342 = vpack.c.bf16 %v1307, %v1305
    %v1343 = vpack.c.bf16 %v1311, %v1309
    %1344 = vmatprep.subr.bf16.mxu0 %v1336
    %1345 = vmatpush1.bf16.msra.mxu0 %v1328
    %1346 = vmatprep.subr.bf16.mxu0 %v1337
    %1347 = vmatpush1.bf16.msra.mxu0 %v1329
    %1348 = vmatprep.subr.bf16.mxu0 %v1338
    %1349 = vmatpush1.bf16.msra.mxu0 %v1330
    %1350 = vmatprep.subr.bf16.mxu0 %v1339
    %1351 = vmatpush1.bf16.msra.mxu0 %v1331
    %1352 = vmatprep.subr.bf16.mxu0 %v1340
    %1353 = vmatpush1.bf16.msra.mxu0 %v1332
    %1354 = vmatprep.subr.bf16.mxu0 %v1341
    %1355 = vmatpush1.bf16.msra.mxu0 %v1333
    %1356 = vmatprep.subr.bf16.mxu0 %v1342
    %1357 = vmatpush1.bf16.msra.mxu0 %v1334
    %1358 = vmatprep.subr.bf16.mxu0 %v1343
    %1359 = vmatpush1.bf16.msra.mxu0 %v1335
    %1360 = vmatprep.subr.bf16.mxu0 0
    %1361 = vmatpush1.bf16.msra.mxu0 0
    %1362 = vmatprep.subr.bf16.mxu0 0
    %1363 = vmatpush1.bf16.msra.mxu0 0
    %1364 = vmatprep.subr.bf16.mxu0 0
    %1365 = vmatpush1.bf16.msra.mxu0 0
    %1366 = vmatprep.subr.bf16.mxu0 0
    %1367 = vmatpush1.bf16.msra.mxu0 0
    %1368 = vmatprep.subr.bf16.mxu0 0
    %1369 = vmatpush1.bf16.msra.mxu0 0
    %1370 = vmatprep.subr.bf16.mxu0 0
    %1371 = vmatpush1.bf16.msra.mxu0 0
    %1372 = vmatprep.subr.bf16.mxu0 0
    %1373 = vmatpush1.bf16.msra.mxu0 0
    %1374 = vmatprep.subr.bf16.mxu0 0
    %1375 = vmatpush1.bf16.msra.mxu0 0
    %1376 = vmatprep.mubr.bf16.mxu0 0
    %1377 = vmatmul.mubr.bf16.gmra.mrb[0].mxu0 %v424
    %v1378 = vpop.f32.mrb[0].mxu0
    %v1379 = vadd.f32 0.0, %v1378
    %v1380 = vpop.f32.mrb[0].mxu0
    %v1381 = vadd.f32 0.0, %v1380
    %v1382 = vpop.f32.mrb[0].mxu0
    %v1383 = vadd.f32 0.0, %v1382
    %v1384 = vpop.f32.mrb[0].mxu0
    %v1385 = vadd.f32 0.0, %v1384
    %1386 = vmatprep.mubr.bf16.mxu0 0
    %1387 = vmatmul.mubr.bf16.gmra.mrb[0].mxu0 %v425
    %v1388 = vpop.f32.mrb[0].mxu0
    %v1389 = vadd.f32 0.0, %v1388
    %v1390 = vpop.f32.mrb[0].mxu0
    %v1391 = vadd.f32 0.0, %v1390
    %v1392 = vpop.f32.mrb[0].mxu0
    %v1393 = vadd.f32 0.0, %v1392
    %v1394 = vpop.f32.mrb[0].mxu0
    %v1395 = vadd.f32 0.0, %v1394
    %1396 = vmatprep.mubr.bf16.mxu0 0
    %1397 = vmatmul.mubr.bf16.gmra.mrb[0].mxu0 %v426
    %v1398 = vpop.f32.mrb[0].mxu0
    %v1399 = vadd.f32 0.0, %v1398
    %v1400 = vpop.f32.mrb[0].mxu0
    %v1401 = vadd.f32 0.0, %v1400
    %v1402 = vpop.f32.mrb[0].mxu0
    %v1403 = vadd.f32 0.0, %v1402
    %v1404 = vpop.f32.mrb[0].mxu0
    %v1405 = vadd.f32 0.0, %v1404
    %1406 = vmatprep.mubr.bf16.mxu0 0
    %1407 = vmatmul.mubr.bf16.gmra.mrb[0].mxu0 %v427
    %v1408 = vpop.f32.mrb[0].mxu0
    %v1409 = vadd.f32 0.0, %v1408
    %v1410 = vpop.f32.mrb[0].mxu0
    %v1411 = vadd.f32 0.0, %v1410
    %v1412 = vpop.f32.mrb[0].mxu0
    %v1413 = vadd.f32 0.0, %v1412
    %v1414 = vpop.f32.mrb[0].mxu0
    %v1415 = vadd.f32 0.0, %v1414
    %1416 = vdwg.mxu0
    %vm1417 = vcmp.gt.f32.partialorder %v1381, 0.0
    %vm1418 = vcmp.gt.f32.partialorder %v1385, 0.0
    %vm1419 = vcmp.gt.f32.partialorder %v1391, 0.0
    %vm1420 = vcmp.gt.f32.partialorder %v1395, 0.0
    %vm1421 = vcmp.gt.f32.partialorder %v1401, 0.0
    %vm1422 = vcmp.gt.f32.partialorder %v1405, 0.0
    %vm1423 = vcmp.gt.f32.partialorder %v1411, 0.0
    %vm1424 = vcmp.gt.f32.partialorder %v1415, 0.0
    %v1425 = vsel %vm1417, %v1381, 1.0
    %v1426 = vsel %vm1418, %v1385, 1.0
    %v1427 = vsel %vm1419, %v1391, 1.0
    %v1428 = vsel %vm1420, %v1395, 1.0
    %v1429 = vsel %vm1421, %v1401, 1.0
    %v1430 = vsel %vm1422, %v1405, 1.0
    %v1431 = vsel %vm1423, %v1411, 1.0
    %v1432 = vsel %vm1424, %v1415, 1.0
    %v1433 = vrcp.pop %v1425
    %v1434 = vmul.f32 %v1379, %v1433
    %v1435 = vrcp.pop %v1426
    %v1436 = vmul.f32 %v1383, %v1435
    %v1437 = vrcp.pop %v1427
    %v1438 = vmul.f32 %v1389, %v1437
    %v1439 = vrcp.pop %v1428
    %v1440 = vmul.f32 %v1393, %v1439
    %v1441 = vrcp.pop %v1429
    %v1442 = vmul.f32 %v1399, %v1441
    %v1443 = vrcp.pop %v1430
    %v1444 = vmul.f32 %v1403, %v1443
    %v1445 = vrcp.pop %v1431
    %v1446 = vmul.f32 %v1409, %v1445
    %v1447 = vrcp.pop %v1432
    %v1448 = vmul.f32 %v1413, %v1447
    %v1449 = vsel %vm1417, %v1434, 0.0
    %v1450 = vsel %vm1418, %v1436, 0.0
    %v1451 = vsel %vm1419, %v1438, 0.0
    %v1452 = vsel %vm1420, %v1440, 0.0
    %v1453 = vsel %vm1421, %v1442, 0.0
    %v1454 = vsel %vm1422, %v1444, 0.0
    %v1455 = vsel %vm1423, %v1446, 0.0
    %v1456 = vsel %vm1424, %v1448, 0.0
    %v1457 = vadd.f32 %v1449, %v1100
    %v1458 = vadd.f32 %v1450, %v1101
    %v1459 = vadd.f32 %v1451, %v1102
    %v1460 = vadd.f32 %v1452, %v1103
    %v1461 = vadd.f32 %v1453, %v1104
    %v1462 = vadd.f32 %v1454, %v1105
    %v1463 = vadd.f32 %v1455, %v1106
    %v1464 = vadd.f32 %v1456, %v1107
    %s1465 = scalar_lea.vmem [#allocation2], 256
    %v1466 = vld [vmem:[%s1465] sm:$0xff]
    %v1467 = vld [vmem:[%s1465 + $0x8] sm:$0xff]
    %v1468 = vld [vmem:[%s1465 + $0x10] sm:$0xff]
    %v1469 = vld [vmem:[%s1465 + $0x18] sm:$0xff]
    %v1470 = vld [vmem:[%s1465 + $0x20] sm:$0xff]
    %v1471 = vld [vmem:[%s1465 + $0x28] sm:$0xff]
    %v1472 = vld [vmem:[%s1465 + $0x30] sm:$0xff]
    %v1473 = vld [vmem:[%s1465 + $0x38] sm:$0xff]
    %v1474 = vld [vmem:[%s1465 + $0x40] sm:$0xff]
    %v1475 = vld [vmem:[%s1465 + $0x48] sm:$0xff]
    %v1476 = vld [vmem:[%s1465 + $0x50] sm:$0xff]
    %v1477 = vld [vmem:[%s1465 + $0x58] sm:$0xff]
    %v1478 = vld [vmem:[%s1465 + $0x60] sm:$0xff]
    %v1479 = vld [vmem:[%s1465 + $0x68] sm:$0xff]
    %v1480 = vld [vmem:[%s1465 + $0x70] sm:$0xff]
    %v1481 = vld [vmem:[%s1465 + $0x78] sm:$0xff]
    %v1482 = vld [vmem:[%s1465 + $0x80] sm:$0xff]
    %v1483 = vld [vmem:[%s1465 + $0x88] sm:$0xff]
    %v1484 = vld [vmem:[%s1465 + $0x90] sm:$0xff]
    %v1485 = vld [vmem:[%s1465 + $0x98] sm:$0xff]
    %v1486 = vld [vmem:[%s1465 + $0xa0] sm:$0xff]
    %v1487 = vld [vmem:[%s1465 + $0xa8] sm:$0xff]
    %v1488 = vld [vmem:[%s1465 + $0xb0] sm:$0xff]
    %v1489 = vld [vmem:[%s1465 + $0xb8] sm:$0xff]
    %v1490 = vld [vmem:[%s1465 + $0xc0] sm:$0xff]
    %v1491 = vld [vmem:[%s1465 + $0xc8] sm:$0xff]
    %v1492 = vld [vmem:[%s1465 + $0xd0] sm:$0xff]
    %v1493 = vld [vmem:[%s1465 + $0xd8] sm:$0xff]
    %v1494 = vld [vmem:[%s1465 + $0xe0] sm:$0xff]
    %v1495 = vld [vmem:[%s1465 + $0xe8] sm:$0xff]
    %v1496 = vld [vmem:[%s1465 + $0xf0] sm:$0xff]
    %v1497 = vld [vmem:[%s1465 + $0xf8] sm:$0xff]
    %1498 = vmatprep.subr.mxu0 %v1467
    %1499 = vmatpush1.msra.mxu0 %v1466
    %1500 = vmatprep.subr.mxu0 %v1469
    %1501 = vmatpush1.msra.mxu0 %v1468
    %1502 = vmatprep.subr.mxu0 %v1471
    %1503 = vmatpush1.msra.mxu0 %v1470
    %1504 = vmatprep.subr.mxu0 %v1473
    %1505 = vmatpush1.msra.mxu0 %v1472
    %1506 = vmatprep.subr.mxu0 %v1475
    %1507 = vmatpush1.msra.mxu0 %v1474
    %1508 = vmatprep.subr.mxu0 %v1477
    %1509 = vmatpush1.msra.mxu0 %v1476
    %1510 = vmatprep.subr.mxu0 %v1479
    %1511 = vmatpush1.msra.mxu0 %v1478
    %1512 = vmatprep.subr.mxu0 %v1481
    %1513 = vmatpush1.msra.mxu0 %v1480
    %1514 = vmatprep.subr.mxu0 %v1483
    %1515 = vmatpush1.msra.mxu0 %v1482
    %1516 = vmatprep.subr.mxu0 %v1485
    %1517 = vmatpush1.msra.mxu0 %v1484
    %1518 = vmatprep.subr.mxu0 %v1487
    %1519 = vmatpush1.msra.mxu0 %v1486
    %1520 = vmatprep.subr.mxu0 %v1489
    %1521 = vmatpush1.msra.mxu0 %v1488
    %1522 = vmatprep.subr.mxu0 %v1491
    %1523 = vmatpush1.msra.mxu0 %v1490
    %1524 = vmatprep.subr.mxu0 %v1493
    %1525 = vmatpush1.msra.mxu0 %v1492
    %1526 = vmatprep.subr.mxu0 %v1495
    %1527 = vmatpush1.msra.mxu0 %v1494
    %1528 = vmatprep.subr.mxu0 %v1497
    %1529 = vmatpush1.msra.mxu0 %v1496
    %1530 = vmatprep.subr.mxu0 0.0
    %1531 = vmatpush1.msra.mxu0 0.0
    %1532 = vmatprep.subr.mxu0 0.0
    %1533 = vmatpush1.msra.mxu0 0.0
    %1534 = vmatprep.subr.mxu0 0.0
    %1535 = vmatpush1.msra.mxu0 0.0
    %1536 = vmatprep.subr.mxu0 0.0
    %1537 = vmatpush1.msra.mxu0 0.0
    %1538 = vmatprep.subr.mxu0 0.0
    %1539 = vmatpush1.msra.mxu0 0.0
    %1540 = vmatprep.subr.mxu0 0.0
    %1541 = vmatpush1.msra.mxu0 0.0
    %1542 = vmatprep.subr.mxu0 0.0
    %1543 = vmatpush1.msra.mxu0 0.0
    %1544 = vmatprep.subr.mxu0 0.0
    %1545 = vmatpush1.msra.mxu0 0.0
    %1546 = vmatprep.subr.mxu0 0.0
    %1547 = vmatpush1.msra.mxu0 0.0
    %1548 = vmatprep.subr.mxu0 0.0
    %1549 = vmatpush1.msra.mxu0 0.0
    %1550 = vmatprep.subr.mxu0 0.0
    %1551 = vmatpush1.msra.mxu0 0.0
    %1552 = vmatprep.subr.mxu0 0.0
    %1553 = vmatpush1.msra.mxu0 0.0
    %1554 = vmatprep.subr.mxu0 0.0
    %1555 = vmatpush1.msra.mxu0 0.0
    %1556 = vmatprep.subr.mxu0 0.0
    %1557 = vmatpush1.msra.mxu0 0.0
    %1558 = vmatprep.subr.mxu0 0.0
    %1559 = vmatpush1.msra.mxu0 0.0
    %1560 = vmatprep.subr.mxu0 0.0
    %1561 = vmatpush1.msra.mxu0 0.0
    %1562 = vmatprep.mubr.f32.mxu0 0.0
    %1563 = vmatmul.mubr.f32.gmra.mrb[0].mxu0 %v1457
    %v1564 = vpop.f32.mrb[0].mxu0
    %v1565 = vadd.f32 0.0, %v1564
    %v1566 = vpop.f32.mrb[0].mxu0
    %v1567 = vadd.f32 0.0, %v1566
    %1568 = vmatprep.mubr.f32.mxu0 0.0
    %1569 = vmatmul.mubr.f32.gmra.mrb[0].mxu0 %v1458
    %v1570 = vpop.f32.mrb[0].mxu0
    %v1571 = vadd.f32 0.0, %v1570
    %v1572 = vpop.f32.mrb[0].mxu0
    %v1573 = vadd.f32 0.0, %v1572
    %1574 = vmatprep.mubr.f32.mxu0 0.0
    %1575 = vmatmul.mubr.f32.gmra.mrb[0].mxu0 %v1459
    %v1576 = vpop.f32.mrb[0].mxu0
    %v1577 = vadd.f32 0.0, %v1576
    %v1578 = vpop.f32.mrb[0].mxu0
    %v1579 = vadd.f32 0.0, %v1578
    %1580 = vmatprep.mubr.f32.mxu0 0.0
    %1581 = vmatmul.mubr.f32.gmra.mrb[0].mxu0 %v1460
    %v1582 = vpop.f32.mrb[0].mxu0
    %v1583 = vadd.f32 0.0, %v1582
    %v1584 = vpop.f32.mrb[0].mxu0
    %v1585 = vadd.f32 0.0, %v1584
    %1586 = vmatprep.mubr.f32.mxu0 0.0
    %1587 = vmatmul.mubr.f32.gmra.mrb[0].mxu0 %v1461
    %v1588 = vpop.f32.mrb[0].mxu0
    %v1589 = vadd.f32 0.0, %v1588
    %v1590 = vpop.f32.mrb[0].mxu0
    %v1591 = vadd.f32 0.0, %v1590
    %1592 = vmatprep.mubr.f32.mxu0 0.0
    %1593 = vmatmul.mubr.f32.gmra.mrb[0].mxu0 %v1462
    %v1594 = vpop.f32.mrb[0].mxu0
    %v1595 = vadd.f32 0.0, %v1594
    %v1596 = vpop.f32.mrb[0].mxu0
    %v1597 = vadd.f32 0.0, %v1596
    %1598 = vmatprep.mubr.f32.mxu0 0.0
    %1599 = vmatmul.mubr.f32.gmra.mrb[0].mxu0 %v1463
    %v1600 = vpop.f32.mrb[0].mxu0
    %v1601 = vadd.f32 0.0, %v1600
    %v1602 = vpop.f32.mrb[0].mxu0
    %v1603 = vadd.f32 0.0, %v1602
    %1604 = vmatprep.mubr.f32.mxu0 0.0
    %1605 = vmatmul.mubr.f32.gmra.mrb[0].mxu0 %v1464
    %v1606 = vpop.f32.mrb[0].mxu0
    %v1607 = vadd.f32 0.0, %v1606
    %v1608 = vpop.f32.mrb[0].mxu0
    %v1609 = vadd.f32 0.0, %v1608
    %1610 = vdwg.mxu0
    %v1611 = vadd.f32 %v1565, %v1571
    %v1612 = vadd.f32 %v1611, %v1577
    %v1613 = vadd.f32 %v1612, %v1583
    %v1614 = vadd.f32 %v1613, %v1589
    %v1615 = vadd.f32 %v1614, %v1595
    %v1616 = vadd.f32 %v1615, %v1601
    %v1617 = vadd.f32 %v1616, %v1607
    %v1618 = vrot.slane %v1617, 4
    %v1619 = vadd.f32 %v1617, %v1618
    %v1620 = vrot.slane %v1619, 2
    %v1621 = vadd.f32 %v1619, %v1620
    %v1622 = vrot.slane %v1621, 1
    %v1623 = vadd.f32 %v1621, %v1622
    %v1624 = vadd.f32 %v1567, %v1573
    %v1625 = vadd.f32 %v1624, %v1579
    %v1626 = vadd.f32 %v1625, %v1585
    %v1627 = vadd.f32 %v1626, %v1591
    %v1628 = vadd.f32 %v1627, %v1597
    %v1629 = vadd.f32 %v1628, %v1603
    %v1630 = vadd.f32 %v1629, %v1609
    %v1631 = vrot.slane %v1630, 4
    %v1632 = vadd.f32 %v1630, %v1631
    %v1633 = vrot.slane %v1632, 2
    %v1634 = vadd.f32 %v1632, %v1633
    %v1635 = vrot.slane %v1634, 1
    %v1636 = vadd.f32 %v1634, %v1635
    %v1637 = vmul.f32 %v1623, %v724
    %v1638 = vmul.f32 %v1636, %v724
    %v1639 = vsub.f32 %v1565, %v1637
    %v1640 = vsub.f32 %v1567, %v1638
    %v1641 = vsub.f32 %v1571, %v1637
    %v1642 = vsub.f32 %v1573, %v1638
    %v1643 = vsub.f32 %v1577, %v1637
    %v1644 = vsub.f32 %v1579, %v1638
    %v1645 = vsub.f32 %v1583, %v1637
    %v1646 = vsub.f32 %v1585, %v1638
    %v1647 = vsub.f32 %v1589, %v1637
    %v1648 = vsub.f32 %v1591, %v1638
    %v1649 = vsub.f32 %v1595, %v1637
    %v1650 = vsub.f32 %v1597, %v1638
    %v1651 = vsub.f32 %v1601, %v1637
    %v1652 = vsub.f32 %v1603, %v1638
    %v1653 = vsub.f32 %v1607, %v1637
    %v1654 = vsub.f32 %v1609, %v1638
    %v1655 = vmul.f32 %v1639, %v1639
    %v1656 = vmul.f32 %v1640, %v1640
    %v1657 = vmul.f32 %v1641, %v1641
    %v1658 = vmul.f32 %v1642, %v1642
    %v1659 = vmul.f32 %v1643, %v1643
    %v1660 = vmul.f32 %v1644, %v1644
    %v1661 = vmul.f32 %v1645, %v1645
    %v1662 = vmul.f32 %v1646, %v1646
    %v1663 = vmul.f32 %v1647, %v1647
    %v1664 = vmul.f32 %v1648, %v1648
    %v1665 = vmul.f32 %v1649, %v1649
    %v1666 = vmul.f32 %v1650, %v1650
    %v1667 = vmul.f32 %v1651, %v1651
    %v1668 = vmul.f32 %v1652, %v1652
    %v1669 = vmul.f32 %v1653, %v1653
    %v1670 = vmul.f32 %v1654, %v1654
    %v1671 = vadd.f32 %v1655, %v1657
    %v1672 = vadd.f32 %v1671, %v1659
    %v1673 = vadd.f32 %v1672, %v1661
    %v1674 = vadd.f32 %v1673, %v1663
    %v1675 = vadd.f32 %v1674, %v1665
    %v1676 = vadd.f32 %v1675, %v1667
    %v1677 = vadd.f32 %v1676, %v1669
    %v1678 = vrot.slane %v1677, 4
    %v1679 = vadd.f32 %v1677, %v1678
    %v1680 = vrot.slane %v1679, 2
    %v1681 = vadd.f32 %v1679, %v1680
    %v1682 = vrot.slane %v1681, 1
    %v1683 = vadd.f32 %v1681, %v1682
    %v1684 = vadd.f32 %v1656, %v1658
    %v1685 = vadd.f32 %v1684, %v1660
    %v1686 = vadd.f32 %v1685, %v1662
    %v1687 = vadd.f32 %v1686, %v1664
    %v1688 = vadd.f32 %v1687, %v1666
    %v1689 = vadd.f32 %v1688, %v1668
    %v1690 = vadd.f32 %v1689, %v1670
    %v1691 = vrot.slane %v1690, 4
    %v1692 = vadd.f32 %v1690, %v1691
    %v1693 = vrot.slane %v1692, 2
    %v1694 = vadd.f32 %v1692, %v1693
    %v1695 = vrot.slane %v1694, 1
    %v1696 = vadd.f32 %v1694, %v1695
    %v1697 = vmul.f32 %v1683, %v724
    %v1698 = vmul.f32 %v1696, %v724
    %v1699 = vadd.f32 %v1697, 1e-05
    %v1700 = vadd.f32 %v1698, 1e-05
    %v1701 = vrsqrt.pop %v1699
    %v1702 = vrsqrt.pop %v1700
    %v1703 = vmul.f32 %v1639, %v1701
    %v1704 = vmul.f32 %v1640, %v1702
    %v1705 = vmul.f32 %v1641, %v1701
    %v1706 = vmul.f32 %v1642, %v1702
    %v1707 = vmul.f32 %v1643, %v1701
    %v1708 = vmul.f32 %v1644, %v1702
    %v1709 = vmul.f32 %v1645, %v1701
    %v1710 = vmul.f32 %v1646, %v1702
    %v1711 = vmul.f32 %v1647, %v1701
    %v1712 = vmul.f32 %v1648, %v1702
    %v1713 = vmul.f32 %v1649, %v1701
    %v1714 = vmul.f32 %v1650, %v1702
    %v1715 = vmul.f32 %v1651, %v1701
    %v1716 = vmul.f32 %v1652, %v1702
    %v1717 = vmul.f32 %v1653, %v1701
    %v1718 = vmul.f32 %v1654, %v1702
    %s1719 = scalar_lea.vmem %s4, 2
    %v1720 = vld [vmem:[%s1719] sm:$0x3]
    %v1722 = vlaneseq
    %v1723 = vshrl.u32 %v1722, 7
    %v1724 = vsub.s32 0, %v1723
    %v1725 = vrot.slane %v1720, %v1724
    %v1726 = vlaneseq
    %v1727 = vshrl.u32 %v1726, 7
    %v1728 = vsub.s32 1, %v1727
    %v1729 = vrot.slane %v1720, %v1728
    %v1732 = vmul.f32 %v1703, %v1725
    %v1733 = vmul.f32 %v1704, %v1729
    %v1734 = vmul.f32 %v1705, %v1725
    %v1735 = vmul.f32 %v1706, %v1729
    %v1736 = vmul.f32 %v1707, %v1725
    %v1737 = vmul.f32 %v1708, %v1729
    %v1738 = vmul.f32 %v1709, %v1725
    %v1739 = vmul.f32 %v1710, %v1729
    %v1740 = vmul.f32 %v1711, %v1725
    %v1741 = vmul.f32 %v1712, %v1729
    %v1742 = vmul.f32 %v1713, %v1725
    %v1743 = vmul.f32 %v1714, %v1729
    %v1744 = vmul.f32 %v1715, %v1725
    %v1745 = vmul.f32 %v1716, %v1729
    %v1746 = vmul.f32 %v1717, %v1725
    %v1747 = vmul.f32 %v1718, %v1729
    %s1748 = scalar_lea.vmem %s5, 2
    %v1749 = vld [vmem:[%s1748] sm:$0x3]
    %v1751 = vlaneseq
    %v1752 = vshrl.u32 %v1751, 7
    %v1753 = vsub.s32 0, %v1752
    %v1754 = vrot.slane %v1749, %v1753
    %v1755 = vlaneseq
    %v1756 = vshrl.u32 %v1755, 7
    %v1757 = vsub.s32 1, %v1756
    %v1758 = vrot.slane %v1749, %v1757
    %v1761 = vadd.f32 %v1732, %v1754
    %v1762 = vadd.f32 %v1733, %v1758
    %v1763 = vadd.f32 %v1734, %v1754
    %v1764 = vadd.f32 %v1735, %v1758
    %v1765 = vadd.f32 %v1736, %v1754
    %v1766 = vadd.f32 %v1737, %v1758
    %v1767 = vadd.f32 %v1738, %v1754
    %v1768 = vadd.f32 %v1739, %v1758
    %v1769 = vadd.f32 %v1740, %v1754
    %v1770 = vadd.f32 %v1741, %v1758
    %v1771 = vadd.f32 %v1742, %v1754
    %v1772 = vadd.f32 %v1743, %v1758
    %v1773 = vadd.f32 %v1744, %v1754
    %v1774 = vadd.f32 %v1745, %v1758
    %v1775 = vadd.f32 %v1746, %v1754
    %v1776 = vadd.f32 %v1747, %v1758
    %v1777 = vmax.f32 %v1761, 0.0
    %v1778 = vmax.f32 %v1762, 0.0
    %v1779 = vmax.f32 %v1763, 0.0
    %v1780 = vmax.f32 %v1764, 0.0
    %v1781 = vmax.f32 %v1765, 0.0
    %v1782 = vmax.f32 %v1766, 0.0
    %v1783 = vmax.f32 %v1767, 0.0
    %v1784 = vmax.f32 %v1768, 0.0
    %v1785 = vmax.f32 %v1769, 0.0
    %v1786 = vmax.f32 %v1770, 0.0
    %v1787 = vmax.f32 %v1771, 0.0
    %v1788 = vmax.f32 %v1772, 0.0
    %v1789 = vmax.f32 %v1773, 0.0
    %v1790 = vmax.f32 %v1774, 0.0
    %v1791 = vmax.f32 %v1775, 0.0
    %v1792 = vmax.f32 %v1776, 0.0
    %s1793 = scalar_lea.vmem [#allocation6], 256
    %v1794 = vld [vmem:[%s1793] sm:$0xff]
    %v1795 = vld [vmem:[%s1793 + $0x8] sm:$0xff]
    %v1796 = vld [vmem:[%s1793 + $0x10] sm:$0xff]
    %v1797 = vld [vmem:[%s1793 + $0x18] sm:$0xff]
    %v1798 = vld [vmem:[%s1793 + $0x20] sm:$0xff]
    %v1799 = vld [vmem:[%s1793 + $0x28] sm:$0xff]
    %v1800 = vld [vmem:[%s1793 + $0x30] sm:$0xff]
    %v1801 = vld [vmem:[%s1793 + $0x38] sm:$0xff]
    %v1802 = vld [vmem:[%s1793 + $0x40] sm:$0xff]
    %v1803 = vld [vmem:[%s1793 + $0x48] sm:$0xff]
    %v1804 = vld [vmem:[%s1793 + $0x50] sm:$0xff]
    %v1805 = vld [vmem:[%s1793 + $0x58] sm:$0xff]
    %v1806 = vld [vmem:[%s1793 + $0x60] sm:$0xff]
    %v1807 = vld [vmem:[%s1793 + $0x68] sm:$0xff]
    %v1808 = vld [vmem:[%s1793 + $0x70] sm:$0xff]
    %v1809 = vld [vmem:[%s1793 + $0x78] sm:$0xff]
    %v1810 = vld [vmem:[%s1793 + $0x80] sm:$0xff]
    %v1811 = vld [vmem:[%s1793 + $0x88] sm:$0xff]
    %v1812 = vld [vmem:[%s1793 + $0x90] sm:$0xff]
    %v1813 = vld [vmem:[%s1793 + $0x98] sm:$0xff]
    %v1814 = vld [vmem:[%s1793 + $0xa0] sm:$0xff]
    %v1815 = vld [vmem:[%s1793 + $0xa8] sm:$0xff]
    %v1816 = vld [vmem:[%s1793 + $0xb0] sm:$0xff]
    %v1817 = vld [vmem:[%s1793 + $0xb8] sm:$0xff]
    %v1818 = vld [vmem:[%s1793 + $0xc0] sm:$0xff]
    %v1819 = vld [vmem:[%s1793 + $0xc8] sm:$0xff]
    %v1820 = vld [vmem:[%s1793 + $0xd0] sm:$0xff]
    %v1821 = vld [vmem:[%s1793 + $0xd8] sm:$0xff]
    %v1822 = vld [vmem:[%s1793 + $0xe0] sm:$0xff]
    %v1823 = vld [vmem:[%s1793 + $0xe8] sm:$0xff]
    %v1824 = vld [vmem:[%s1793 + $0xf0] sm:$0xff]
    %v1825 = vld [vmem:[%s1793 + $0xf8] sm:$0xff]
    %s1826 = scalar_lea.vmem %s7, 1
    %v1827 = vld [vmem:[%s1826] sm:$0x1]
    %v1829 = vlaneseq
    %v1830 = vshrl.u32 %v1829, 7
    %v1831 = vsub.s32 0, %v1830
    %v1832 = vrot.slane %v1827, %v1831
    %1834 = vmatprep.subr.mxu0 0.0
    %1835 = vmatpush1.msra.mxu0 %v1794
    %1836 = vmatprep.subr.mxu0 0.0
    %1837 = vmatpush1.msra.mxu0 %v1795
    %1838 = vmatprep.subr.mxu0 0.0
    %1839 = vmatpush1.msra.mxu0 %v1796
    %1840 = vmatprep.subr.mxu0 0.0
    %1841 = vmatpush1.msra.mxu0 %v1797
    %1842 = vmatprep.subr.mxu0 0.0
    %1843 = vmatpush1.msra.mxu0 %v1798
    %1844 = vmatprep.subr.mxu0 0.0
    %1845 = vmatpush1.msra.mxu0 %v1799
    %1846 = vmatprep.subr.mxu0 0.0
    %1847 = vmatpush1.msra.mxu0 %v1800
    %1848 = vmatprep.subr.mxu0 0.0
    %1849 = vmatpush1.msra.mxu0 %v1801
    %1850 = vmatprep.subr.mxu0 0.0
    %1851 = vmatpush1.msra.mxu0 %v1802
    %1852 = vmatprep.subr.mxu0 0.0
    %1853 = vmatpush1.msra.mxu0 %v1803
    %1854 = vmatprep.subr.mxu0 0.0
    %1855 = vmatpush1.msra.mxu0 %v1804
    %1856 = vmatprep.subr.mxu0 0.0
    %1857 = vmatpush1.msra.mxu0 %v1805
    %1858 = vmatprep.subr.mxu0 0.0
    %1859 = vmatpush1.msra.mxu0 %v1806
    %1860 = vmatprep.subr.mxu0 0.0
    %1861 = vmatpush1.msra.mxu0 %v1807
    %1862 = vmatprep.subr.mxu0 0.0
    %1863 = vmatpush1.msra.mxu0 %v1808
    %1864 = vmatprep.subr.mxu0 0.0
    %1865 = vmatpush1.msra.mxu0 %v1809
    %1866 = vmatprep.subr.mxu0 0.0
    %1867 = vmatpush1.msra.mxu0 %v1810
    %1868 = vmatprep.subr.mxu0 0.0
    %1869 = vmatpush1.msra.mxu0 %v1811
    %1870 = vmatprep.subr.mxu0 0.0
    %1871 = vmatpush1.msra.mxu0 %v1812
    %1872 = vmatprep.subr.mxu0 0.0
    %1873 = vmatpush1.msra.mxu0 %v1813
    %1874 = vmatprep.subr.mxu0 0.0
    %1875 = vmatpush1.msra.mxu0 %v1814
    %1876 = vmatprep.subr.mxu0 0.0
    %1877 = vmatpush1.msra.mxu0 %v1815
    %1878 = vmatprep.subr.mxu0 0.0
    %1879 = vmatpush1.msra.mxu0 %v1816
    %1880 = vmatprep.subr.mxu0 0.0
    %1881 = vmatpush1.msra.mxu0 %v1817
    %1882 = vmatprep.subr.mxu0 0.0
    %1883 = vmatpush1.msra.mxu0 %v1818
    %1884 = vmatprep.subr.mxu0 0.0
    %1885 = vmatpush1.msra.mxu0 %v1819
    %1886 = vmatprep.subr.mxu0 0.0
    %1887 = vmatpush1.msra.mxu0 %v1820
    %1888 = vmatprep.subr.mxu0 0.0
    %1889 = vmatpush1.msra.mxu0 %v1821
    %1890 = vmatprep.subr.mxu0 0.0
    %1891 = vmatpush1.msra.mxu0 %v1822
    %1892 = vmatprep.subr.mxu0 0.0
    %1893 = vmatpush1.msra.mxu0 %v1823
    %1894 = vmatprep.subr.mxu0 0.0
    %1895 = vmatpush1.msra.mxu0 %v1824
    %1896 = vmatprep.subr.mxu0 0.0
    %1897 = vmatpush1.msra.mxu0 %v1825
    %1898 = vmatprep.mubr.f32.mxu0 %v1778
    %1899 = vmatmul.mubr.f32.gmra.mrb[0].mxu0 %v1777
    %v1900 = vpop.f32.mrb[0].mxu0
    %v1901 = vadd.f32 %v1832, %v1900
    %v1902 = vpop.f32.mrb[0].mxu0
    %1903 = vmatprep.mubr.f32.mxu0 %v1780
    %1904 = vmatmul.mubr.f32.gmra.mrb[0].mxu0 %v1779
    %v1905 = vpop.f32.mrb[0].mxu0
    %v1906 = vadd.f32 %v1832, %v1905
    %v1907 = vpop.f32.mrb[0].mxu0
    %1908 = vmatprep.mubr.f32.mxu0 %v1782
    %1909 = vmatmul.mubr.f32.gmra.mrb[0].mxu0 %v1781
    %v1910 = vpop.f32.mrb[0].mxu0
    %v1911 = vadd.f32 %v1832, %v1910
    %v1912 = vpop.f32.mrb[0].mxu0
    %1913 = vmatprep.mubr.f32.mxu0 %v1784
    %1914 = vmatmul.mubr.f32.gmra.mrb[0].mxu0 %v1783
    %v1915 = vpop.f32.mrb[0].mxu0
    %v1916 = vadd.f32 %v1832, %v1915
    %v1917 = vpop.f32.mrb[0].mxu0
    %1918 = vmatprep.mubr.f32.mxu0 %v1786
    %1919 = vmatmul.mubr.f32.gmra.mrb[0].mxu0 %v1785
    %v1920 = vpop.f32.mrb[0].mxu0
    %v1921 = vadd.f32 %v1832, %v1920
    %v1922 = vpop.f32.mrb[0].mxu0
    %1923 = vmatprep.mubr.f32.mxu0 %v1788
    %1924 = vmatmul.mubr.f32.gmra.mrb[0].mxu0 %v1787
    %v1925 = vpop.f32.mrb[0].mxu0
    %v1926 = vadd.f32 %v1832, %v1925
    %v1927 = vpop.f32.mrb[0].mxu0
    %1928 = vmatprep.mubr.f32.mxu0 %v1790
    %1929 = vmatmul.mubr.f32.gmra.mrb[0].mxu0 %v1789
    %v1930 = vpop.f32.mrb[0].mxu0
    %v1931 = vadd.f32 %v1832, %v1930
    %v1932 = vpop.f32.mrb[0].mxu0
    %1933 = vmatprep.mubr.f32.mxu0 %v1792
    %1934 = vmatmul.mubr.f32.gmra.mrb[0].mxu0 %v1791
    %v1935 = vpop.f32.mrb[0].mxu0
    %v1936 = vadd.f32 %v1832, %v1935
    %v1937 = vpop.f32.mrb[0].mxu0
    %1938 = vdwg.mxu0
    %v1939 = vadd.f32 %v1901, %v1906
    %v1940 = vadd.f32 %v1939, %v1911
    %v1941 = vadd.f32 %v1940, %v1916
    %v1942 = vadd.f32 %v1941, %v1921
    %v1943 = vadd.f32 %v1942, %v1926
    %v1944 = vadd.f32 %v1943, %v1931
    %v1945 = vadd.f32 %v1944, %v1936
    %v1946 = vrot.slane %v1945, 4
    %v1947 = vadd.f32 %v1945, %v1946
    %v1948 = vrot.slane %v1947, 2
    %v1949 = vadd.f32 %v1947, %v1948
    %v1950 = vrot.slane %v1949, 1
    %v1951 = vadd.f32 %v1949, %v1950
    %v1952 = vmul.f32 %v1951, %v724
    %v1953 = vsub.f32 %v1901, %v1952
    %v1954 = vsub.f32 %v1906, %v1952
    %v1955 = vsub.f32 %v1911, %v1952
    %v1956 = vsub.f32 %v1916, %v1952
    %v1957 = vsub.f32 %v1921, %v1952
    %v1958 = vsub.f32 %v1926, %v1952
    %v1959 = vsub.f32 %v1931, %v1952
    %v1960 = vsub.f32 %v1936, %v1952
    %v1961 = vmul.f32 %v1953, %v1953
    %v1962 = vmul.f32 %v1954, %v1954
    %v1963 = vmul.f32 %v1955, %v1955
    %v1964 = vmul.f32 %v1956, %v1956
    %v1965 = vmul.f32 %v1957, %v1957
    %v1966 = vmul.f32 %v1958, %v1958
    %v1967 = vmul.f32 %v1959, %v1959
    %v1968 = vmul.f32 %v1960, %v1960
    %1969 = vadd.xlane.f32.xlu0 %v1961
    %v1970 = vpop.xlane.xlu0 %1969
    %1971 = vadd.xlane.f32.xlu0 %v1962
    %v1972 = vpop.xlane.xlu0 %1971
    %1973 = vadd.xlane.f32.xlu0 %v1963
    %v1974 = vpop.xlane.xlu0 %1973
    %1975 = vadd.xlane.f32.xlu0 %v1964
    %v1976 = vpop.xlane.xlu0 %1975
    %1977 = vadd.xlane.f32.xlu0 %v1965
    %v1978 = vpop.xlane.xlu0 %1977
    %1979 = vadd.xlane.f32.xlu0 %v1966
    %v1980 = vpop.xlane.xlu0 %1979
    %1981 = vadd.xlane.f32.xlu0 %v1967
    %v1982 = vpop.xlane.xlu0 %1981
    %1983 = vadd.xlane.f32.xlu0 %v1968
    %v1984 = vpop.xlane.xlu0 %1983
    %v1985 = vadd.f32 %v1970, %v1972
    %v1986 = vadd.f32 %v1985, %v1974
    %v1987 = vadd.f32 %v1986, %v1976
    %v1988 = vadd.f32 %v1987, %v1978
    %v1989 = vadd.f32 %v1988, %v1980
    %v1990 = vadd.f32 %v1989, %v1982
    %v1991 = vadd.f32 %v1990, %v1984
    %v1992 = vrot.slane %v1991, 4
    %v1993 = vadd.f32 %v1991, %v1992
    %v1994 = vrot.slane %v1993, 2
    %v1995 = vadd.f32 %v1993, %v1994
    %v1996 = vrot.slane %v1995, 1
    %v1997 = vadd.f32 %v1995, %v1996
    %v1998 = vmul.f32 %v1997, %v724
    %v1999 = vadd.f32 %v1998, 1e-05
    %v2000 = vrsqrt.pop %v1999
    %v2001 = vmul.f32 %v1999, %v2000
    %vm2002 = vcmp.eq.f32.partialorder %v1999, inf
    %v2003 = vsel %vm2002, %v1999, %v2001
    %vm2004 = vcmp.eq.f32.partialorder %v1999, 0.0
    %v2005 = vand.u32 %v1999, 2147483648
    %v2006 = vsel %vm2004, %v2005, %v2003
    %v2007 = vrcp.pop %v2006
    %v2008 = vmul.f32 %v1953, %v2007
    %v2009 = vmul.f32 %v1954, %v2007
    %v2010 = vmul.f32 %v1955, %v2007
    %v2011 = vmul.f32 %v1956, %v2007
    %v2012 = vmul.f32 %v1957, %v2007
    %v2013 = vmul.f32 %v1958, %v2007
    %v2014 = vmul.f32 %v1959, %v2007
    %v2015 = vmul.f32 %v1960, %v2007
    %v2016 = vmax.f32 %v2008, 0.0
    %v2017 = vmax.f32 %v2009, 0.0
    %v2018 = vmax.f32 %v2010, 0.0
    %v2019 = vmax.f32 %v2011, 0.0
    %v2020 = vmax.f32 %v2012, 0.0
    %v2021 = vmax.f32 %v2013, 0.0
    %v2022 = vmax.f32 %v2014, 0.0
    %v2023 = vmax.f32 %v2015, 0.0
    %v2024 = vadd.f32 %v2016, %v1100
    %v2025 = vadd.f32 %v2017, %v1101
    %v2026 = vadd.f32 %v2018, %v1102
    %v2027 = vadd.f32 %v2019, %v1103
    %v2028 = vadd.f32 %v2020, %v1104
    %v2029 = vadd.f32 %v2021, %v1105
    %v2030 = vadd.f32 %v2022, %v1106
    %v2031 = vadd.f32 %v2023, %v1107
    %v2032 = vmax.f32 %v2024, 0.0
    %v2033 = vmax.f32 %v2025, 0.0
    %v2034 = vmax.f32 %v2026, 0.0
    %v2035 = vmax.f32 %v2027, 0.0
    %v2036 = vmax.f32 %v2028, 0.0
    %v2037 = vmax.f32 %v2029, 0.0
    %v2038 = vmax.f32 %v2030, 0.0
    %v2039 = vmax.f32 %v2031, 0.0
    %v2040 = vadd.f32 %v2032, 1e-07
    %v2041 = vadd.f32 %v2033, 1e-07
    %v2042 = vadd.f32 %v2034, 1e-07
    %v2043 = vadd.f32 %v2035, 1e-07
    %v2044 = vadd.f32 %v2036, 1e-07
    %v2045 = vadd.f32 %v2037, 1e-07
    %v2046 = vadd.f32 %v2038, 1e-07
    %v2047 = vadd.f32 %v2039, 1e-07
    %v2048 = vpack.c.bf16 %v2041, %v2040
    %v2049 = vpack.c.bf16 %v2043, %v2042
    %v2050 = vpack.c.bf16 %v2045, %v2044
    %v2051 = vpack.c.bf16 %v2047, %v2046
    %2052 = vmatprep.subr.bf16.mxu0 0
    %2053 = vmatpush1.bf16.msra.mxu0 %v2048
    %2054 = vmatprep.subr.bf16.mxu0 0
    %2055 = vmatpush1.bf16.msra.mxu0 %v2049
    %2056 = vmatprep.subr.bf16.mxu0 0
    %2057 = vmatpush1.bf16.msra.mxu0 %v2050
    %2058 = vmatprep.subr.bf16.mxu0 0
    %2059 = vmatpush1.bf16.msra.mxu0 %v2051
    %2060 = vmatprep.subr.bf16.mxu0 0
    %2061 = vmatpush1.bf16.msra.mxu0 0
    %2062 = vmatprep.subr.bf16.mxu0 0
    %2063 = vmatpush1.bf16.msra.mxu0 0
    %2064 = vmatprep.subr.bf16.mxu0 0
    %2065 = vmatpush1.bf16.msra.mxu0 0
    %2066 = vmatprep.subr.bf16.mxu0 0
    %2067 = vmatpush1.bf16.msra.mxu0 0
    %2068 = vmatprep.subr.bf16.mxu0 0
    %2069 = vmatpush1.bf16.msra.mxu0 0
    %2070 = vmatprep.subr.bf16.mxu0 0
    %2071 = vmatpush1.bf16.msra.mxu0 0
    %2072 = vmatprep.subr.bf16.mxu0 0
    %2073 = vmatpush1.bf16.msra.mxu0 0
    %2074 = vmatprep.subr.bf16.mxu0 0
    %2075 = vmatpush1.bf16.msra.mxu0 0
    %2076 = vmatprep.subr.bf16.mxu0 0
    %2077 = vmatpush1.bf16.msra.mxu0 0
    %2078 = vmatprep.subr.bf16.mxu0 0
    %2079 = vmatpush1.bf16.msra.mxu0 0
    %2080 = vmatprep.subr.bf16.mxu0 0
    %2081 = vmatpush1.bf16.msra.mxu0 0
    %2082 = vmatprep.subr.bf16.mxu0 0
    %2083 = vmatpush1.bf16.msra.mxu0 0
    %2084 = vmatprep.mubr.bf16.mxu0 0
    %2085 = vmatmul.mubr.bf16.gmra.mrb[0].mxu0 %v169
    %v2086 = vpop.f32.mrb[0].mxu0
    %v2087 = vadd.f32 0.0, %v2086
    %v2088 = vpop.f32.mrb[0].mxu0
    %v2089 = vpop.f32.mrb[0].mxu0
    %v2090 = vadd.f32 0.0, %v2089
    %v2091 = vpop.f32.mrb[0].mxu0
    %2092 = vmatprep.mubr.bf16.mxu0 0
    %2093 = vmatmul.mubr.bf16.gmra.mrb[0].mxu0 %v172
    %v2094 = vpop.f32.mrb[0].mxu0
    %v2095 = vadd.f32 0.0, %v2094
    %v2096 = vpop.f32.mrb[0].mxu0
    %v2097 = vpop.f32.mrb[0].mxu0
    %v2098 = vadd.f32 0.0, %v2097
    %v2099 = vpop.f32.mrb[0].mxu0
    %2100 = vmatprep.mubr.bf16.mxu0 0
    %2101 = vmatmul.mubr.bf16.gmra.mrb[0].mxu0 %v175
    %v2102 = vpop.f32.mrb[0].mxu0
    %v2103 = vadd.f32 0.0, %v2102
    %v2104 = vpop.f32.mrb[0].mxu0
    %v2105 = vpop.f32.mrb[0].mxu0
    %v2106 = vadd.f32 0.0, %v2105
    %v2107 = vpop.f32.mrb[0].mxu0
    %2108 = vmatprep.mubr.bf16.mxu0 0
    %2109 = vmatmul.mubr.bf16.gmra.mrb[0].mxu0 %v178
    %v2110 = vpop.f32.mrb[0].mxu0
    %v2111 = vadd.f32 0.0, %v2110
    %v2112 = vpop.f32.mrb[0].mxu0
    %v2113 = vpop.f32.mrb[0].mxu0
    %v2114 = vadd.f32 0.0, %v2113
    %v2115 = vpop.f32.mrb[0].mxu0
    %2116 = vmatprep.mubr.bf16.mxu0 0
    %2117 = vmatmul.mubr.bf16.gmra.mrb[0].mxu0 %v181
    %v2118 = vpop.f32.mrb[0].mxu0
    %v2119 = vadd.f32 0.0, %v2118
    %v2120 = vpop.f32.mrb[0].mxu0
    %v2121 = vpop.f32.mrb[0].mxu0
    %v2122 = vadd.f32 0.0, %v2121
    %v2123 = vpop.f32.mrb[0].mxu0
    %2124 = vmatprep.mubr.bf16.mxu0 0
    %2125 = vmatmul.mubr.bf16.gmra.mrb[0].mxu0 %v184
    %v2126 = vpop.f32.mrb[0].mxu0
    %v2127 = vadd.f32 0.0, %v2126
    %v2128 = vpop.f32.mrb[0].mxu0
    %v2129 = vpop.f32.mrb[0].mxu0
    %v2130 = vadd.f32 0.0, %v2129
    %v2131 = vpop.f32.mrb[0].mxu0
    %2132 = vmatprep.mubr.bf16.mxu0 0
    %2133 = vmatmul.mubr.bf16.gmra.mrb[0].mxu0 %v187
    %v2134 = vpop.f32.mrb[0].mxu0
    %v2135 = vadd.f32 0.0, %v2134
    %v2136 = vpop.f32.mrb[0].mxu0
    %v2137 = vpop.f32.mrb[0].mxu0
    %v2138 = vadd.f32 0.0, %v2137
    %v2139 = vpop.f32.mrb[0].mxu0
    %2140 = vmatprep.mubr.bf16.mxu0 0
    %2141 = vmatmul.mubr.bf16.gmra.mrb[0].mxu0 %v190
    %v2142 = vpop.f32.mrb[0].mxu0
    %v2143 = vadd.f32 0.0, %v2142
    %v2144 = vpop.f32.mrb[0].mxu0
    %v2145 = vpop.f32.mrb[0].mxu0
    %v2146 = vadd.f32 0.0, %v2145
    %v2147 = vpop.f32.mrb[0].mxu0
    %2148 = vdwg.mxu0
    %s2149 = sld [smem:[#allocation8 + $0x100]]
    %v2150 = vmax.f32 %v2087, %v2103
    %v2151 = vmax.f32 %v2090, %v2106
    %v2152 = vmax.f32 %v2095, %v2111
    %v2153 = vmax.f32 %v2098, %v2114
    %v2154 = vmax.f32 %v2150, %v2119
    %v2155 = vmax.f32 %v2151, %v2122
    %v2156 = vmax.f32 %v2152, %v2127
    %v2157 = vmax.f32 %v2153, %v2130
    %v2158 = vmax.f32 %v2154, %v2135
    %v2159 = vmax.f32 %v2155, %v2138
    %v2160 = vmax.f32 %v2156, %v2143
    %v2161 = vmax.f32 %v2157, %v2146
    %v2162 = vmax.f32 %v2158, %v2159
    %v2163 = vmax.f32 %v2160, %v2161
    %v2164 = vmax.f32 %v2162, %v2163
    %v2165 = vrot.slane %v2164, 4
    %v2166 = vmax.f32 %v2164, %v2165
    %v2167 = vrot.slane %v2166, 2
    %v2168 = vmax.f32 %v2166, %v2167
    %v2169 = vrot.slane %v2168, 1
    %v2170 = vmax.f32 %v2168, %v2169
    %v2171 = vsub.f32 %v2087, %v2170
    %v2172 = vsub.f32 %v2090, %v2170
    %v2173 = vsub.f32 %v2095, %v2170
    %v2174 = vsub.f32 %v2098, %v2170
    %v2175 = vsub.f32 %v2103, %v2170
    %v2176 = vsub.f32 %v2106, %v2170
    %v2177 = vsub.f32 %v2111, %v2170
    %v2178 = vsub.f32 %v2114, %v2170
    %v2179 = vsub.f32 %v2119, %v2170
    %v2180 = vsub.f32 %v2122, %v2170
    %v2181 = vsub.f32 %v2127, %v2170
    %v2182 = vsub.f32 %v2130, %v2170
    %v2183 = vsub.f32 %v2135, %v2170
    %v2184 = vsub.f32 %v2138, %v2170
    %v2185 = vsub.f32 %v2143, %v2170
    %v2186 = vsub.f32 %v2146, %v2170
    %v2187 = vstv %s2149
    %v2188 = vmul.f32 %v2171, %v2187
    %v2189 = vmul.f32 %v2172, %v2187
    %v2190 = vmul.f32 %v2173, %v2187
    %v2191 = vmul.f32 %v2174, %v2187
    %v2192 = vmul.f32 %v2175, %v2187
    %v2193 = vmul.f32 %v2176, %v2187
    %v2194 = vmul.f32 %v2177, %v2187
    %v2195 = vmul.f32 %v2178, %v2187
    %v2196 = vmul.f32 %v2179, %v2187
    %v2197 = vmul.f32 %v2180, %v2187
    %v2198 = vmul.f32 %v2181, %v2187
    %v2199 = vmul.f32 %v2182, %v2187
    %v2200 = vmul.f32 %v2183, %v2187
    %v2201 = vmul.f32 %v2184, %v2187
    %v2202 = vmul.f32 %v2185, %v2187
    %v2203 = vmul.f32 %v2186, %v2187
    %v2204 = vmul.f32 %v2188, 1.442695
    %v2205 = vpow.pop %v2204
    %v2206 = vmul.f32 %v2189, 1.442695
    %v2207 = vpow.pop %v2206
    %v2208 = vmul.f32 %v2190, 1.442695
    %v2209 = vpow.pop %v2208
    %v2210 = vmul.f32 %v2191, 1.442695
    %v2211 = vpow.pop %v2210
    %v2212 = vmul.f32 %v2192, 1.442695
    %v2213 = vpow.pop %v2212
    %v2214 = vmul.f32 %v2193, 1.442695
    %v2215 = vpow.pop %v2214
    %v2216 = vmul.f32 %v2194, 1.442695
    %v2217 = vpow.pop %v2216
    %v2218 = vmul.f32 %v2195, 1.442695
    %v2219 = vpow.pop %v2218
    %v2220 = vmul.f32 %v2196, 1.442695
    %v2221 = vpow.pop %v2220
    %v2222 = vmul.f32 %v2197, 1.442695
    %v2223 = vpow.pop %v2222
    %v2224 = vmul.f32 %v2198, 1.442695
    %v2225 = vpow.pop %v2224
    %v2226 = vmul.f32 %v2199, 1.442695
    %v2227 = vpow.pop %v2226
    %v2228 = vmul.f32 %v2200, 1.442695
    %v2229 = vpow.pop %v2228
    %v2230 = vmul.f32 %v2201, 1.442695
    %v2231 = vpow.pop %v2230
    %v2232 = vmul.f32 %v2202, 1.442695
    %v2233 = vpow.pop %v2232
    %v2234 = vmul.f32 %v2203, 1.442695
    %v2235 = vpow.pop %v2234
    %v2236 = vmul.f32 %v2205, %v2087
    %v2237 = vmul.f32 %v2207, %v2090
    %v2238 = vmul.f32 %v2209, %v2095
    %v2239 = vmul.f32 %v2211, %v2098
    %v2240 = vmul.f32 %v2213, %v2103
    %v2241 = vmul.f32 %v2215, %v2106
    %v2242 = vmul.f32 %v2217, %v2111
    %v2243 = vmul.f32 %v2219, %v2114
    %v2244 = vmul.f32 %v2221, %v2119
    %v2245 = vmul.f32 %v2223, %v2122
    %v2246 = vmul.f32 %v2225, %v2127
    %v2247 = vmul.f32 %v2227, %v2130
    %v2248 = vmul.f32 %v2229, %v2135
    %v2249 = vmul.f32 %v2231, %v2138
    %v2250 = vmul.f32 %v2233, %v2143
    %v2251 = vmul.f32 %v2235, %v2146
    %v2252 = vpack.c.bf16 %v2237, %v2236
    %v2253 = vpack.c.bf16 %v2239, %v2238
    %v2254 = vpack.c.bf16 %v2241, %v2240
    %v2255 = vpack.c.bf16 %v2243, %v2242
    %v2256 = vpack.c.bf16 %v2245, %v2244
    %v2257 = vpack.c.bf16 %v2247, %v2246
    %v2258 = vpack.c.bf16 %v2249, %v2248
    %v2259 = vpack.c.bf16 %v2251, %v2250
    %v2260 = vpack.c.bf16 %v2207, %v2205
    %v2261 = vpack.c.bf16 %v2211, %v2209
    %v2262 = vpack.c.bf16 %v2215, %v2213
    %v2263 = vpack.c.bf16 %v2219, %v2217
    %v2264 = vpack.c.bf16 %v2223, %v2221
    %v2265 = vpack.c.bf16 %v2227, %v2225
    %v2266 = vpack.c.bf16 %v2231, %v2229
    %v2267 = vpack.c.bf16 %v2235, %v2233
    %2268 = vmatprep.subr.bf16.mxu0 %v2260
    %2269 = vmatpush1.bf16.msra.mxu0 %v2252
    %2270 = vmatprep.subr.bf16.mxu0 %v2261
    %2271 = vmatpush1.bf16.msra.mxu0 %v2253
    %2272 = vmatprep.subr.bf16.mxu0 %v2262
    %2273 = vmatpush1.bf16.msra.mxu0 %v2254
    %2274 = vmatprep.subr.bf16.mxu0 %v2263
    %2275 = vmatpush1.bf16.msra.mxu0 %v2255
    %2276 = vmatprep.subr.bf16.mxu0 %v2264
    %2277 = vmatpush1.bf16.msra.mxu0 %v2256
    %2278 = vmatprep.subr.bf16.mxu0 %v2265
    %2279 = vmatpush1.bf16.msra.mxu0 %v2257
    %2280 = vmatprep.subr.bf16.mxu0 %v2266
    %2281 = vmatpush1.bf16.msra.mxu0 %v2258
    %2282 = vmatprep.subr.bf16.mxu0 %v2267
    %2283 = vmatpush1.bf16.msra.mxu0 %v2259
    %2284 = vmatprep.subr.bf16.mxu0 0
    %2285 = vmatpush1.bf16.msra.mxu0 0
    %2286 = vmatprep.subr.bf16.mxu0 0
    %2287 = vmatpush1.bf16.msra.mxu0 0
    %2288 = vmatprep.subr.bf16.mxu0 0
    %2289 = vmatpush1.bf16.msra.mxu0 0
    %2290 = vmatprep.subr.bf16.mxu0 0
    %2291 = vmatpush1.bf16.msra.mxu0 0
    %2292 = vmatprep.subr.bf16.mxu0 0
    %2293 = vmatpush1.bf16.msra.mxu0 0
    %2294 = vmatprep.subr.bf16.mxu0 0
    %2295 = vmatpush1.bf16.msra.mxu0 0
    %2296 = vmatprep.subr.bf16.mxu0 0
    %2297 = vmatpush1.bf16.msra.mxu0 0
    %2298 = vmatprep.subr.bf16.mxu0 0
    %2299 = vmatpush1.bf16.msra.mxu0 0
    %2300 = vmatprep.mubr.bf16.mxu0 0
    %2301 = vmatmul.mubr.bf16.gmra.mrb[0].mxu0 %v424
    %v2302 = vpop.f32.mrb[0].mxu0
    %v2303 = vadd.f32 0.0, %v2302
    %v2304 = vpop.f32.mrb[0].mxu0
    %v2305 = vadd.f32 0.0, %v2304
    %v2306 = vpop.f32.mrb[0].mxu0
    %v2307 = vadd.f32 0.0, %v2306
    %v2308 = vpop.f32.mrb[0].mxu0
    %v2309 = vadd.f32 0.0, %v2308
    %2310 = vmatprep.mubr.bf16.mxu0 0
    %2311 = vmatmul.mubr.bf16.gmra.mrb[0].mxu0 %v425
    %v2312 = vpop.f32.mrb[0].mxu0
    %v2313 = vadd.f32 0.0, %v2312
    %v2314 = vpop.f32.mrb[0].mxu0
    %v2315 = vadd.f32 0.0, %v2314
    %v2316 = vpop.f32.mrb[0].mxu0
    %v2317 = vadd.f32 0.0, %v2316
    %v2318 = vpop.f32.mrb[0].mxu0
    %v2319 = vadd.f32 0.0, %v2318
    %2320 = vmatprep.mubr.bf16.mxu0 0
    %2321 = vmatmul.mubr.bf16.gmra.mrb[0].mxu0 %v426
    %v2322 = vpop.f32.mrb[0].mxu0
    %v2323 = vadd.f32 0.0, %v2322
    %v2324 = vpop.f32.mrb[0].mxu0
    %v2325 = vadd.f32 0.0, %v2324
    %v2326 = vpop.f32.mrb[0].mxu0
    %v2327 = vadd.f32 0.0, %v2326
    %v2328 = vpop.f32.mrb[0].mxu0
    %v2329 = vadd.f32 0.0, %v2328
    %2330 = vmatprep.mubr.bf16.mxu0 0
    %2331 = vmatmul.mubr.bf16.gmra.mrb[0].mxu0 %v427
    %v2332 = vpop.f32.mrb[0].mxu0
    %v2333 = vadd.f32 0.0, %v2332
    %v2334 = vpop.f32.mrb[0].mxu0
    %v2335 = vadd.f32 0.0, %v2334
    %v2336 = vpop.f32.mrb[0].mxu0
    %v2337 = vadd.f32 0.0, %v2336
    %v2338 = vpop.f32.mrb[0].mxu0
    %v2339 = vadd.f32 0.0, %v2338
    %2340 = vdwg.mxu0
    %vm2341 = vcmp.gt.f32.partialorder %v2305, 0.0
    %vm2342 = vcmp.gt.f32.partialorder %v2309, 0.0
    %vm2343 = vcmp.gt.f32.partialorder %v2315, 0.0
    %vm2344 = vcmp.gt.f32.partialorder %v2319, 0.0
    %vm2345 = vcmp.gt.f32.partialorder %v2325, 0.0
    %vm2346 = vcmp.gt.f32.partialorder %v2329, 0.0
    %vm2347 = vcmp.gt.f32.partialorder %v2335, 0.0
    %vm2348 = vcmp.gt.f32.partialorder %v2339, 0.0
    %v2349 = vsel %vm2341, %v2305, 1.0
    %v2350 = vsel %vm2342, %v2309, 1.0
    %v2351 = vsel %vm2343, %v2315, 1.0
    %v2352 = vsel %vm2344, %v2319, 1.0
    %v2353 = vsel %vm2345, %v2325, 1.0
    %v2354 = vsel %vm2346, %v2329, 1.0
    %v2355 = vsel %vm2347, %v2335, 1.0
    %v2356 = vsel %vm2348, %v2339, 1.0
    %v2357 = vrcp.pop %v2349
    %v2358 = vmul.f32 %v2303, %v2357
    %v2359 = vrcp.pop %v2350
    %v2360 = vmul.f32 %v2307, %v2359
    %v2361 = vrcp.pop %v2351
    %v2362 = vmul.f32 %v2313, %v2361
    %v2363 = vrcp.pop %v2352
    %v2364 = vmul.f32 %v2317, %v2363
    %v2365 = vrcp.pop %v2353
    %v2366 = vmul.f32 %v2323, %v2365
    %v2367 = vrcp.pop %v2354
    %v2368 = vmul.f32 %v2327, %v2367
    %v2369 = vrcp.pop %v2355
    %v2370 = vmul.f32 %v2333, %v2369
    %v2371 = vrcp.pop %v2356
    %v2372 = vmul.f32 %v2337, %v2371
    %v2373 = vsel %vm2341, %v2358, 0.0
    %v2374 = vsel %vm2342, %v2360, 0.0
    %v2375 = vsel %vm2343, %v2362, 0.0
    %v2376 = vsel %vm2344, %v2364, 0.0
    %v2377 = vsel %vm2345, %v2366, 0.0
    %v2378 = vsel %vm2346, %v2368, 0.0
    %v2379 = vsel %vm2347, %v2370, 0.0
    %v2380 = vsel %vm2348, %v2372, 0.0
    %v2381 = vadd.f32 %v2373, %v2024
    %v2382 = vadd.f32 %v2374, %v2025
    %v2383 = vadd.f32 %v2375, %v2026
    %v2384 = vadd.f32 %v2376, %v2027
    %v2385 = vadd.f32 %v2377, %v2028
    %v2386 = vadd.f32 %v2378, %v2029
    %v2387 = vadd.f32 %v2379, %v2030
    %v2388 = vadd.f32 %v2380, %v2031
    %s2389 = scalar_lea.vmem [#allocation2], 512
    %v2390 = vld [vmem:[%s2389] sm:$0xff]
    %v2391 = vld [vmem:[%s2389 + $0x8] sm:$0xff]
    %v2392 = vld [vmem:[%s2389 + $0x10] sm:$0xff]
    %v2393 = vld [vmem:[%s2389 + $0x18] sm:$0xff]
    %v2394 = vld [vmem:[%s2389 + $0x20] sm:$0xff]
    %v2395 = vld [vmem:[%s2389 + $0x28] sm:$0xff]
    %v2396 = vld [vmem:[%s2389 + $0x30] sm:$0xff]
    %v2397 = vld [vmem:[%s2389 + $0x38] sm:$0xff]
    %v2398 = vld [vmem:[%s2389 + $0x40] sm:$0xff]
    %v2399 = vld [vmem:[%s2389 + $0x48] sm:$0xff]
    %v2400 = vld [vmem:[%s2389 + $0x50] sm:$0xff]
    %v2401 = vld [vmem:[%s2389 + $0x58] sm:$0xff]
    %v2402 = vld [vmem:[%s2389 + $0x60] sm:$0xff]
    %v2403 = vld [vmem:[%s2389 + $0x68] sm:$0xff]
    %v2404 = vld [vmem:[%s2389 + $0x70] sm:$0xff]
    %v2405 = vld [vmem:[%s2389 + $0x78] sm:$0xff]
    %v2406 = vld [vmem:[%s2389 + $0x80] sm:$0xff]
    %v2407 = vld [vmem:[%s2389 + $0x88] sm:$0xff]
    %v2408 = vld [vmem:[%s2389 + $0x90] sm:$0xff]
    %v2409 = vld [vmem:[%s2389 + $0x98] sm:$0xff]
    %v2410 = vld [vmem:[%s2389 + $0xa0] sm:$0xff]
    %v2411 = vld [vmem:[%s2389 + $0xa8] sm:$0xff]
    %v2412 = vld [vmem:[%s2389 + $0xb0] sm:$0xff]
    %v2413 = vld [vmem:[%s2389 + $0xb8] sm:$0xff]
    %v2414 = vld [vmem:[%s2389 + $0xc0] sm:$0xff]
    %v2415 = vld [vmem:[%s2389 + $0xc8] sm:$0xff]
    %v2416 = vld [vmem:[%s2389 + $0xd0] sm:$0xff]
    %v2417 = vld [vmem:[%s2389 + $0xd8] sm:$0xff]
    %v2418 = vld [vmem:[%s2389 + $0xe0] sm:$0xff]
    %v2419 = vld [vmem:[%s2389 + $0xe8] sm:$0xff]
    %v2420 = vld [vmem:[%s2389 + $0xf0] sm:$0xff]
    %v2421 = vld [vmem:[%s2389 + $0xf8] sm:$0xff]
    %2422 = vmatprep.subr.mxu0 %v2391
    %2423 = vmatpush1.msra.mxu0 %v2390
    %2424 = vmatprep.subr.mxu0 %v2393
    %2425 = vmatpush1.msra.mxu0 %v2392
    %2426 = vmatprep.subr.mxu0 %v2395
    %2427 = vmatpush1.msra.mxu0 %v2394
    %2428 = vmatprep.subr.mxu0 %v2397
    %2429 = vmatpush1.msra.mxu0 %v2396
    %2430 = vmatprep.subr.mxu0 %v2399
    %2431 = vmatpush1.msra.mxu0 %v2398
    %2432 = vmatprep.subr.mxu0 %v2401
    %2433 = vmatpush1.msra.mxu0 %v2400
    %2434 = vmatprep.subr.mxu0 %v2403
    %2435 = vmatpush1.msra.mxu0 %v2402
    %2436 = vmatprep.subr.mxu0 %v2405
    %2437 = vmatpush1.msra.mxu0 %v2404
    %2438 = vmatprep.subr.mxu0 %v2407
    %2439 = vmatpush1.msra.mxu0 %v2406
    %2440 = vmatprep.subr.mxu0 %v2409
    %2441 = vmatpush1.msra.mxu0 %v2408
    %2442 = vmatprep.subr.mxu0 %v2411
    %2443 = vmatpush1.msra.mxu0 %v2410
    %2444 = vmatprep.subr.mxu0 %v2413
    %2445 = vmatpush1.msra.mxu0 %v2412
    %2446 = vmatprep.subr.mxu0 %v2415
    %2447 = vmatpush1.msra.mxu0 %v2414
    %2448 = vmatprep.subr.mxu0 %v2417
    %2449 = vmatpush1.msra.mxu0 %v2416
    %2450 = vmatprep.subr.mxu0 %v2419
    %2451 = vmatpush1.msra.mxu0 %v2418
    %2452 = vmatprep.subr.mxu0 %v2421
    %2453 = vmatpush1.msra.mxu0 %v2420
    %2454 = vmatprep.subr.mxu0 0.0
    %2455 = vmatpush1.msra.mxu0 0.0
    %2456 = vmatprep.subr.mxu0 0.0
    %2457 = vmatpush1.msra.mxu0 0.0
    %2458 = vmatprep.subr.mxu0 0.0
    %2459 = vmatpush1.msra.mxu0 0.0
    %2460 = vmatprep.subr.mxu0 0.0
    %2461 = vmatpush1.msra.mxu0 0.0
    %2462 = vmatprep.subr.mxu0 0.0
    %2463 = vmatpush1.msra.mxu0 0.0
    %2464 = vmatprep.subr.mxu0 0.0
    %2465 = vmatpush1.msra.mxu0 0.0
    %2466 = vmatprep.subr.mxu0 0.0
    %2467 = vmatpush1.msra.mxu0 0.0
    %2468 = vmatprep.subr.mxu0 0.0
    %2469 = vmatpush1.msra.mxu0 0.0
    %2470 = vmatprep.subr.mxu0 0.0
    %2471 = vmatpush1.msra.mxu0 0.0
    %2472 = vmatprep.subr.mxu0 0.0
    %2473 = vmatpush1.msra.mxu0 0.0
    %2474 = vmatprep.subr.mxu0 0.0
    %2475 = vmatpush1.msra.mxu0 0.0
    %2476 = vmatprep.subr.mxu0 0.0
    %2477 = vmatpush1.msra.mxu0 0.0
    %2478 = vmatprep.subr.mxu0 0.0
    %2479 = vmatpush1.msra.mxu0 0.0
    %2480 = vmatprep.subr.mxu0 0.0
    %2481 = vmatpush1.msra.mxu0 0.0
    %2482 = vmatprep.subr.mxu0 0.0
    %2483 = vmatpush1.msra.mxu0 0.0
    %2484 = vmatprep.subr.mxu0 0.0
    %2485 = vmatpush1.msra.mxu0 0.0
    %2486 = vmatprep.mubr.f32.mxu0 0.0
    %2487 = vmatmul.mubr.f32.gmra.mrb[0].mxu0 %v2381
    %v2488 = vpop.f32.mrb[0].mxu0
    %v2489 = vadd.f32 0.0, %v2488
    %v2490 = vpop.f32.mrb[0].mxu0
    %v2491 = vadd.f32 0.0, %v2490
    %2492 = vmatprep.mubr.f32.mxu0 0.0
    %2493 = vmatmul.mubr.f32.gmra.mrb[0].mxu0 %v2382
    %v2494 = vpop.f32.mrb[0].mxu0
    %v2495 = vadd.f32 0.0, %v2494
    %v2496 = vpop.f32.mrb[0].mxu0
    %v2497 = vadd.f32 0.0, %v2496
    %2498 = vmatprep.mubr.f32.mxu0 0.0
    %2499 = vmatmul.mubr.f32.gmra.mrb[0].mxu0 %v2383
    %v2500 = vpop.f32.mrb[0].mxu0
    %v2501 = vadd.f32 0.0, %v2500
    %v2502 = vpop.f32.mrb[0].mxu0
    %v2503 = vadd.f32 0.0, %v2502
    %2504 = vmatprep.mubr.f32.mxu0 0.0
    %2505 = vmatmul.mubr.f32.gmra.mrb[0].mxu0 %v2384
    %v2506 = vpop.f32.mrb[0].mxu0
    %v2507 = vadd.f32 0.0, %v2506
    %v2508 = vpop.f32.mrb[0].mxu0
    %v2509 = vadd.f32 0.0, %v2508
    %2510 = vmatprep.mubr.f32.mxu0 0.0
    %2511 = vmatmul.mubr.f32.gmra.mrb[0].mxu0 %v2385
    %v2512 = vpop.f32.mrb[0].mxu0
    %v2513 = vadd.f32 0.0, %v2512
    %v2514 = vpop.f32.mrb[0].mxu0
    %v2515 = vadd.f32 0.0, %v2514
    %2516 = vmatprep.mubr.f32.mxu0 0.0
    %2517 = vmatmul.mubr.f32.gmra.mrb[0].mxu0 %v2386
    %v2518 = vpop.f32.mrb[0].mxu0
    %v2519 = vadd.f32 0.0, %v2518
    %v2520 = vpop.f32.mrb[0].mxu0
    %v2521 = vadd.f32 0.0, %v2520
    %2522 = vmatprep.mubr.f32.mxu0 0.0
    %2523 = vmatmul.mubr.f32.gmra.mrb[0].mxu0 %v2387
    %v2524 = vpop.f32.mrb[0].mxu0
    %v2525 = vadd.f32 0.0, %v2524
    %v2526 = vpop.f32.mrb[0].mxu0
    %v2527 = vadd.f32 0.0, %v2526
    %2528 = vmatprep.mubr.f32.mxu0 0.0
    %2529 = vmatmul.mubr.f32.gmra.mrb[0].mxu0 %v2388
    %v2530 = vpop.f32.mrb[0].mxu0
    %v2531 = vadd.f32 0.0, %v2530
    %v2532 = vpop.f32.mrb[0].mxu0
    %v2533 = vadd.f32 0.0, %v2532
    %2534 = vdwg.mxu0
    %v2535 = vadd.f32 %v2489, %v2495
    %v2536 = vadd.f32 %v2535, %v2501
    %v2537 = vadd.f32 %v2536, %v2507
    %v2538 = vadd.f32 %v2537, %v2513
    %v2539 = vadd.f32 %v2538, %v2519
    %v2540 = vadd.f32 %v2539, %v2525
    %v2541 = vadd.f32 %v2540, %v2531
    %v2542 = vrot.slane %v2541, 4
    %v2543 = vadd.f32 %v2541, %v2542
    %v2544 = vrot.slane %v2543, 2
    %v2545 = vadd.f32 %v2543, %v2544
    %v2546 = vrot.slane %v2545, 1
    %v2547 = vadd.f32 %v2545, %v2546
    %v2548 = vadd.f32 %v2491, %v2497
    %v2549 = vadd.f32 %v2548, %v2503
    %v2550 = vadd.f32 %v2549, %v2509
    %v2551 = vadd.f32 %v2550, %v2515
    %v2552 = vadd.f32 %v2551, %v2521
    %v2553 = vadd.f32 %v2552, %v2527
    %v2554 = vadd.f32 %v2553, %v2533
    %v2555 = vrot.slane %v2554, 4
    %v2556 = vadd.f32 %v2554, %v2555
    %v2557 = vrot.slane %v2556, 2
    %v2558 = vadd.f32 %v2556, %v2557
    %v2559 = vrot.slane %v2558, 1
    %v2560 = vadd.f32 %v2558, %v2559
    %v2561 = vmul.f32 %v2547, %v724
    %v2562 = vmul.f32 %v2560, %v724
    %v2563 = vsub.f32 %v2489, %v2561
    %v2564 = vsub.f32 %v2491, %v2562
    %v2565 = vsub.f32 %v2495, %v2561
    %v2566 = vsub.f32 %v2497, %v2562
    %v2567 = vsub.f32 %v2501, %v2561
    %v2568 = vsub.f32 %v2503, %v2562
    %v2569 = vsub.f32 %v2507, %v2561
    %v2570 = vsub.f32 %v2509, %v2562
    %v2571 = vsub.f32 %v2513, %v2561
    %v2572 = vsub.f32 %v2515, %v2562
    %v2573 = vsub.f32 %v2519, %v2561
    %v2574 = vsub.f32 %v2521, %v2562
    %v2575 = vsub.f32 %v2525, %v2561
    %v2576 = vsub.f32 %v2527, %v2562
    %v2577 = vsub.f32 %v2531, %v2561
    %v2578 = vsub.f32 %v2533, %v2562
    %v2579 = vmul.f32 %v2563, %v2563
    %v2580 = vmul.f32 %v2564, %v2564
    %v2581 = vmul.f32 %v2565, %v2565
    %v2582 = vmul.f32 %v2566, %v2566
    %v2583 = vmul.f32 %v2567, %v2567
    %v2584 = vmul.f32 %v2568, %v2568
    %v2585 = vmul.f32 %v2569, %v2569
    %v2586 = vmul.f32 %v2570, %v2570
    %v2587 = vmul.f32 %v2571, %v2571
    %v2588 = vmul.f32 %v2572, %v2572
    %v2589 = vmul.f32 %v2573, %v2573
    %v2590 = vmul.f32 %v2574, %v2574
    %v2591 = vmul.f32 %v2575, %v2575
    %v2592 = vmul.f32 %v2576, %v2576
    %v2593 = vmul.f32 %v2577, %v2577
    %v2594 = vmul.f32 %v2578, %v2578
    %v2595 = vadd.f32 %v2579, %v2581
    %v2596 = vadd.f32 %v2595, %v2583
    %v2597 = vadd.f32 %v2596, %v2585
    %v2598 = vadd.f32 %v2597, %v2587
    %v2599 = vadd.f32 %v2598, %v2589
    %v2600 = vadd.f32 %v2599, %v2591
    %v2601 = vadd.f32 %v2600, %v2593
    %v2602 = vrot.slane %v2601, 4
    %v2603 = vadd.f32 %v2601, %v2602
    %v2604 = vrot.slane %v2603, 2
    %v2605 = vadd.f32 %v2603, %v2604
    %v2606 = vrot.slane %v2605, 1
    %v2607 = vadd.f32 %v2605, %v2606
    %v2608 = vadd.f32 %v2580, %v2582
    %v2609 = vadd.f32 %v2608, %v2584
    %v2610 = vadd.f32 %v2609, %v2586
    %v2611 = vadd.f32 %v2610, %v2588
    %v2612 = vadd.f32 %v2611, %v2590
    %v2613 = vadd.f32 %v2612, %v2592
    %v2614 = vadd.f32 %v2613, %v2594
    %v2615 = vrot.slane %v2614, 4
    %v2616 = vadd.f32 %v2614, %v2615
    %v2617 = vrot.slane %v2616, 2
    %v2618 = vadd.f32 %v2616, %v2617
    %v2619 = vrot.slane %v2618, 1
    %v2620 = vadd.f32 %v2618, %v2619
    %v2621 = vmul.f32 %v2607, %v724
    %v2622 = vmul.f32 %v2620, %v724
    %v2623 = vadd.f32 %v2621, 1e-05
    %v2624 = vadd.f32 %v2622, 1e-05
    %v2625 = vrsqrt.pop %v2623
    %v2626 = vrsqrt.pop %v2624
    %v2627 = vmul.f32 %v2563, %v2625
    %v2628 = vmul.f32 %v2564, %v2626
    %v2629 = vmul.f32 %v2565, %v2625
    %v2630 = vmul.f32 %v2566, %v2626
    %v2631 = vmul.f32 %v2567, %v2625
    %v2632 = vmul.f32 %v2568, %v2626
    %v2633 = vmul.f32 %v2569, %v2625
    %v2634 = vmul.f32 %v2570, %v2626
    %v2635 = vmul.f32 %v2571, %v2625
    %v2636 = vmul.f32 %v2572, %v2626
    %v2637 = vmul.f32 %v2573, %v2625
    %v2638 = vmul.f32 %v2574, %v2626
    %v2639 = vmul.f32 %v2575, %v2625
    %v2640 = vmul.f32 %v2576, %v2626
    %v2641 = vmul.f32 %v2577, %v2625
    %v2642 = vmul.f32 %v2578, %v2626
    %s2643 = scalar_lea.vmem %s4, 4
    %v2644 = vld [vmem:[%s2643] sm:$0x3]
    %v2646 = vlaneseq
    %v2647 = vshrl.u32 %v2646, 7
    %v2648 = vsub.s32 0, %v2647
    %v2649 = vrot.slane %v2644, %v2648
    %v2650 = vlaneseq
    %v2651 = vshrl.u32 %v2650, 7
    %v2652 = vsub.s32 1, %v2651
    %v2653 = vrot.slane %v2644, %v2652
    %v2656 = vmul.f32 %v2627, %v2649
    %v2657 = vmul.f32 %v2628, %v2653
    %v2658 = vmul.f32 %v2629, %v2649
    %v2659 = vmul.f32 %v2630, %v2653
    %v2660 = vmul.f32 %v2631, %v2649
    %v2661 = vmul.f32 %v2632, %v2653
    %v2662 = vmul.f32 %v2633, %v2649
    %v2663 = vmul.f32 %v2634, %v2653
    %v2664 = vmul.f32 %v2635, %v2649
    %v2665 = vmul.f32 %v2636, %v2653
    %v2666 = vmul.f32 %v2637, %v2649
    %v2667 = vmul.f32 %v2638, %v2653
    %v2668 = vmul.f32 %v2639, %v2649
    %v2669 = vmul.f32 %v2640, %v2653
    %v2670 = vmul.f32 %v2641, %v2649
    %v2671 = vmul.f32 %v2642, %v2653
    %s2672 = scalar_lea.vmem %s5, 4
    %v2673 = vld [vmem:[%s2672] sm:$0x3]
    %v2675 = vlaneseq
    %v2676 = vshrl.u32 %v2675, 7
    %v2677 = vsub.s32 0, %v2676
    %v2678 = vrot.slane %v2673, %v2677
    %v2679 = vlaneseq
    %v2680 = vshrl.u32 %v2679, 7
    %v2681 = vsub.s32 1, %v2680
    %v2682 = vrot.slane %v2673, %v2681
    %v2685 = vadd.f32 %v2656, %v2678
    %v2686 = vadd.f32 %v2657, %v2682
    %v2687 = vadd.f32 %v2658, %v2678
    %v2688 = vadd.f32 %v2659, %v2682
    %v2689 = vadd.f32 %v2660, %v2678
    %v2690 = vadd.f32 %v2661, %v2682
    %v2691 = vadd.f32 %v2662, %v2678
    %v2692 = vadd.f32 %v2663, %v2682
    %v2693 = vadd.f32 %v2664, %v2678
    %v2694 = vadd.f32 %v2665, %v2682
    %v2695 = vadd.f32 %v2666, %v2678
    %v2696 = vadd.f32 %v2667, %v2682
    %v2697 = vadd.f32 %v2668, %v2678
    %v2698 = vadd.f32 %v2669, %v2682
    %v2699 = vadd.f32 %v2670, %v2678
    %v2700 = vadd.f32 %v2671, %v2682
    %v2701 = vmax.f32 %v2685, 0.0
    %v2702 = vmax.f32 %v2686, 0.0
    %v2703 = vmax.f32 %v2687, 0.0
    %v2704 = vmax.f32 %v2688, 0.0
    %v2705 = vmax.f32 %v2689, 0.0
    %v2706 = vmax.f32 %v2690, 0.0
    %v2707 = vmax.f32 %v2691, 0.0
    %v2708 = vmax.f32 %v2692, 0.0
    %v2709 = vmax.f32 %v2693, 0.0
    %v2710 = vmax.f32 %v2694, 0.0
    %v2711 = vmax.f32 %v2695, 0.0
    %v2712 = vmax.f32 %v2696, 0.0
    %v2713 = vmax.f32 %v2697, 0.0
    %v2714 = vmax.f32 %v2698, 0.0
    %v2715 = vmax.f32 %v2699, 0.0
    %v2716 = vmax.f32 %v2700, 0.0
    %s2717 = scalar_lea.vmem [#allocation6], 512
    %v2718 = vld [vmem:[%s2717] sm:$0xff]
    %v2719 = vld [vmem:[%s2717 + $0x8] sm:$0xff]
    %v2720 = vld [vmem:[%s2717 + $0x10] sm:$0xff]
    %v2721 = vld [vmem:[%s2717 + $0x18] sm:$0xff]
    %v2722 = vld [vmem:[%s2717 + $0x20] sm:$0xff]
    %v2723 = vld [vmem:[%s2717 + $0x28] sm:$0xff]
    %v2724 = vld [vmem:[%s2717 + $0x30] sm:$0xff]
    %v2725 = vld [vmem:[%s2717 + $0x38] sm:$0xff]
    %v2726 = vld [vmem:[%s2717 + $0x40] sm:$0xff]
    %v2727 = vld [vmem:[%s2717 + $0x48] sm:$0xff]
    %v2728 = vld [vmem:[%s2717 + $0x50] sm:$0xff]
    %v2729 = vld [vmem:[%s2717 + $0x58] sm:$0xff]
    %v2730 = vld [vmem:[%s2717 + $0x60] sm:$0xff]
    %v2731 = vld [vmem:[%s2717 + $0x68] sm:$0xff]
    %v2732 = vld [vmem:[%s2717 + $0x70] sm:$0xff]
    %v2733 = vld [vmem:[%s2717 + $0x78] sm:$0xff]
    %v2734 = vld [vmem:[%s2717 + $0x80] sm:$0xff]
    %v2735 = vld [vmem:[%s2717 + $0x88] sm:$0xff]
    %v2736 = vld [vmem:[%s2717 + $0x90] sm:$0xff]
    %v2737 = vld [vmem:[%s2717 + $0x98] sm:$0xff]
    %v2738 = vld [vmem:[%s2717 + $0xa0] sm:$0xff]
    %v2739 = vld [vmem:[%s2717 + $0xa8] sm:$0xff]
    %v2740 = vld [vmem:[%s2717 + $0xb0] sm:$0xff]
    %v2741 = vld [vmem:[%s2717 + $0xb8] sm:$0xff]
    %v2742 = vld [vmem:[%s2717 + $0xc0] sm:$0xff]
    %v2743 = vld [vmem:[%s2717 + $0xc8] sm:$0xff]
    %v2744 = vld [vmem:[%s2717 + $0xd0] sm:$0xff]
    %v2745 = vld [vmem:[%s2717 + $0xd8] sm:$0xff]
    %v2746 = vld [vmem:[%s2717 + $0xe0] sm:$0xff]
    %v2747 = vld [vmem:[%s2717 + $0xe8] sm:$0xff]
    %v2748 = vld [vmem:[%s2717 + $0xf0] sm:$0xff]
    %v2749 = vld [vmem:[%s2717 + $0xf8] sm:$0xff]
    %s2750 = scalar_lea.vmem %s7, 2
    %v2751 = vld [vmem:[%s2750] sm:$0x1]
    %v2753 = vlaneseq
    %v2754 = vshrl.u32 %v2753, 7
    %v2755 = vsub.s32 0, %v2754
    %v2756 = vrot.slane %v2751, %v2755
    %2758 = vmatprep.subr.mxu0 0.0
    %2759 = vmatpush1.msra.mxu0 %v2718
    %2760 = vmatprep.subr.mxu0 0.0
    %2761 = vmatpush1.msra.mxu0 %v2719
    %2762 = vmatprep.subr.mxu0 0.0
    %2763 = vmatpush1.msra.mxu0 %v2720
    %2764 = vmatprep.subr.mxu0 0.0
    %2765 = vmatpush1.msra.mxu0 %v2721
    %2766 = vmatprep.subr.mxu0 0.0
    %2767 = vmatpush1.msra.mxu0 %v2722
    %2768 = vmatprep.subr.mxu0 0.0
    %2769 = vmatpush1.msra.mxu0 %v2723
    %2770 = vmatprep.subr.mxu0 0.0
    %2771 = vmatpush1.msra.mxu0 %v2724
    %2772 = vmatprep.subr.mxu0 0.0
    %2773 = vmatpush1.msra.mxu0 %v2725
    %2774 = vmatprep.subr.mxu0 0.0
    %2775 = vmatpush1.msra.mxu0 %v2726
    %2776 = vmatprep.subr.mxu0 0.0
    %2777 = vmatpush1.msra.mxu0 %v2727
    %2778 = vmatprep.subr.mxu0 0.0
    %2779 = vmatpush1.msra.mxu0 %v2728
    %2780 = vmatprep.subr.mxu0 0.0
    %2781 = vmatpush1.msra.mxu0 %v2729
    %2782 = vmatprep.subr.mxu0 0.0
    %2783 = vmatpush1.msra.mxu0 %v2730
    %2784 = vmatprep.subr.mxu0 0.0
    %2785 = vmatpush1.msra.mxu0 %v2731
    %2786 = vmatprep.subr.mxu0 0.0
    %2787 = vmatpush1.msra.mxu0 %v2732
    %2788 = vmatprep.subr.mxu0 0.0
    %2789 = vmatpush1.msra.mxu0 %v2733
    %2790 = vmatprep.subr.mxu0 0.0
    %2791 = vmatpush1.msra.mxu0 %v2734
    %2792 = vmatprep.subr.mxu0 0.0
    %2793 = vmatpush1.msra.mxu0 %v2735
    %2794 = vmatprep.subr.mxu0 0.0
    %2795 = vmatpush1.msra.mxu0 %v2736
    %2796 = vmatprep.subr.mxu0 0.0
    %2797 = vmatpush1.msra.mxu0 %v2737
    %2798 = vmatprep.subr.mxu0 0.0
    %2799 = vmatpush1.msra.mxu0 %v2738
    %2800 = vmatprep.subr.mxu0 0.0
    %2801 = vmatpush1.msra.mxu0 %v2739
    %2802 = vmatprep.subr.mxu0 0.0
    %2803 = vmatpush1.msra.mxu0 %v2740
    %2804 = vmatprep.subr.mxu0 0.0
    %2805 = vmatpush1.msra.mxu0 %v2741
    %2806 = vmatprep.subr.mxu0 0.0
    %2807 = vmatpush1.msra.mxu0 %v2742
    %2808 = vmatprep.subr.mxu0 0.0
    %2809 = vmatpush1.msra.mxu0 %v2743
    %2810 = vmatprep.subr.mxu0 0.0
    %2811 = vmatpush1.msra.mxu0 %v2744
    %2812 = vmatprep.subr.mxu0 0.0
    %2813 = vmatpush1.msra.mxu0 %v2745
    %2814 = vmatprep.subr.mxu0 0.0
    %2815 = vmatpush1.msra.mxu0 %v2746
    %2816 = vmatprep.subr.mxu0 0.0
    %2817 = vmatpush1.msra.mxu0 %v2747
    %2818 = vmatprep.subr.mxu0 0.0
    %2819 = vmatpush1.msra.mxu0 %v2748
    %2820 = vmatprep.subr.mxu0 0.0
    %2821 = vmatpush1.msra.mxu0 %v2749
    %2822 = vmatprep.mubr.f32.mxu0 %v2702
    %2823 = vmatmul.mubr.f32.gmra.mrb[0].mxu0 %v2701
    %v2824 = vpop.f32.mrb[0].mxu0
    %v2825 = vadd.f32 %v2756, %v2824
    %v2826 = vpop.f32.mrb[0].mxu0
    %2827 = vmatprep.mubr.f32.mxu0 %v2704
    %2828 = vmatmul.mubr.f32.gmra.mrb[0].mxu0 %v2703
    %v2829 = vpop.f32.mrb[0].mxu0
    %v2830 = vadd.f32 %v2756, %v2829
    %v2831 = vpop.f32.mrb[0].mxu0
    %2832 = vmatprep.mubr.f32.mxu0 %v2706
    %2833 = vmatmul.mubr.f32.gmra.mrb[0].mxu0 %v2705
    %v2834 = vpop.f32.mrb[0].mxu0
    %v2835 = vadd.f32 %v2756, %v2834
    %v2836 = vpop.f32.mrb[0].mxu0
    %2837 = vmatprep.mubr.f32.mxu0 %v2708
    %2838 = vmatmul.mubr.f32.gmra.mrb[0].mxu0 %v2707
    %v2839 = vpop.f32.mrb[0].mxu0
    %v2840 = vadd.f32 %v2756, %v2839
    %v2841 = vpop.f32.mrb[0].mxu0
    %2842 = vmatprep.mubr.f32.mxu0 %v2710
    %2843 = vmatmul.mubr.f32.gmra.mrb[0].mxu0 %v2709
    %v2844 = vpop.f32.mrb[0].mxu0
    %v2845 = vadd.f32 %v2756, %v2844
    %v2846 = vpop.f32.mrb[0].mxu0
    %2847 = vmatprep.mubr.f32.mxu0 %v2712
    %2848 = vmatmul.mubr.f32.gmra.mrb[0].mxu0 %v2711
    %v2849 = vpop.f32.mrb[0].mxu0
    %v2850 = vadd.f32 %v2756, %v2849
    %v2851 = vpop.f32.mrb[0].mxu0
    %2852 = vmatprep.mubr.f32.mxu0 %v2714
    %2853 = vmatmul.mubr.f32.gmra.mrb[0].mxu0 %v2713
    %v2854 = vpop.f32.mrb[0].mxu0
    %v2855 = vadd.f32 %v2756, %v2854
    %v2856 = vpop.f32.mrb[0].mxu0
    %2857 = vmatprep.mubr.f32.mxu0 %v2716
    %2858 = vmatmul.mubr.f32.gmra.mrb[0].mxu0 %v2715
    %v2859 = vpop.f32.mrb[0].mxu0
    %v2860 = vadd.f32 %v2756, %v2859
    %v2861 = vpop.f32.mrb[0].mxu0
    %2862 = vdwg.mxu0
    %v2863 = vadd.f32 %v2825, %v2830
    %v2864 = vadd.f32 %v2863, %v2835
    %v2865 = vadd.f32 %v2864, %v2840
    %v2866 = vadd.f32 %v2865, %v2845
    %v2867 = vadd.f32 %v2866, %v2850
    %v2868 = vadd.f32 %v2867, %v2855
    %v2869 = vadd.f32 %v2868, %v2860
    %v2870 = vrot.slane %v2869, 4
    %v2871 = vadd.f32 %v2869, %v2870
    %v2872 = vrot.slane %v2871, 2
    %v2873 = vadd.f32 %v2871, %v2872
    %v2874 = vrot.slane %v2873, 1
    %v2875 = vadd.f32 %v2873, %v2874
    %v2876 = vmul.f32 %v2875, %v724
    %v2877 = vsub.f32 %v2825, %v2876
    %v2878 = vsub.f32 %v2830, %v2876
    %v2879 = vsub.f32 %v2835, %v2876
    %v2880 = vsub.f32 %v2840, %v2876
    %v2881 = vsub.f32 %v2845, %v2876
    %v2882 = vsub.f32 %v2850, %v2876
    %v2883 = vsub.f32 %v2855, %v2876
    %v2884 = vsub.f32 %v2860, %v2876
    %v2885 = vmul.f32 %v2877, %v2877
    %v2886 = vmul.f32 %v2878, %v2878
    %v2887 = vmul.f32 %v2879, %v2879
    %v2888 = vmul.f32 %v2880, %v2880
    %v2889 = vmul.f32 %v2881, %v2881
    %v2890 = vmul.f32 %v2882, %v2882
    %v2891 = vmul.f32 %v2883, %v2883
    %v2892 = vmul.f32 %v2884, %v2884
    %2893 = vadd.xlane.f32.xlu0 %v2885
    %v2894 = vpop.xlane.xlu0 %2893
    %2895 = vadd.xlane.f32.xlu0 %v2886
    %v2896 = vpop.xlane.xlu0 %2895
    %2897 = vadd.xlane.f32.xlu0 %v2887
    %v2898 = vpop.xlane.xlu0 %2897
    %2899 = vadd.xlane.f32.xlu0 %v2888
    %v2900 = vpop.xlane.xlu0 %2899
    %2901 = vadd.xlane.f32.xlu0 %v2889
    %v2902 = vpop.xlane.xlu0 %2901
    %2903 = vadd.xlane.f32.xlu0 %v2890
    %v2904 = vpop.xlane.xlu0 %2903
    %2905 = vadd.xlane.f32.xlu0 %v2891
    %v2906 = vpop.xlane.xlu0 %2905
    %2907 = vadd.xlane.f32.xlu0 %v2892
    %v2908 = vpop.xlane.xlu0 %2907
    %v2909 = vadd.f32 %v2894, %v2896
    %v2910 = vadd.f32 %v2909, %v2898
    %v2911 = vadd.f32 %v2910, %v2900
    %v2912 = vadd.f32 %v2911, %v2902
    %v2913 = vadd.f32 %v2912, %v2904
    %v2914 = vadd.f32 %v2913, %v2906
    %v2915 = vadd.f32 %v2914, %v2908
    %v2916 = vrot.slane %v2915, 4
    %v2917 = vadd.f32 %v2915, %v2916
    %v2918 = vrot.slane %v2917, 2
    %v2919 = vadd.f32 %v2917, %v2918
    %v2920 = vrot.slane %v2919, 1
    %v2921 = vadd.f32 %v2919, %v2920
    %v2922 = vmul.f32 %v2921, %v724
    %v2923 = vadd.f32 %v2922, 1e-05
    %v2924 = vrsqrt.pop %v2923
    %v2925 = vmul.f32 %v2923, %v2924
    %vm2926 = vcmp.eq.f32.partialorder %v2923, inf
    %v2927 = vsel %vm2926, %v2923, %v2925
    %vm2928 = vcmp.eq.f32.partialorder %v2923, 0.0
    %v2929 = vand.u32 %v2923, 2147483648
    %v2930 = vsel %vm2928, %v2929, %v2927
    %v2931 = vrcp.pop %v2930
    %v2932 = vmul.f32 %v2877, %v2931
    %v2933 = vmul.f32 %v2878, %v2931
    %v2934 = vmul.f32 %v2879, %v2931
    %v2935 = vmul.f32 %v2880, %v2931
    %v2936 = vmul.f32 %v2881, %v2931
    %v2937 = vmul.f32 %v2882, %v2931
    %v2938 = vmul.f32 %v2883, %v2931
    %v2939 = vmul.f32 %v2884, %v2931
    %v2940 = vmax.f32 %v2932, 0.0
    %v2941 = vmax.f32 %v2933, 0.0
    %v2942 = vmax.f32 %v2934, 0.0
    %v2943 = vmax.f32 %v2935, 0.0
    %v2944 = vmax.f32 %v2936, 0.0
    %v2945 = vmax.f32 %v2937, 0.0
    %v2946 = vmax.f32 %v2938, 0.0
    %v2947 = vmax.f32 %v2939, 0.0
    %v2948 = vadd.f32 %v2940, %v2024
    %v2949 = vadd.f32 %v2941, %v2025
    %v2950 = vadd.f32 %v2942, %v2026
    %v2951 = vadd.f32 %v2943, %v2027
    %v2952 = vadd.f32 %v2944, %v2028
    %v2953 = vadd.f32 %v2945, %v2029
    %v2954 = vadd.f32 %v2946, %v2030
    %v2955 = vadd.f32 %v2947, %v2031
    %v2956 = vmax.f32 %v2948, 0.0
    %v2957 = vmax.f32 %v2949, 0.0
    %v2958 = vmax.f32 %v2950, 0.0
    %v2959 = vmax.f32 %v2951, 0.0
    %v2960 = vmax.f32 %v2952, 0.0
    %v2961 = vmax.f32 %v2953, 0.0
    %v2962 = vmax.f32 %v2954, 0.0
    %v2963 = vmax.f32 %v2955, 0.0
    %v2964 = vadd.f32 %v2956, 1e-07
    %v2965 = vadd.f32 %v2957, 1e-07
    %v2966 = vadd.f32 %v2958, 1e-07
    %v2967 = vadd.f32 %v2959, 1e-07
    %v2968 = vadd.f32 %v2960, 1e-07
    %v2969 = vadd.f32 %v2961, 1e-07
    %v2970 = vadd.f32 %v2962, 1e-07
    %v2971 = vadd.f32 %v2963, 1e-07
    %v2972 = vpack.c.bf16 %v2965, %v2964
    %v2973 = vpack.c.bf16 %v2967, %v2966
    %v2974 = vpack.c.bf16 %v2969, %v2968
    %v2975 = vpack.c.bf16 %v2971, %v2970
    %2976 = vmatprep.subr.bf16.mxu0 0
    %2977 = vmatpush1.bf16.msra.mxu0 %v2972
    %2978 = vmatprep.subr.bf16.mxu0 0
    %2979 = vmatpush1.bf16.msra.mxu0 %v2973
    %2980 = vmatprep.subr.bf16.mxu0 0
    %2981 = vmatpush1.bf16.msra.mxu0 %v2974
    %2982 = vmatprep.subr.bf16.mxu0 0
    %2983 = vmatpush1.bf16.msra.mxu0 %v2975
    %2984 = vmatprep.subr.bf16.mxu0 0
    %2985 = vmatpush1.bf16.msra.mxu0 0
    %2986 = vmatprep.subr.bf16.mxu0 0
    %2987 = vmatpush1.bf16.msra.mxu0 0
    %2988 = vmatprep.subr.bf16.mxu0 0
    %2989 = vmatpush1.bf16.msra.mxu0 0
    %2990 = vmatprep.subr.bf16.mxu0 0
    %2991 = vmatpush1.bf16.msra.mxu0 0
    %2992 = vmatprep.subr.bf16.mxu0 0
    %2993 = vmatpush1.bf16.msra.mxu0 0
    %2994 = vmatprep.subr.bf16.mxu0 0
    %2995 = vmatpush1.bf16.msra.mxu0 0
    %2996 = vmatprep.subr.bf16.mxu0 0
    %2997 = vmatpush1.bf16.msra.mxu0 0
    %2998 = vmatprep.subr.bf16.mxu0 0
    %2999 = vmatpush1.bf16.msra.mxu0 0
    %3000 = vmatprep.subr.bf16.mxu0 0
    %3001 = vmatpush1.bf16.msra.mxu0 0
    %3002 = vmatprep.subr.bf16.mxu0 0
    %3003 = vmatpush1.bf16.msra.mxu0 0
    %3004 = vmatprep.subr.bf16.mxu0 0
    %3005 = vmatpush1.bf16.msra.mxu0 0
    %3006 = vmatprep.subr.bf16.mxu0 0
    %3007 = vmatpush1.bf16.msra.mxu0 0
    %3008 = vmatprep.mubr.bf16.mxu0 0
    %3009 = vmatmul.mubr.bf16.gmra.mrb[0].mxu0 %v169
    %v3010 = vpop.f32.mrb[0].mxu0
    %v3011 = vadd.f32 0.0, %v3010
    %v3012 = vpop.f32.mrb[0].mxu0
    %v3013 = vpop.f32.mrb[0].mxu0
    %v3014 = vadd.f32 0.0, %v3013
    %v3015 = vpop.f32.mrb[0].mxu0
    %3016 = vmatprep.mubr.bf16.mxu0 0
    %3017 = vmatmul.mubr.bf16.gmra.mrb[0].mxu0 %v172
    %v3018 = vpop.f32.mrb[0].mxu0
    %v3019 = vadd.f32 0.0, %v3018
    %v3020 = vpop.f32.mrb[0].mxu0
    %v3021 = vpop.f32.mrb[0].mxu0
    %v3022 = vadd.f32 0.0, %v3021
    %v3023 = vpop.f32.mrb[0].mxu0
    %3024 = vmatprep.mubr.bf16.mxu0 0
    %3025 = vmatmul.mubr.bf16.gmra.mrb[0].mxu0 %v175
    %v3026 = vpop.f32.mrb[0].mxu0
    %v3027 = vadd.f32 0.0, %v3026
    %v3028 = vpop.f32.mrb[0].mxu0
    %v3029 = vpop.f32.mrb[0].mxu0
    %v3030 = vadd.f32 0.0, %v3029
    %v3031 = vpop.f32.mrb[0].mxu0
    %3032 = vmatprep.mubr.bf16.mxu0 0
    %3033 = vmatmul.mubr.bf16.gmra.mrb[0].mxu0 %v178
    %v3034 = vpop.f32.mrb[0].mxu0
    %v3035 = vadd.f32 0.0, %v3034
    %v3036 = vpop.f32.mrb[0].mxu0
    %v3037 = vpop.f32.mrb[0].mxu0
    %v3038 = vadd.f32 0.0, %v3037
    %v3039 = vpop.f32.mrb[0].mxu0
    %3040 = vmatprep.mubr.bf16.mxu0 0
    %3041 = vmatmul.mubr.bf16.gmra.mrb[0].mxu0 %v181
    %v3042 = vpop.f32.mrb[0].mxu0
    %v3043 = vadd.f32 0.0, %v3042
    %v3044 = vpop.f32.mrb[0].mxu0
    %v3045 = vpop.f32.mrb[0].mxu0
    %v3046 = vadd.f32 0.0, %v3045
    %v3047 = vpop.f32.mrb[0].mxu0
    %3048 = vmatprep.mubr.bf16.mxu0 0
    %3049 = vmatmul.mubr.bf16.gmra.mrb[0].mxu0 %v184
    %v3050 = vpop.f32.mrb[0].mxu0
    %v3051 = vadd.f32 0.0, %v3050
    %v3052 = vpop.f32.mrb[0].mxu0
    %v3053 = vpop.f32.mrb[0].mxu0
    %v3054 = vadd.f32 0.0, %v3053
    %v3055 = vpop.f32.mrb[0].mxu0
    %3056 = vmatprep.mubr.bf16.mxu0 0
    %3057 = vmatmul.mubr.bf16.gmra.mrb[0].mxu0 %v187
    %v3058 = vpop.f32.mrb[0].mxu0
    %v3059 = vadd.f32 0.0, %v3058
    %v3060 = vpop.f32.mrb[0].mxu0
    %v3061 = vpop.f32.mrb[0].mxu0
    %v3062 = vadd.f32 0.0, %v3061
    %v3063 = vpop.f32.mrb[0].mxu0
    %3064 = vmatprep.mubr.bf16.mxu0 0
    %3065 = vmatmul.mubr.bf16.gmra.mrb[0].mxu0 %v190
    %v3066 = vpop.f32.mrb[0].mxu0
    %v3067 = vadd.f32 0.0, %v3066
    %v3068 = vpop.f32.mrb[0].mxu0
    %v3069 = vpop.f32.mrb[0].mxu0
    %v3070 = vadd.f32 0.0, %v3069
    %v3071 = vpop.f32.mrb[0].mxu0
    %3072 = vdwg.mxu0
    %s3073 = sld [smem:[#allocation8 + $0x180]]
    %v3074 = vmax.f32 %v3011, %v3027
    %v3075 = vmax.f32 %v3014, %v3030
    %v3076 = vmax.f32 %v3019, %v3035
    %v3077 = vmax.f32 %v3022, %v3038
    %v3078 = vmax.f32 %v3074, %v3043
    %v3079 = vmax.f32 %v3075, %v3046
    %v3080 = vmax.f32 %v3076, %v3051
    %v3081 = vmax.f32 %v3077, %v3054
    %v3082 = vmax.f32 %v3078, %v3059
    %v3083 = vmax.f32 %v3079, %v3062
    %v3084 = vmax.f32 %v3080, %v3067
    %v3085 = vmax.f32 %v3081, %v3070
    %v3086 = vmax.f32 %v3082, %v3083
    %v3087 = vmax.f32 %v3084, %v3085
    %v3088 = vmax.f32 %v3086, %v3087
    %v3089 = vrot.slane %v3088, 4
    %v3090 = vmax.f32 %v3088, %v3089
    %v3091 = vrot.slane %v3090, 2
    %v3092 = vmax.f32 %v3090, %v3091
    %v3093 = vrot.slane %v3092, 1
    %v3094 = vmax.f32 %v3092, %v3093
    %v3095 = vsub.f32 %v3011, %v3094
    %v3096 = vsub.f32 %v3014, %v3094
    %v3097 = vsub.f32 %v3019, %v3094
    %v3098 = vsub.f32 %v3022, %v3094
    %v3099 = vsub.f32 %v3027, %v3094
    %v3100 = vsub.f32 %v3030, %v3094
    %v3101 = vsub.f32 %v3035, %v3094
    %v3102 = vsub.f32 %v3038, %v3094
    %v3103 = vsub.f32 %v3043, %v3094
    %v3104 = vsub.f32 %v3046, %v3094
    %v3105 = vsub.f32 %v3051, %v3094
    %v3106 = vsub.f32 %v3054, %v3094
    %v3107 = vsub.f32 %v3059, %v3094
    %v3108 = vsub.f32 %v3062, %v3094
    %v3109 = vsub.f32 %v3067, %v3094
    %v3110 = vsub.f32 %v3070, %v3094
    %v3111 = vstv %s3073
    %v3112 = vmul.f32 %v3095, %v3111
    %v3113 = vmul.f32 %v3096, %v3111
    %v3114 = vmul.f32 %v3097, %v3111
    %v3115 = vmul.f32 %v3098, %v3111
    %v3116 = vmul.f32 %v3099, %v3111
    %v3117 = vmul.f32 %v3100, %v3111
    %v3118 = vmul.f32 %v3101, %v3111
    %v3119 = vmul.f32 %v3102, %v3111
    %v3120 = vmul.f32 %v3103, %v3111
    %v3121 = vmul.f32 %v3104, %v3111
    %v3122 = vmul.f32 %v3105, %v3111
    %v3123 = vmul.f32 %v3106, %v3111
    %v3124 = vmul.f32 %v3107, %v3111
    %v3125 = vmul.f32 %v3108, %v3111
    %v3126 = vmul.f32 %v3109, %v3111
    %v3127 = vmul.f32 %v3110, %v3111
    %v3128 = vmul.f32 %v3112, 1.442695
    %v3129 = vpow.pop %v3128
    %v3130 = vmul.f32 %v3113, 1.442695
    %v3131 = vpow.pop %v3130
    %v3132 = vmul.f32 %v3114, 1.442695
    %v3133 = vpow.pop %v3132
    %v3134 = vmul.f32 %v3115, 1.442695
    %v3135 = vpow.pop %v3134
    %v3136 = vmul.f32 %v3116, 1.442695
    %v3137 = vpow.pop %v3136
    %v3138 = vmul.f32 %v3117, 1.442695
    %v3139 = vpow.pop %v3138
    %v3140 = vmul.f32 %v3118, 1.442695
    %v3141 = vpow.pop %v3140
    %v3142 = vmul.f32 %v3119, 1.442695
    %v3143 = vpow.pop %v3142
    %v3144 = vmul.f32 %v3120, 1.442695
    %v3145 = vpow.pop %v3144
    %v3146 = vmul.f32 %v3121, 1.442695
    %v3147 = vpow.pop %v3146
    %v3148 = vmul.f32 %v3122, 1.442695
    %v3149 = vpow.pop %v3148
    %v3150 = vmul.f32 %v3123, 1.442695
    %v3151 = vpow.pop %v3150
    %v3152 = vmul.f32 %v3124, 1.442695
    %v3153 = vpow.pop %v3152
    %v3154 = vmul.f32 %v3125, 1.442695
    %v3155 = vpow.pop %v3154
    %v3156 = vmul.f32 %v3126, 1.442695
    %v3157 = vpow.pop %v3156
    %v3158 = vmul.f32 %v3127, 1.442695
    %v3159 = vpow.pop %v3158
    %v3160 = vmul.f32 %v3129, %v3011
    %v3161 = vmul.f32 %v3131, %v3014
    %v3162 = vmul.f32 %v3133, %v3019
    %v3163 = vmul.f32 %v3135, %v3022
    %v3164 = vmul.f32 %v3137, %v3027
    %v3165 = vmul.f32 %v3139, %v3030
    %v3166 = vmul.f32 %v3141, %v3035
    %v3167 = vmul.f32 %v3143, %v3038
    %v3168 = vmul.f32 %v3145, %v3043
    %v3169 = vmul.f32 %v3147, %v3046
    %v3170 = vmul.f32 %v3149, %v3051
    %v3171 = vmul.f32 %v3151, %v3054
    %v3172 = vmul.f32 %v3153, %v3059
    %v3173 = vmul.f32 %v3155, %v3062
    %v3174 = vmul.f32 %v3157, %v3067
    %v3175 = vmul.f32 %v3159, %v3070
    %v3176 = vpack.c.bf16 %v3161, %v3160
    %v3177 = vpack.c.bf16 %v3163, %v3162
    %v3178 = vpack.c.bf16 %v3165, %v3164
    %v3179 = vpack.c.bf16 %v3167, %v3166
    %v3180 = vpack.c.bf16 %v3169, %v3168
    %v3181 = vpack.c.bf16 %v3171, %v3170
    %v3182 = vpack.c.bf16 %v3173, %v3172
    %v3183 = vpack.c.bf16 %v3175, %v3174
    %v3184 = vpack.c.bf16 %v3131, %v3129
    %v3185 = vpack.c.bf16 %v3135, %v3133
    %v3186 = vpack.c.bf16 %v3139, %v3137
    %v3187 = vpack.c.bf16 %v3143, %v3141
    %v3188 = vpack.c.bf16 %v3147, %v3145
    %v3189 = vpack.c.bf16 %v3151, %v3149
    %v3190 = vpack.c.bf16 %v3155, %v3153
    %v3191 = vpack.c.bf16 %v3159, %v3157
    %3192 = vmatprep.subr.bf16.mxu0 %v3184
    %3193 = vmatpush1.bf16.msra.mxu0 %v3176
    %3194 = vmatprep.subr.bf16.mxu0 %v3185
    %3195 = vmatpush1.bf16.msra.mxu0 %v3177
    %3196 = vmatprep.subr.bf16.mxu0 %v3186
    %3197 = vmatpush1.bf16.msra.mxu0 %v3178
    %3198 = vmatprep.subr.bf16.mxu0 %v3187
    %3199 = vmatpush1.bf16.msra.mxu0 %v3179
    %3200 = vmatprep.subr.bf16.mxu0 %v3188
    %3201 = vmatpush1.bf16.msra.mxu0 %v3180
    %3202 = vmatprep.subr.bf16.mxu0 %v3189
    %3203 = vmatpush1.bf16.msra.mxu0 %v3181
    %3204 = vmatprep.subr.bf16.mxu0 %v3190
    %3205 = vmatpush1.bf16.msra.mxu0 %v3182
    %3206 = vmatprep.subr.bf16.mxu0 %v3191
    %3207 = vmatpush1.bf16.msra.mxu0 %v3183
    %3208 = vmatprep.subr.bf16.mxu0 0
    %3209 = vmatpush1.bf16.msra.mxu0 0
    %3210 = vmatprep.subr.bf16.mxu0 0
    %3211 = vmatpush1.bf16.msra.mxu0 0
    %3212 = vmatprep.subr.bf16.mxu0 0
    %3213 = vmatpush1.bf16.msra.mxu0 0
    %3214 = vmatprep.subr.bf16.mxu0 0
    %3215 = vmatpush1.bf16.msra.mxu0 0
    %3216 = vmatprep.subr.bf16.mxu0 0
    %3217 = vmatpush1.bf16.msra.mxu0 0
    %3218 = vmatprep.subr.bf16.mxu0 0
    %3219 = vmatpush1.bf16.msra.mxu0 0
    %3220 = vmatprep.subr.bf16.mxu0 0
    %3221 = vmatpush1.bf16.msra.mxu0 0
    %3222 = vmatprep.subr.bf16.mxu0 0
    %3223 = vmatpush1.bf16.msra.mxu0 0
    %3224 = vmatprep.mubr.bf16.mxu0 0
    %3225 = vmatmul.mubr.bf16.gmra.mrb[0].mxu0 %v424
    %v3226 = vpop.f32.mrb[0].mxu0
    %v3227 = vadd.f32 0.0, %v3226
    %v3228 = vpop.f32.mrb[0].mxu0
    %v3229 = vadd.f32 0.0, %v3228
    %v3230 = vpop.f32.mrb[0].mxu0
    %v3231 = vadd.f32 0.0, %v3230
    %v3232 = vpop.f32.mrb[0].mxu0
    %v3233 = vadd.f32 0.0, %v3232
    %3234 = vmatprep.mubr.bf16.mxu0 0
    %3235 = vmatmul.mubr.bf16.gmra.mrb[0].mxu0 %v425
    %v3236 = vpop.f32.mrb[0].mxu0
    %v3237 = vadd.f32 0.0, %v3236
    %v3238 = vpop.f32.mrb[0].mxu0
    %v3239 = vadd.f32 0.0, %v3238
    %v3240 = vpop.f32.mrb[0].mxu0
    %v3241 = vadd.f32 0.0, %v3240
    %v3242 = vpop.f32.mrb[0].mxu0
    %v3243 = vadd.f32 0.0, %v3242
    %3244 = vmatprep.mubr.bf16.mxu0 0
    %3245 = vmatmul.mubr.bf16.gmra.mrb[0].mxu0 %v426
    %v3246 = vpop.f32.mrb[0].mxu0
    %v3247 = vadd.f32 0.0, %v3246
    %v3248 = vpop.f32.mrb[0].mxu0
    %v3249 = vadd.f32 0.0, %v3248
    %v3250 = vpop.f32.mrb[0].mxu0
    %v3251 = vadd.f32 0.0, %v3250
    %v3252 = vpop.f32.mrb[0].mxu0
    %v3253 = vadd.f32 0.0, %v3252
    %3254 = vmatprep.mubr.bf16.mxu0 0
    %3255 = vmatmul.mubr.bf16.gmra.mrb[0].mxu0 %v427
    %v3256 = vpop.f32.mrb[0].mxu0
    %v3257 = vadd.f32 0.0, %v3256
    %v3258 = vpop.f32.mrb[0].mxu0
    %v3259 = vadd.f32 0.0, %v3258
    %v3260 = vpop.f32.mrb[0].mxu0
    %v3261 = vadd.f32 0.0, %v3260
    %v3262 = vpop.f32.mrb[0].mxu0
    %v3263 = vadd.f32 0.0, %v3262
    %3264 = vdwg.mxu0
    %vm3265 = vcmp.gt.f32.partialorder %v3229, 0.0
    %vm3266 = vcmp.gt.f32.partialorder %v3233, 0.0
    %vm3267 = vcmp.gt.f32.partialorder %v3239, 0.0
    %vm3268 = vcmp.gt.f32.partialorder %v3243, 0.0
    %vm3269 = vcmp.gt.f32.partialorder %v3249, 0.0
    %vm3270 = vcmp.gt.f32.partialorder %v3253, 0.0
    %vm3271 = vcmp.gt.f32.partialorder %v3259, 0.0
    %vm3272 = vcmp.gt.f32.partialorder %v3263, 0.0
    %v3273 = vsel %vm3265, %v3229, 1.0
    %v3274 = vsel %vm3266, %v3233, 1.0
    %v3275 = vsel %vm3267, %v3239, 1.0
    %v3276 = vsel %vm3268, %v3243, 1.0
    %v3277 = vsel %vm3269, %v3249, 1.0
    %v3278 = vsel %vm3270, %v3253, 1.0
    %v3279 = vsel %vm3271, %v3259, 1.0
    %v3280 = vsel %vm3272, %v3263, 1.0
    %v3281 = vrcp.pop %v3273
    %v3282 = vmul.f32 %v3227, %v3281
    %v3283 = vrcp.pop %v3274
    %v3284 = vmul.f32 %v3231, %v3283
    %v3285 = vrcp.pop %v3275
    %v3286 = vmul.f32 %v3237, %v3285
    %v3287 = vrcp.pop %v3276
    %v3288 = vmul.f32 %v3241, %v3287
    %v3289 = vrcp.pop %v3277
    %v3290 = vmul.f32 %v3247, %v3289
    %v3291 = vrcp.pop %v3278
    %v3292 = vmul.f32 %v3251, %v3291
    %v3293 = vrcp.pop %v3279
    %v3294 = vmul.f32 %v3257, %v3293
    %v3295 = vrcp.pop %v3280
    %v3296 = vmul.f32 %v3261, %v3295
    %v3297 = vsel %vm3265, %v3282, 0.0
    %v3298 = vsel %vm3266, %v3284, 0.0
    %v3299 = vsel %vm3267, %v3286, 0.0
    %v3300 = vsel %vm3268, %v3288, 0.0
    %v3301 = vsel %vm3269, %v3290, 0.0
    %v3302 = vsel %vm3270, %v3292, 0.0
    %v3303 = vsel %vm3271, %v3294, 0.0
    %v3304 = vsel %vm3272, %v3296, 0.0
    %v3305 = vadd.f32 %v3297, %v2948
    %v3306 = vadd.f32 %v3298, %v2949
    %v3307 = vadd.f32 %v3299, %v2950
    %v3308 = vadd.f32 %v3300, %v2951
    %v3309 = vadd.f32 %v3301, %v2952
    %v3310 = vadd.f32 %v3302, %v2953
    %v3311 = vadd.f32 %v3303, %v2954
    %v3312 = vadd.f32 %v3304, %v2955
    %s3313 = scalar_lea.vmem [#allocation2], 768
    %v3314 = vld [vmem:[%s3313] sm:$0xff]
    %v3315 = vld [vmem:[%s3313 + $0x8] sm:$0xff]
    %v3316 = vld [vmem:[%s3313 + $0x10] sm:$0xff]
    %v3317 = vld [vmem:[%s3313 + $0x18] sm:$0xff]
    %v3318 = vld [vmem:[%s3313 + $0x20] sm:$0xff]
    %v3319 = vld [vmem:[%s3313 + $0x28] sm:$0xff]
    %v3320 = vld [vmem:[%s3313 + $0x30] sm:$0xff]
    %v3321 = vld [vmem:[%s3313 + $0x38] sm:$0xff]
    %v3322 = vld [vmem:[%s3313 + $0x40] sm:$0xff]
    %v3323 = vld [vmem:[%s3313 + $0x48] sm:$0xff]
    %v3324 = vld [vmem:[%s3313 + $0x50] sm:$0xff]
    %v3325 = vld [vmem:[%s3313 + $0x58] sm:$0xff]
    %v3326 = vld [vmem:[%s3313 + $0x60] sm:$0xff]
    %v3327 = vld [vmem:[%s3313 + $0x68] sm:$0xff]
    %v3328 = vld [vmem:[%s3313 + $0x70] sm:$0xff]
    %v3329 = vld [vmem:[%s3313 + $0x78] sm:$0xff]
    %v3330 = vld [vmem:[%s3313 + $0x80] sm:$0xff]
    %v3331 = vld [vmem:[%s3313 + $0x88] sm:$0xff]
    %v3332 = vld [vmem:[%s3313 + $0x90] sm:$0xff]
    %v3333 = vld [vmem:[%s3313 + $0x98] sm:$0xff]
    %v3334 = vld [vmem:[%s3313 + $0xa0] sm:$0xff]
    %v3335 = vld [vmem:[%s3313 + $0xa8] sm:$0xff]
    %v3336 = vld [vmem:[%s3313 + $0xb0] sm:$0xff]
    %v3337 = vld [vmem:[%s3313 + $0xb8] sm:$0xff]
    %v3338 = vld [vmem:[%s3313 + $0xc0] sm:$0xff]
    %v3339 = vld [vmem:[%s3313 + $0xc8] sm:$0xff]
    %v3340 = vld [vmem:[%s3313 + $0xd0] sm:$0xff]
    %v3341 = vld [vmem:[%s3313 + $0xd8] sm:$0xff]
    %v3342 = vld [vmem:[%s3313 + $0xe0] sm:$0xff]
    %v3343 = vld [vmem:[%s3313 + $0xe8] sm:$0xff]
    %v3344 = vld [vmem:[%s3313 + $0xf0] sm:$0xff]
    %v3345 = vld [vmem:[%s3313 + $0xf8] sm:$0xff]
    %3346 = vmatprep.subr.mxu0 %v3315
    %3347 = vmatpush1.msra.mxu0 %v3314
    %3348 = vmatprep.subr.mxu0 %v3317
    %3349 = vmatpush1.msra.mxu0 %v3316
    %3350 = vmatprep.subr.mxu0 %v3319
    %3351 = vmatpush1.msra.mxu0 %v3318
    %3352 = vmatprep.subr.mxu0 %v3321
    %3353 = vmatpush1.msra.mxu0 %v3320
    %3354 = vmatprep.subr.mxu0 %v3323
    %3355 = vmatpush1.msra.mxu0 %v3322
    %3356 = vmatprep.subr.mxu0 %v3325
    %3357 = vmatpush1.msra.mxu0 %v3324
    %3358 = vmatprep.subr.mxu0 %v3327
    %3359 = vmatpush1.msra.mxu0 %v3326
    %3360 = vmatprep.subr.mxu0 %v3329
    %3361 = vmatpush1.msra.mxu0 %v3328
    %3362 = vmatprep.subr.mxu0 %v3331
    %3363 = vmatpush1.msra.mxu0 %v3330
    %3364 = vmatprep.subr.mxu0 %v3333
    %3365 = vmatpush1.msra.mxu0 %v3332
    %3366 = vmatprep.subr.mxu0 %v3335
    %3367 = vmatpush1.msra.mxu0 %v3334
    %3368 = vmatprep.subr.mxu0 %v3337
    %3369 = vmatpush1.msra.mxu0 %v3336
    %3370 = vmatprep.subr.mxu0 %v3339
    %3371 = vmatpush1.msra.mxu0 %v3338
    %3372 = vmatprep.subr.mxu0 %v3341
    %3373 = vmatpush1.msra.mxu0 %v3340
    %3374 = vmatprep.subr.mxu0 %v3343
    %3375 = vmatpush1.msra.mxu0 %v3342
    %3376 = vmatprep.subr.mxu0 %v3345
    %3377 = vmatpush1.msra.mxu0 %v3344
    %3378 = vmatprep.subr.mxu0 0.0
    %3379 = vmatpush1.msra.mxu0 0.0
    %3380 = vmatprep.subr.mxu0 0.0
    %3381 = vmatpush1.msra.mxu0 0.0
    %3382 = vmatprep.subr.mxu0 0.0
    %3383 = vmatpush1.msra.mxu0 0.0
    %3384 = vmatprep.subr.mxu0 0.0
    %3385 = vmatpush1.msra.mxu0 0.0
    %3386 = vmatprep.subr.mxu0 0.0
    %3387 = vmatpush1.msra.mxu0 0.0
    %3388 = vmatprep.subr.mxu0 0.0
    %3389 = vmatpush1.msra.mxu0 0.0
    %3390 = vmatprep.subr.mxu0 0.0
    %3391 = vmatpush1.msra.mxu0 0.0
    %3392 = vmatprep.subr.mxu0 0.0
    %3393 = vmatpush1.msra.mxu0 0.0
    %3394 = vmatprep.subr.mxu0 0.0
    %3395 = vmatpush1.msra.mxu0 0.0
    %3396 = vmatprep.subr.mxu0 0.0
    %3397 = vmatpush1.msra.mxu0 0.0
    %3398 = vmatprep.subr.mxu0 0.0
    %3399 = vmatpush1.msra.mxu0 0.0
    %3400 = vmatprep.subr.mxu0 0.0
    %3401 = vmatpush1.msra.mxu0 0.0
    %3402 = vmatprep.subr.mxu0 0.0
    %3403 = vmatpush1.msra.mxu0 0.0
    %3404 = vmatprep.subr.mxu0 0.0
    %3405 = vmatpush1.msra.mxu0 0.0
    %3406 = vmatprep.subr.mxu0 0.0
    %3407 = vmatpush1.msra.mxu0 0.0
    %3408 = vmatprep.subr.mxu0 0.0
    %3409 = vmatpush1.msra.mxu0 0.0
    %3410 = vmatprep.mubr.f32.mxu0 0.0
    %3411 = vmatmul.mubr.f32.gmra.mrb[0].mxu0 %v3305
    %v3412 = vpop.f32.mrb[0].mxu0
    %v3413 = vadd.f32 0.0, %v3412
    %v3414 = vpop.f32.mrb[0].mxu0
    %v3415 = vadd.f32 0.0, %v3414
    %3416 = vmatprep.mubr.f32.mxu0 0.0
    %3417 = vmatmul.mubr.f32.gmra.mrb[0].mxu0 %v3306
    %v3418 = vpop.f32.mrb[0].mxu0
    %v3419 = vadd.f32 0.0, %v3418
    %v3420 = vpop.f32.mrb[0].mxu0
    %v3421 = vadd.f32 0.0, %v3420
    %3422 = vmatprep.mubr.f32.mxu0 0.0
    %3423 = vmatmul.mubr.f32.gmra.mrb[0].mxu0 %v3307
    %v3424 = vpop.f32.mrb[0].mxu0
    %v3425 = vadd.f32 0.0, %v3424
    %v3426 = vpop.f32.mrb[0].mxu0
    %v3427 = vadd.f32 0.0, %v3426
    %3428 = vmatprep.mubr.f32.mxu0 0.0
    %3429 = vmatmul.mubr.f32.gmra.mrb[0].mxu0 %v3308
    %v3430 = vpop.f32.mrb[0].mxu0
    %v3431 = vadd.f32 0.0, %v3430
    %v3432 = vpop.f32.mrb[0].mxu0
    %v3433 = vadd.f32 0.0, %v3432
    %3434 = vmatprep.mubr.f32.mxu0 0.0
    %3435 = vmatmul.mubr.f32.gmra.mrb[0].mxu0 %v3309
    %v3436 = vpop.f32.mrb[0].mxu0
    %v3437 = vadd.f32 0.0, %v3436
    %v3438 = vpop.f32.mrb[0].mxu0
    %v3439 = vadd.f32 0.0, %v3438
    %3440 = vmatprep.mubr.f32.mxu0 0.0
    %3441 = vmatmul.mubr.f32.gmra.mrb[0].mxu0 %v3310
    %v3442 = vpop.f32.mrb[0].mxu0
    %v3443 = vadd.f32 0.0, %v3442
    %v3444 = vpop.f32.mrb[0].mxu0
    %v3445 = vadd.f32 0.0, %v3444
    %3446 = vmatprep.mubr.f32.mxu0 0.0
    %3447 = vmatmul.mubr.f32.gmra.mrb[0].mxu0 %v3311
    %v3448 = vpop.f32.mrb[0].mxu0
    %v3449 = vadd.f32 0.0, %v3448
    %v3450 = vpop.f32.mrb[0].mxu0
    %v3451 = vadd.f32 0.0, %v3450
    %3452 = vmatprep.mubr.f32.mxu0 0.0
    %3453 = vmatmul.mubr.f32.gmra.mrb[0].mxu0 %v3312
    %v3454 = vpop.f32.mrb[0].mxu0
    %v3455 = vadd.f32 0.0, %v3454
    %v3456 = vpop.f32.mrb[0].mxu0
    %v3457 = vadd.f32 0.0, %v3456
    %3458 = vdwg.mxu0
    %v3459 = vadd.f32 %v3413, %v3419
    %v3460 = vadd.f32 %v3459, %v3425
    %v3461 = vadd.f32 %v3460, %v3431
    %v3462 = vadd.f32 %v3461, %v3437
    %v3463 = vadd.f32 %v3462, %v3443
    %v3464 = vadd.f32 %v3463, %v3449
    %v3465 = vadd.f32 %v3464, %v3455
    %v3466 = vrot.slane %v3465, 4
    %v3467 = vadd.f32 %v3465, %v3466
    %v3468 = vrot.slane %v3467, 2
    %v3469 = vadd.f32 %v3467, %v3468
    %v3470 = vrot.slane %v3469, 1
    %v3471 = vadd.f32 %v3469, %v3470
    %v3472 = vadd.f32 %v3415, %v3421
    %v3473 = vadd.f32 %v3472, %v3427
    %v3474 = vadd.f32 %v3473, %v3433
    %v3475 = vadd.f32 %v3474, %v3439
    %v3476 = vadd.f32 %v3475, %v3445
    %v3477 = vadd.f32 %v3476, %v3451
    %v3478 = vadd.f32 %v3477, %v3457
    %v3479 = vrot.slane %v3478, 4
    %v3480 = vadd.f32 %v3478, %v3479
    %v3481 = vrot.slane %v3480, 2
    %v3482 = vadd.f32 %v3480, %v3481
    %v3483 = vrot.slane %v3482, 1
    %v3484 = vadd.f32 %v3482, %v3483
    %v3485 = vmul.f32 %v3471, %v724
    %v3486 = vmul.f32 %v3484, %v724
    %v3487 = vsub.f32 %v3413, %v3485
    %v3488 = vsub.f32 %v3415, %v3486
    %v3489 = vsub.f32 %v3419, %v3485
    %v3490 = vsub.f32 %v3421, %v3486
    %v3491 = vsub.f32 %v3425, %v3485
    %v3492 = vsub.f32 %v3427, %v3486
    %v3493 = vsub.f32 %v3431, %v3485
    %v3494 = vsub.f32 %v3433, %v3486
    %v3495 = vsub.f32 %v3437, %v3485
    %v3496 = vsub.f32 %v3439, %v3486
    %v3497 = vsub.f32 %v3443, %v3485
    %v3498 = vsub.f32 %v3445, %v3486
    %v3499 = vsub.f32 %v3449, %v3485
    %v3500 = vsub.f32 %v3451, %v3486
    %v3501 = vsub.f32 %v3455, %v3485
    %v3502 = vsub.f32 %v3457, %v3486
    %v3503 = vmul.f32 %v3487, %v3487
    %v3504 = vmul.f32 %v3488, %v3488
    %v3505 = vmul.f32 %v3489, %v3489
    %v3506 = vmul.f32 %v3490, %v3490
    %v3507 = vmul.f32 %v3491, %v3491
    %v3508 = vmul.f32 %v3492, %v3492
    %v3509 = vmul.f32 %v3493, %v3493
    %v3510 = vmul.f32 %v3494, %v3494
    %v3511 = vmul.f32 %v3495, %v3495
    %v3512 = vmul.f32 %v3496, %v3496
    %v3513 = vmul.f32 %v3497, %v3497
    %v3514 = vmul.f32 %v3498, %v3498
    %v3515 = vmul.f32 %v3499, %v3499
    %v3516 = vmul.f32 %v3500, %v3500
    %v3517 = vmul.f32 %v3501, %v3501
    %v3518 = vmul.f32 %v3502, %v3502
    %v3519 = vadd.f32 %v3503, %v3505
    %v3520 = vadd.f32 %v3519, %v3507
    %v3521 = vadd.f32 %v3520, %v3509
    %v3522 = vadd.f32 %v3521, %v3511
    %v3523 = vadd.f32 %v3522, %v3513
    %v3524 = vadd.f32 %v3523, %v3515
    %v3525 = vadd.f32 %v3524, %v3517
    %v3526 = vrot.slane %v3525, 4
    %v3527 = vadd.f32 %v3525, %v3526
    %v3528 = vrot.slane %v3527, 2
    %v3529 = vadd.f32 %v3527, %v3528
    %v3530 = vrot.slane %v3529, 1
    %v3531 = vadd.f32 %v3529, %v3530
    %v3532 = vadd.f32 %v3504, %v3506
    %v3533 = vadd.f32 %v3532, %v3508
    %v3534 = vadd.f32 %v3533, %v3510
    %v3535 = vadd.f32 %v3534, %v3512
    %v3536 = vadd.f32 %v3535, %v3514
    %v3537 = vadd.f32 %v3536, %v3516
    %v3538 = vadd.f32 %v3537, %v3518
    %v3539 = vrot.slane %v3538, 4
    %v3540 = vadd.f32 %v3538, %v3539
    %v3541 = vrot.slane %v3540, 2
    %v3542 = vadd.f32 %v3540, %v3541
    %v3543 = vrot.slane %v3542, 1
    %v3544 = vadd.f32 %v3542, %v3543
    %v3545 = vmul.f32 %v3531, %v724
    %v3546 = vmul.f32 %v3544, %v724
    %v3547 = vadd.f32 %v3545, 1e-05
    %v3548 = vadd.f32 %v3546, 1e-05
    %v3549 = vrsqrt.pop %v3547
    %v3550 = vrsqrt.pop %v3548
    %v3551 = vmul.f32 %v3487, %v3549
    %v3552 = vmul.f32 %v3488, %v3550
    %v3553 = vmul.f32 %v3489, %v3549
    %v3554 = vmul.f32 %v3490, %v3550
    %v3555 = vmul.f32 %v3491, %v3549
    %v3556 = vmul.f32 %v3492, %v3550
    %v3557 = vmul.f32 %v3493, %v3549
    %v3558 = vmul.f32 %v3494, %v3550
    %v3559 = vmul.f32 %v3495, %v3549
    %v3560 = vmul.f32 %v3496, %v3550
    %v3561 = vmul.f32 %v3497, %v3549
    %v3562 = vmul.f32 %v3498, %v3550
    %v3563 = vmul.f32 %v3499, %v3549
    %v3564 = vmul.f32 %v3500, %v3550
    %v3565 = vmul.f32 %v3501, %v3549
    %v3566 = vmul.f32 %v3502, %v3550
    %s3567 = scalar_lea.vmem %s4, 6
    %v3568 = vld [vmem:[%s3567] sm:$0x3]
    %v3570 = vlaneseq
    %v3571 = vshrl.u32 %v3570, 7
    %v3572 = vsub.s32 0, %v3571
    %v3573 = vrot.slane %v3568, %v3572
    %v3574 = vlaneseq
    %v3575 = vshrl.u32 %v3574, 7
    %v3576 = vsub.s32 1, %v3575
    %v3577 = vrot.slane %v3568, %v3576
    %v3580 = vmul.f32 %v3551, %v3573
    %v3581 = vmul.f32 %v3552, %v3577
    %v3582 = vmul.f32 %v3553, %v3573
    %v3583 = vmul.f32 %v3554, %v3577
    %v3584 = vmul.f32 %v3555, %v3573
    %v3585 = vmul.f32 %v3556, %v3577
    %v3586 = vmul.f32 %v3557, %v3573
    %v3587 = vmul.f32 %v3558, %v3577
    %v3588 = vmul.f32 %v3559, %v3573
    %v3589 = vmul.f32 %v3560, %v3577
    %v3590 = vmul.f32 %v3561, %v3573
    %v3591 = vmul.f32 %v3562, %v3577
    %v3592 = vmul.f32 %v3563, %v3573
    %v3593 = vmul.f32 %v3564, %v3577
    %v3594 = vmul.f32 %v3565, %v3573
    %v3595 = vmul.f32 %v3566, %v3577
    %s3596 = scalar_lea.vmem %s5, 6
    %v3597 = vld [vmem:[%s3596] sm:$0x3]
    %v3599 = vlaneseq
    %v3600 = vshrl.u32 %v3599, 7
    %v3601 = vsub.s32 0, %v3600
    %v3602 = vrot.slane %v3597, %v3601
    %v3603 = vlaneseq
    %v3604 = vshrl.u32 %v3603, 7
    %v3605 = vsub.s32 1, %v3604
    %v3606 = vrot.slane %v3597, %v3605
    %v3609 = vadd.f32 %v3580, %v3602
    %v3610 = vadd.f32 %v3581, %v3606
    %v3611 = vadd.f32 %v3582, %v3602
    %v3612 = vadd.f32 %v3583, %v3606
    %v3613 = vadd.f32 %v3584, %v3602
    %v3614 = vadd.f32 %v3585, %v3606
    %v3615 = vadd.f32 %v3586, %v3602
    %v3616 = vadd.f32 %v3587, %v3606
    %v3617 = vadd.f32 %v3588, %v3602
    %v3618 = vadd.f32 %v3589, %v3606
    %v3619 = vadd.f32 %v3590, %v3602
    %v3620 = vadd.f32 %v3591, %v3606
    %v3621 = vadd.f32 %v3592, %v3602
    %v3622 = vadd.f32 %v3593, %v3606
    %v3623 = vadd.f32 %v3594, %v3602
    %v3624 = vadd.f32 %v3595, %v3606
    %v3625 = vmax.f32 %v3609, 0.0
    %v3626 = vmax.f32 %v3610, 0.0
    %v3627 = vmax.f32 %v3611, 0.0
    %v3628 = vmax.f32 %v3612, 0.0
    %v3629 = vmax.f32 %v3613, 0.0
    %v3630 = vmax.f32 %v3614, 0.0
    %v3631 = vmax.f32 %v3615, 0.0
    %v3632 = vmax.f32 %v3616, 0.0
    %v3633 = vmax.f32 %v3617, 0.0
    %v3634 = vmax.f32 %v3618, 0.0
    %v3635 = vmax.f32 %v3619, 0.0
    %v3636 = vmax.f32 %v3620, 0.0
    %v3637 = vmax.f32 %v3621, 0.0
    %v3638 = vmax.f32 %v3622, 0.0
    %v3639 = vmax.f32 %v3623, 0.0
    %v3640 = vmax.f32 %v3624, 0.0
    %s3641 = scalar_lea.vmem [#allocation6], 768
    %v3642 = vld [vmem:[%s3641] sm:$0xff]
    %v3643 = vld [vmem:[%s3641 + $0x8] sm:$0xff]
    %v3644 = vld [vmem:[%s3641 + $0x10] sm:$0xff]
    %v3645 = vld [vmem:[%s3641 + $0x18] sm:$0xff]
    %v3646 = vld [vmem:[%s3641 + $0x20] sm:$0xff]
    %v3647 = vld [vmem:[%s3641 + $0x28] sm:$0xff]
    %v3648 = vld [vmem:[%s3641 + $0x30] sm:$0xff]
    %v3649 = vld [vmem:[%s3641 + $0x38] sm:$0xff]
    %v3650 = vld [vmem:[%s3641 + $0x40] sm:$0xff]
    %v3651 = vld [vmem:[%s3641 + $0x48] sm:$0xff]
    %v3652 = vld [vmem:[%s3641 + $0x50] sm:$0xff]
    %v3653 = vld [vmem:[%s3641 + $0x58] sm:$0xff]
    %v3654 = vld [vmem:[%s3641 + $0x60] sm:$0xff]
    %v3655 = vld [vmem:[%s3641 + $0x68] sm:$0xff]
    %v3656 = vld [vmem:[%s3641 + $0x70] sm:$0xff]
    %v3657 = vld [vmem:[%s3641 + $0x78] sm:$0xff]
    %v3658 = vld [vmem:[%s3641 + $0x80] sm:$0xff]
    %v3659 = vld [vmem:[%s3641 + $0x88] sm:$0xff]
    %v3660 = vld [vmem:[%s3641 + $0x90] sm:$0xff]
    %v3661 = vld [vmem:[%s3641 + $0x98] sm:$0xff]
    %v3662 = vld [vmem:[%s3641 + $0xa0] sm:$0xff]
    %v3663 = vld [vmem:[%s3641 + $0xa8] sm:$0xff]
    %v3664 = vld [vmem:[%s3641 + $0xb0] sm:$0xff]
    %v3665 = vld [vmem:[%s3641 + $0xb8] sm:$0xff]
    %v3666 = vld [vmem:[%s3641 + $0xc0] sm:$0xff]
    %v3667 = vld [vmem:[%s3641 + $0xc8] sm:$0xff]
    %v3668 = vld [vmem:[%s3641 + $0xd0] sm:$0xff]
    %v3669 = vld [vmem:[%s3641 + $0xd8] sm:$0xff]
    %v3670 = vld [vmem:[%s3641 + $0xe0] sm:$0xff]
    %v3671 = vld [vmem:[%s3641 + $0xe8] sm:$0xff]
    %v3672 = vld [vmem:[%s3641 + $0xf0] sm:$0xff]
    %v3673 = vld [vmem:[%s3641 + $0xf8] sm:$0xff]
    %s3674 = scalar_lea.vmem %s7, 3
    %v3675 = vld [vmem:[%s3674] sm:$0x1]
    %v3677 = vlaneseq
    %v3678 = vshrl.u32 %v3677, 7
    %v3679 = vsub.s32 0, %v3678
    %v3680 = vrot.slane %v3675, %v3679
    %3682 = vmatprep.subr.mxu0 0.0
    %3683 = vmatpush1.msra.mxu0 %v3642
    %3684 = vmatprep.subr.mxu0 0.0
    %3685 = vmatpush1.msra.mxu0 %v3643
    %3686 = vmatprep.subr.mxu0 0.0
    %3687 = vmatpush1.msra.mxu0 %v3644
    %3688 = vmatprep.subr.mxu0 0.0
    %3689 = vmatpush1.msra.mxu0 %v3645
    %3690 = vmatprep.subr.mxu0 0.0
    %3691 = vmatpush1.msra.mxu0 %v3646
    %3692 = vmatprep.subr.mxu0 0.0
    %3693 = vmatpush1.msra.mxu0 %v3647
    %3694 = vmatprep.subr.mxu0 0.0
    %3695 = vmatpush1.msra.mxu0 %v3648
    %3696 = vmatprep.subr.mxu0 0.0
    %3697 = vmatpush1.msra.mxu0 %v3649
    %3698 = vmatprep.subr.mxu0 0.0
    %3699 = vmatpush1.msra.mxu0 %v3650
    %3700 = vmatprep.subr.mxu0 0.0
    %3701 = vmatpush1.msra.mxu0 %v3651
    %3702 = vmatprep.subr.mxu0 0.0
    %3703 = vmatpush1.msra.mxu0 %v3652
    %3704 = vmatprep.subr.mxu0 0.0
    %3705 = vmatpush1.msra.mxu0 %v3653
    %3706 = vmatprep.subr.mxu0 0.0
    %3707 = vmatpush1.msra.mxu0 %v3654
    %3708 = vmatprep.subr.mxu0 0.0
    %3709 = vmatpush1.msra.mxu0 %v3655
    %3710 = vmatprep.subr.mxu0 0.0
    %3711 = vmatpush1.msra.mxu0 %v3656
    %3712 = vmatprep.subr.mxu0 0.0
    %3713 = vmatpush1.msra.mxu0 %v3657
    %3714 = vmatprep.subr.mxu0 0.0
    %3715 = vmatpush1.msra.mxu0 %v3658
    %3716 = vmatprep.subr.mxu0 0.0
    %3717 = vmatpush1.msra.mxu0 %v3659
    %3718 = vmatprep.subr.mxu0 0.0
    %3719 = vmatpush1.msra.mxu0 %v3660
    %3720 = vmatprep.subr.mxu0 0.0
    %3721 = vmatpush1.msra.mxu0 %v3661
    %3722 = vmatprep.subr.mxu0 0.0
    %3723 = vmatpush1.msra.mxu0 %v3662
    %3724 = vmatprep.subr.mxu0 0.0
    %3725 = vmatpush1.msra.mxu0 %v3663
    %3726 = vmatprep.subr.mxu0 0.0
    %3727 = vmatpush1.msra.mxu0 %v3664
    %3728 = vmatprep.subr.mxu0 0.0
    %3729 = vmatpush1.msra.mxu0 %v3665
    %3730 = vmatprep.subr.mxu0 0.0
    %3731 = vmatpush1.msra.mxu0 %v3666
    %3732 = vmatprep.subr.mxu0 0.0
    %3733 = vmatpush1.msra.mxu0 %v3667
    %3734 = vmatprep.subr.mxu0 0.0
    %3735 = vmatpush1.msra.mxu0 %v3668
    %3736 = vmatprep.subr.mxu0 0.0
    %3737 = vmatpush1.msra.mxu0 %v3669
    %3738 = vmatprep.subr.mxu0 0.0
    %3739 = vmatpush1.msra.mxu0 %v3670
    %3740 = vmatprep.subr.mxu0 0.0
    %3741 = vmatpush1.msra.mxu0 %v3671
    %3742 = vmatprep.subr.mxu0 0.0
    %3743 = vmatpush1.msra.mxu0 %v3672
    %3744 = vmatprep.subr.mxu0 0.0
    %3745 = vmatpush1.msra.mxu0 %v3673
    %3746 = vmatprep.mubr.f32.mxu0 %v3626
    %3747 = vmatmul.mubr.f32.gmra.mrb[0].mxu0 %v3625
    %v3748 = vpop.f32.mrb[0].mxu0
    %v3749 = vadd.f32 %v3680, %v3748
    %v3750 = vpop.f32.mrb[0].mxu0
    %3751 = vmatprep.mubr.f32.mxu0 %v3628
    %3752 = vmatmul.mubr.f32.gmra.mrb[0].mxu0 %v3627
    %v3753 = vpop.f32.mrb[0].mxu0
    %v3754 = vadd.f32 %v3680, %v3753
    %v3755 = vpop.f32.mrb[0].mxu0
    %3756 = vmatprep.mubr.f32.mxu0 %v3630
    %3757 = vmatmul.mubr.f32.gmra.mrb[0].mxu0 %v3629
    %v3758 = vpop.f32.mrb[0].mxu0
    %v3759 = vadd.f32 %v3680, %v3758
    %v3760 = vpop.f32.mrb[0].mxu0
    %3761 = vmatprep.mubr.f32.mxu0 %v3632
    %3762 = vmatmul.mubr.f32.gmra.mrb[0].mxu0 %v3631
    %v3763 = vpop.f32.mrb[0].mxu0
    %v3764 = vadd.f32 %v3680, %v3763
    %v3765 = vpop.f32.mrb[0].mxu0
    %3766 = vmatprep.mubr.f32.mxu0 %v3634
    %3767 = vmatmul.mubr.f32.gmra.mrb[0].mxu0 %v3633
    %v3768 = vpop.f32.mrb[0].mxu0
    %v3769 = vadd.f32 %v3680, %v3768
    %v3770 = vpop.f32.mrb[0].mxu0
    %3771 = vmatprep.mubr.f32.mxu0 %v3636
    %3772 = vmatmul.mubr.f32.gmra.mrb[0].mxu0 %v3635
    %v3773 = vpop.f32.mrb[0].mxu0
    %v3774 = vadd.f32 %v3680, %v3773
    %v3775 = vpop.f32.mrb[0].mxu0
    %3776 = vmatprep.mubr.f32.mxu0 %v3638
    %3777 = vmatmul.mubr.f32.gmra.mrb[0].mxu0 %v3637
    %v3778 = vpop.f32.mrb[0].mxu0
    %v3779 = vadd.f32 %v3680, %v3778
    %v3780 = vpop.f32.mrb[0].mxu0
    %3781 = vmatprep.mubr.f32.mxu0 %v3640
    %3782 = vmatmul.mubr.f32.gmra.mrb[0].mxu0 %v3639
    %v3783 = vpop.f32.mrb[0].mxu0
    %v3784 = vadd.f32 %v3680, %v3783
    %v3785 = vpop.f32.mrb[0].mxu0
    %3786 = vdwg.mxu0
    %v3787 = vadd.f32 %v3749, %v3754
    %v3788 = vadd.f32 %v3787, %v3759
    %v3789 = vadd.f32 %v3788, %v3764
    %v3790 = vadd.f32 %v3789, %v3769
    %v3791 = vadd.f32 %v3790, %v3774
    %v3792 = vadd.f32 %v3791, %v3779
    %v3793 = vadd.f32 %v3792, %v3784
    %v3794 = vrot.slane %v3793, 4
    %v3795 = vadd.f32 %v3793, %v3794
    %v3796 = vrot.slane %v3795, 2
    %v3797 = vadd.f32 %v3795, %v3796
    %v3798 = vrot.slane %v3797, 1
    %v3799 = vadd.f32 %v3797, %v3798
    %v3800 = vmul.f32 %v3799, %v724
    %v3801 = vsub.f32 %v3749, %v3800
    %v3802 = vsub.f32 %v3754, %v3800
    %v3803 = vsub.f32 %v3759, %v3800
    %v3804 = vsub.f32 %v3764, %v3800
    %v3805 = vsub.f32 %v3769, %v3800
    %v3806 = vsub.f32 %v3774, %v3800
    %v3807 = vsub.f32 %v3779, %v3800
    %v3808 = vsub.f32 %v3784, %v3800
    %v3809 = vmul.f32 %v3801, %v3801
    %v3810 = vmul.f32 %v3802, %v3802
    %v3811 = vmul.f32 %v3803, %v3803
    %v3812 = vmul.f32 %v3804, %v3804
    %v3813 = vmul.f32 %v3805, %v3805
    %v3814 = vmul.f32 %v3806, %v3806
    %v3815 = vmul.f32 %v3807, %v3807
    %v3816 = vmul.f32 %v3808, %v3808
    %3817 = vadd.xlane.f32.xlu0 %v3809
    %v3818 = vpop.xlane.xlu0 %3817
    %3819 = vadd.xlane.f32.xlu0 %v3810
    %v3820 = vpop.xlane.xlu0 %3819
    %3821 = vadd.xlane.f32.xlu0 %v3811
    %v3822 = vpop.xlane.xlu0 %3821
    %3823 = vadd.xlane.f32.xlu0 %v3812
    %v3824 = vpop.xlane.xlu0 %3823
    %3825 = vadd.xlane.f32.xlu0 %v3813
    %v3826 = vpop.xlane.xlu0 %3825
    %3827 = vadd.xlane.f32.xlu0 %v3814
    %v3828 = vpop.xlane.xlu0 %3827
    %3829 = vadd.xlane.f32.xlu0 %v3815
    %v3830 = vpop.xlane.xlu0 %3829
    %3831 = vadd.xlane.f32.xlu0 %v3816
    %v3832 = vpop.xlane.xlu0 %3831
    %v3833 = vadd.f32 %v3818, %v3820
    %v3834 = vadd.f32 %v3833, %v3822
    %v3835 = vadd.f32 %v3834, %v3824
    %v3836 = vadd.f32 %v3835, %v3826
    %v3837 = vadd.f32 %v3836, %v3828
    %v3838 = vadd.f32 %v3837, %v3830
    %v3839 = vadd.f32 %v3838, %v3832
    %v3840 = vrot.slane %v3839, 4
    %v3841 = vadd.f32 %v3839, %v3840
    %v3842 = vrot.slane %v3841, 2
    %v3843 = vadd.f32 %v3841, %v3842
    %v3844 = vrot.slane %v3843, 1
    %v3845 = vadd.f32 %v3843, %v3844
    %v3846 = vmul.f32 %v3845, %v724
    %v3847 = vadd.f32 %v3846, 1e-05
    %v3848 = vrsqrt.pop %v3847
    %v3849 = vmul.f32 %v3847, %v3848
    %vm3850 = vcmp.eq.f32.partialorder %v3847, inf
    %v3851 = vsel %vm3850, %v3847, %v3849
    %vm3852 = vcmp.eq.f32.partialorder %v3847, 0.0
    %v3853 = vand.u32 %v3847, 2147483648
    %v3854 = vsel %vm3852, %v3853, %v3851
    %v3855 = vrcp.pop %v3854
    %v3856 = vmul.f32 %v3801, %v3855
    %v3857 = vmul.f32 %v3802, %v3855
    %v3858 = vmul.f32 %v3803, %v3855
    %v3859 = vmul.f32 %v3804, %v3855
    %v3860 = vmul.f32 %v3805, %v3855
    %v3861 = vmul.f32 %v3806, %v3855
    %v3862 = vmul.f32 %v3807, %v3855
    %v3863 = vmul.f32 %v3808, %v3855
    %v3864 = vmax.f32 %v3856, 0.0
    %v3865 = vmax.f32 %v3857, 0.0
    %v3866 = vmax.f32 %v3858, 0.0
    %v3867 = vmax.f32 %v3859, 0.0
    %v3868 = vmax.f32 %v3860, 0.0
    %v3869 = vmax.f32 %v3861, 0.0
    %v3870 = vmax.f32 %v3862, 0.0
    %v3871 = vmax.f32 %v3863, 0.0
    %v3872 = vadd.f32 %v3864, %v2948
    %v3873 = vadd.f32 %v3865, %v2949
    %v3874 = vadd.f32 %v3866, %v2950
    %v3875 = vadd.f32 %v3867, %v2951
    %v3876 = vadd.f32 %v3868, %v2952
    %v3877 = vadd.f32 %v3869, %v2953
    %v3878 = vadd.f32 %v3870, %v2954
    %v3879 = vadd.f32 %v3871, %v2955
    %v3880 = vmax.f32 %v3872, 0.0
    %v3881 = vmax.f32 %v3873, 0.0
    %v3882 = vmax.f32 %v3874, 0.0
    %v3883 = vmax.f32 %v3875, 0.0
    %v3884 = vmax.f32 %v3876, 0.0
    %v3885 = vmax.f32 %v3877, 0.0
    %v3886 = vmax.f32 %v3878, 0.0
    %v3887 = vmax.f32 %v3879, 0.0
    %v3888 = vadd.f32 %v3880, 1e-07
    %v3889 = vadd.f32 %v3881, 1e-07
    %v3890 = vadd.f32 %v3882, 1e-07
    %v3891 = vadd.f32 %v3883, 1e-07
    %v3892 = vadd.f32 %v3884, 1e-07
    %v3893 = vadd.f32 %v3885, 1e-07
    %v3894 = vadd.f32 %v3886, 1e-07
    %v3895 = vadd.f32 %v3887, 1e-07
    %v3896 = vpack.c.bf16 %v3889, %v3888
    %v3897 = vpack.c.bf16 %v3891, %v3890
    %v3898 = vpack.c.bf16 %v3893, %v3892
    %v3899 = vpack.c.bf16 %v3895, %v3894
    %3900 = vmatprep.subr.bf16.mxu0 0
    %3901 = vmatpush1.bf16.msra.mxu0 %v3896
    %3902 = vmatprep.subr.bf16.mxu0 0
    %3903 = vmatpush1.bf16.msra.mxu0 %v3897
    %3904 = vmatprep.subr.bf16.mxu0 0
    %3905 = vmatpush1.bf16.msra.mxu0 %v3898
    %3906 = vmatprep.subr.bf16.mxu0 0
    %3907 = vmatpush1.bf16.msra.mxu0 %v3899
    %3908 = vmatprep.subr.bf16.mxu0 0
    %3909 = vmatpush1.bf16.msra.mxu0 0
    %3910 = vmatprep.subr.bf16.mxu0 0
    %3911 = vmatpush1.bf16.msra.mxu0 0
    %3912 = vmatprep.subr.bf16.mxu0 0
    %3913 = vmatpush1.bf16.msra.mxu0 0
    %3914 = vmatprep.subr.bf16.mxu0 0
    %3915 = vmatpush1.bf16.msra.mxu0 0
    %3916 = vmatprep.subr.bf16.mxu0 0
    %3917 = vmatpush1.bf16.msra.mxu0 0
    %3918 = vmatprep.subr.bf16.mxu0 0
    %3919 = vmatpush1.bf16.msra.mxu0 0
    %3920 = vmatprep.subr.bf16.mxu0 0
    %3921 = vmatpush1.bf16.msra.mxu0 0
    %3922 = vmatprep.subr.bf16.mxu0 0
    %3923 = vmatpush1.bf16.msra.mxu0 0
    %3924 = vmatprep.subr.bf16.mxu0 0
    %3925 = vmatpush1.bf16.msra.mxu0 0
    %3926 = vmatprep.subr.bf16.mxu0 0
    %3927 = vmatpush1.bf16.msra.mxu0 0
    %3928 = vmatprep.subr.bf16.mxu0 0
    %3929 = vmatpush1.bf16.msra.mxu0 0
    %3930 = vmatprep.subr.bf16.mxu0 0
    %3931 = vmatpush1.bf16.msra.mxu0 0
    %3932 = vmatprep.mubr.bf16.mxu0 0
    %3933 = vmatmul.mubr.bf16.gmra.mrb[0].mxu0 %v169
    %v3934 = vpop.f32.mrb[0].mxu0
    %v3935 = vadd.f32 0.0, %v3934
    %v3936 = vpop.f32.mrb[0].mxu0
    %v3937 = vpop.f32.mrb[0].mxu0
    %v3938 = vadd.f32 0.0, %v3937
    %v3939 = vpop.f32.mrb[0].mxu0
    %3940 = vmatprep.mubr.bf16.mxu0 0
    %3941 = vmatmul.mubr.bf16.gmra.mrb[0].mxu0 %v172
    %v3942 = vpop.f32.mrb[0].mxu0
    %v3943 = vadd.f32 0.0, %v3942
    %v3944 = vpop.f32.mrb[0].mxu0
    %v3945 = vpop.f32.mrb[0].mxu0
    %v3946 = vadd.f32 0.0, %v3945
    %v3947 = vpop.f32.mrb[0].mxu0
    %3948 = vmatprep.mubr.bf16.mxu0 0
    %3949 = vmatmul.mubr.bf16.gmra.mrb[0].mxu0 %v175
    %v3950 = vpop.f32.mrb[0].mxu0
    %v3951 = vadd.f32 0.0, %v3950
    %v3952 = vpop.f32.mrb[0].mxu0
    %v3953 = vpop.f32.mrb[0].mxu0
    %v3954 = vadd.f32 0.0, %v3953
    %v3955 = vpop.f32.mrb[0].mxu0
    %3956 = vmatprep.mubr.bf16.mxu0 0
    %3957 = vmatmul.mubr.bf16.gmra.mrb[0].mxu0 %v178
    %v3958 = vpop.f32.mrb[0].mxu0
    %v3959 = vadd.f32 0.0, %v3958
    %v3960 = vpop.f32.mrb[0].mxu0
    %v3961 = vpop.f32.mrb[0].mxu0
    %v3962 = vadd.f32 0.0, %v3961
    %v3963 = vpop.f32.mrb[0].mxu0
    %3964 = vmatprep.mubr.bf16.mxu0 0
    %3965 = vmatmul.mubr.bf16.gmra.mrb[0].mxu0 %v181
    %v3966 = vpop.f32.mrb[0].mxu0
    %v3967 = vadd.f32 0.0, %v3966
    %v3968 = vpop.f32.mrb[0].mxu0
    %v3969 = vpop.f32.mrb[0].mxu0
    %v3970 = vadd.f32 0.0, %v3969
    %v3971 = vpop.f32.mrb[0].mxu0
    %3972 = vmatprep.mubr.bf16.mxu0 0
    %3973 = vmatmul.mubr.bf16.gmra.mrb[0].mxu0 %v184
    %v3974 = vpop.f32.mrb[0].mxu0
    %v3975 = vadd.f32 0.0, %v3974
    %v3976 = vpop.f32.mrb[0].mxu0
    %v3977 = vpop.f32.mrb[0].mxu0
    %v3978 = vadd.f32 0.0, %v3977
    %v3979 = vpop.f32.mrb[0].mxu0
    %3980 = vmatprep.mubr.bf16.mxu0 0
    %3981 = vmatmul.mubr.bf16.gmra.mrb[0].mxu0 %v187
    %v3982 = vpop.f32.mrb[0].mxu0
    %v3983 = vadd.f32 0.0, %v3982
    %v3984 = vpop.f32.mrb[0].mxu0
    %v3985 = vpop.f32.mrb[0].mxu0
    %v3986 = vadd.f32 0.0, %v3985
    %v3987 = vpop.f32.mrb[0].mxu0
    %3988 = vmatprep.mubr.bf16.mxu0 0
    %3989 = vmatmul.mubr.bf16.gmra.mrb[0].mxu0 %v190
    %v3990 = vpop.f32.mrb[0].mxu0
    %v3991 = vadd.f32 0.0, %v3990
    %v3992 = vpop.f32.mrb[0].mxu0
    %v3993 = vpop.f32.mrb[0].mxu0
    %v3994 = vadd.f32 0.0, %v3993
    %v3995 = vpop.f32.mrb[0].mxu0
    %3996 = vdwg.mxu0
    %s3997 = sld [smem:[#allocation8 + $0x200]]
    %v3998 = vmax.f32 %v3935, %v3951
    %v3999 = vmax.f32 %v3938, %v3954
    %v4000 = vmax.f32 %v3943, %v3959
    %v4001 = vmax.f32 %v3946, %v3962
    %v4002 = vmax.f32 %v3998, %v3967
    %v4003 = vmax.f32 %v3999, %v3970
    %v4004 = vmax.f32 %v4000, %v3975
    %v4005 = vmax.f32 %v4001, %v3978
    %v4006 = vmax.f32 %v4002, %v3983
    %v4007 = vmax.f32 %v4003, %v3986
    %v4008 = vmax.f32 %v4004, %v3991
    %v4009 = vmax.f32 %v4005, %v3994
    %v4010 = vmax.f32 %v4006, %v4007
    %v4011 = vmax.f32 %v4008, %v4009
    %v4012 = vmax.f32 %v4010, %v4011
    %v4013 = vrot.slane %v4012, 4
    %v4014 = vmax.f32 %v4012, %v4013
    %v4015 = vrot.slane %v4014, 2
    %v4016 = vmax.f32 %v4014, %v4015
    %v4017 = vrot.slane %v4016, 1
    %v4018 = vmax.f32 %v4016, %v4017
    %v4019 = vsub.f32 %v3935, %v4018
    %v4020 = vsub.f32 %v3938, %v4018
    %v4021 = vsub.f32 %v3943, %v4018
    %v4022 = vsub.f32 %v3946, %v4018
    %v4023 = vsub.f32 %v3951, %v4018
    %v4024 = vsub.f32 %v3954, %v4018
    %v4025 = vsub.f32 %v3959, %v4018
    %v4026 = vsub.f32 %v3962, %v4018
    %v4027 = vsub.f32 %v3967, %v4018
    %v4028 = vsub.f32 %v3970, %v4018
    %v4029 = vsub.f32 %v3975, %v4018
    %v4030 = vsub.f32 %v3978, %v4018
    %v4031 = vsub.f32 %v3983, %v4018
    %v4032 = vsub.f32 %v3986, %v4018
    %v4033 = vsub.f32 %v3991, %v4018
    %v4034 = vsub.f32 %v3994, %v4018
    %v4035 = vstv %s3997
    %v4036 = vmul.f32 %v4019, %v4035
    %v4037 = vmul.f32 %v4020, %v4035
    %v4038 = vmul.f32 %v4021, %v4035
    %v4039 = vmul.f32 %v4022, %v4035
    %v4040 = vmul.f32 %v4023, %v4035
    %v4041 = vmul.f32 %v4024, %v4035
    %v4042 = vmul.f32 %v4025, %v4035
    %v4043 = vmul.f32 %v4026, %v4035
    %v4044 = vmul.f32 %v4027, %v4035
    %v4045 = vmul.f32 %v4028, %v4035
    %v4046 = vmul.f32 %v4029, %v4035
    %v4047 = vmul.f32 %v4030, %v4035
    %v4048 = vmul.f32 %v4031, %v4035
    %v4049 = vmul.f32 %v4032, %v4035
    %v4050 = vmul.f32 %v4033, %v4035
    %v4051 = vmul.f32 %v4034, %v4035
    %v4052 = vmul.f32 %v4036, 1.442695
    %v4053 = vpow.pop %v4052
    %v4054 = vmul.f32 %v4037, 1.442695
    %v4055 = vpow.pop %v4054
    %v4056 = vmul.f32 %v4038, 1.442695
    %v4057 = vpow.pop %v4056
    %v4058 = vmul.f32 %v4039, 1.442695
    %v4059 = vpow.pop %v4058
    %v4060 = vmul.f32 %v4040, 1.442695
    %v4061 = vpow.pop %v4060
    %v4062 = vmul.f32 %v4041, 1.442695
    %v4063 = vpow.pop %v4062
    %v4064 = vmul.f32 %v4042, 1.442695
    %v4065 = vpow.pop %v4064
    %v4066 = vmul.f32 %v4043, 1.442695
    %v4067 = vpow.pop %v4066
    %v4068 = vmul.f32 %v4044, 1.442695
    %v4069 = vpow.pop %v4068
    %v4070 = vmul.f32 %v4045, 1.442695
    %v4071 = vpow.pop %v4070
    %v4072 = vmul.f32 %v4046, 1.442695
    %v4073 = vpow.pop %v4072
    %v4074 = vmul.f32 %v4047, 1.442695
    %v4075 = vpow.pop %v4074
    %v4076 = vmul.f32 %v4048, 1.442695
    %v4077 = vpow.pop %v4076
    %v4078 = vmul.f32 %v4049, 1.442695
    %v4079 = vpow.pop %v4078
    %v4080 = vmul.f32 %v4050, 1.442695
    %v4081 = vpow.pop %v4080
    %v4082 = vmul.f32 %v4051, 1.442695
    %v4083 = vpow.pop %v4082
    %v4084 = vmul.f32 %v4053, %v3935
    %v4085 = vmul.f32 %v4055, %v3938
    %v4086 = vmul.f32 %v4057, %v3943
    %v4087 = vmul.f32 %v4059, %v3946
    %v4088 = vmul.f32 %v4061, %v3951
    %v4089 = vmul.f32 %v4063, %v3954
    %v4090 = vmul.f32 %v4065, %v3959
    %v4091 = vmul.f32 %v4067, %v3962
    %v4092 = vmul.f32 %v4069, %v3967
    %v4093 = vmul.f32 %v4071, %v3970
    %v4094 = vmul.f32 %v4073, %v3975
    %v4095 = vmul.f32 %v4075, %v3978
    %v4096 = vmul.f32 %v4077, %v3983
    %v4097 = vmul.f32 %v4079, %v3986
    %v4098 = vmul.f32 %v4081, %v3991
    %v4099 = vmul.f32 %v4083, %v3994
    %v4100 = vpack.c.bf16 %v4085, %v4084
    %v4101 = vpack.c.bf16 %v4087, %v4086
    %v4102 = vpack.c.bf16 %v4089, %v4088
    %v4103 = vpack.c.bf16 %v4091, %v4090
    %v4104 = vpack.c.bf16 %v4093, %v4092
    %v4105 = vpack.c.bf16 %v4095, %v4094
    %v4106 = vpack.c.bf16 %v4097, %v4096
    %v4107 = vpack.c.bf16 %v4099, %v4098
    %v4108 = vpack.c.bf16 %v4055, %v4053
    %v4109 = vpack.c.bf16 %v4059, %v4057
    %v4110 = vpack.c.bf16 %v4063, %v4061
    %v4111 = vpack.c.bf16 %v4067, %v4065
    %v4112 = vpack.c.bf16 %v4071, %v4069
    %v4113 = vpack.c.bf16 %v4075, %v4073
    %v4114 = vpack.c.bf16 %v4079, %v4077
    %v4115 = vpack.c.bf16 %v4083, %v4081
    %4116 = vmatprep.subr.bf16.mxu0 %v4108
    %4117 = vmatpush1.bf16.msra.mxu0 %v4100
    %4118 = vmatprep.subr.bf16.mxu0 %v4109
    %4119 = vmatpush1.bf16.msra.mxu0 %v4101
    %4120 = vmatprep.subr.bf16.mxu0 %v4110
    %4121 = vmatpush1.bf16.msra.mxu0 %v4102
    %4122 = vmatprep.subr.bf16.mxu0 %v4111
    %4123 = vmatpush1.bf16.msra.mxu0 %v4103
    %4124 = vmatprep.subr.bf16.mxu0 %v4112
    %4125 = vmatpush1.bf16.msra.mxu0 %v4104
    %4126 = vmatprep.subr.bf16.mxu0 %v4113
    %4127 = vmatpush1.bf16.msra.mxu0 %v4105
    %4128 = vmatprep.subr.bf16.mxu0 %v4114
    %4129 = vmatpush1.bf16.msra.mxu0 %v4106
    %4130 = vmatprep.subr.bf16.mxu0 %v4115
    %4131 = vmatpush1.bf16.msra.mxu0 %v4107
    %4132 = vmatprep.subr.bf16.mxu0 0
    %4133 = vmatpush1.bf16.msra.mxu0 0
    %4134 = vmatprep.subr.bf16.mxu0 0
    %4135 = vmatpush1.bf16.msra.mxu0 0
    %4136 = vmatprep.subr.bf16.mxu0 0
    %4137 = vmatpush1.bf16.msra.mxu0 0
    %4138 = vmatprep.subr.bf16.mxu0 0
    %4139 = vmatpush1.bf16.msra.mxu0 0
    %4140 = vmatprep.subr.bf16.mxu0 0
    %4141 = vmatpush1.bf16.msra.mxu0 0
    %4142 = vmatprep.subr.bf16.mxu0 0
    %4143 = vmatpush1.bf16.msra.mxu0 0
    %4144 = vmatprep.subr.bf16.mxu0 0
    %4145 = vmatpush1.bf16.msra.mxu0 0
    %4146 = vmatprep.subr.bf16.mxu0 0
    %4147 = vmatpush1.bf16.msra.mxu0 0
    %4148 = vmatprep.mubr.bf16.mxu0 0
    %4149 = vmatmul.mubr.bf16.gmra.mrb[0].mxu0 %v424
    %v4150 = vpop.f32.mrb[0].mxu0
    %v4151 = vadd.f32 0.0, %v4150
    %v4152 = vpop.f32.mrb[0].mxu0
    %v4153 = vadd.f32 0.0, %v4152
    %v4154 = vpop.f32.mrb[0].mxu0
    %v4155 = vadd.f32 0.0, %v4154
    %v4156 = vpop.f32.mrb[0].mxu0
    %v4157 = vadd.f32 0.0, %v4156
    %4158 = vmatprep.mubr.bf16.mxu0 0
    %4159 = vmatmul.mubr.bf16.gmra.mrb[0].mxu0 %v425
    %v4160 = vpop.f32.mrb[0].mxu0
    %v4161 = vadd.f32 0.0, %v4160
    %v4162 = vpop.f32.mrb[0].mxu0
    %v4163 = vadd.f32 0.0, %v4162
    %v4164 = vpop.f32.mrb[0].mxu0
    %v4165 = vadd.f32 0.0, %v4164
    %v4166 = vpop.f32.mrb[0].mxu0
    %v4167 = vadd.f32 0.0, %v4166
    %4168 = vmatprep.mubr.bf16.mxu0 0
    %4169 = vmatmul.mubr.bf16.gmra.mrb[0].mxu0 %v426
    %v4170 = vpop.f32.mrb[0].mxu0
    %v4171 = vadd.f32 0.0, %v4170
    %v4172 = vpop.f32.mrb[0].mxu0
    %v4173 = vadd.f32 0.0, %v4172
    %v4174 = vpop.f32.mrb[0].mxu0
    %v4175 = vadd.f32 0.0, %v4174
    %v4176 = vpop.f32.mrb[0].mxu0
    %v4177 = vadd.f32 0.0, %v4176
    %4178 = vmatprep.mubr.bf16.mxu0 0
    %4179 = vmatmul.mubr.bf16.gmra.mrb[0].mxu0 %v427
    %v4180 = vpop.f32.mrb[0].mxu0
    %v4181 = vadd.f32 0.0, %v4180
    %v4182 = vpop.f32.mrb[0].mxu0
    %v4183 = vadd.f32 0.0, %v4182
    %v4184 = vpop.f32.mrb[0].mxu0
    %v4185 = vadd.f32 0.0, %v4184
    %v4186 = vpop.f32.mrb[0].mxu0
    %v4187 = vadd.f32 0.0, %v4186
    %4188 = vdwg.mxu0
    %vm4189 = vcmp.gt.f32.partialorder %v4153, 0.0
    %vm4190 = vcmp.gt.f32.partialorder %v4157, 0.0
    %vm4191 = vcmp.gt.f32.partialorder %v4163, 0.0
    %vm4192 = vcmp.gt.f32.partialorder %v4167, 0.0
    %vm4193 = vcmp.gt.f32.partialorder %v4173, 0.0
    %vm4194 = vcmp.gt.f32.partialorder %v4177, 0.0
    %vm4195 = vcmp.gt.f32.partialorder %v4183, 0.0
    %vm4196 = vcmp.gt.f32.partialorder %v4187, 0.0
    %v4197 = vsel %vm4189, %v4153, 1.0
    %v4198 = vsel %vm4190, %v4157, 1.0
    %v4199 = vsel %vm4191, %v4163, 1.0
    %v4200 = vsel %vm4192, %v4167, 1.0
    %v4201 = vsel %vm4193, %v4173, 1.0
    %v4202 = vsel %vm4194, %v4177, 1.0
    %v4203 = vsel %vm4195, %v4183, 1.0
    %v4204 = vsel %vm4196, %v4187, 1.0
    %v4205 = vrcp.pop %v4197
    %v4206 = vmul.f32 %v4151, %v4205
    %v4207 = vrcp.pop %v4198
    %v4208 = vmul.f32 %v4155, %v4207
    %v4209 = vrcp.pop %v4199
    %v4210 = vmul.f32 %v4161, %v4209
    %v4211 = vrcp.pop %v4200
    %v4212 = vmul.f32 %v4165, %v4211
    %v4213 = vrcp.pop %v4201
    %v4214 = vmul.f32 %v4171, %v4213
    %v4215 = vrcp.pop %v4202
    %v4216 = vmul.f32 %v4175, %v4215
    %v4217 = vrcp.pop %v4203
    %v4218 = vmul.f32 %v4181, %v4217
    %v4219 = vrcp.pop %v4204
    %v4220 = vmul.f32 %v4185, %v4219
    %v4221 = vsel %vm4189, %v4206, 0.0
    %v4222 = vsel %vm4190, %v4208, 0.0
    %v4223 = vsel %vm4191, %v4210, 0.0
    %v4224 = vsel %vm4192, %v4212, 0.0
    %v4225 = vsel %vm4193, %v4214, 0.0
    %v4226 = vsel %vm4194, %v4216, 0.0
    %v4227 = vsel %vm4195, %v4218, 0.0
    %v4228 = vsel %vm4196, %v4220, 0.0
    %v4229 = vadd.f32 %v4221, %v3872
    %v4230 = vadd.f32 %v4222, %v3873
    %v4231 = vadd.f32 %v4223, %v3874
    %v4232 = vadd.f32 %v4224, %v3875
    %v4233 = vadd.f32 %v4225, %v3876
    %v4234 = vadd.f32 %v4226, %v3877
    %v4235 = vadd.f32 %v4227, %v3878
    %v4236 = vadd.f32 %v4228, %v3879
    %s4237 = scalar_lea.vmem [#allocation2], 1024
    %v4238 = vld [vmem:[%s4237] sm:$0xff]
    %v4239 = vld [vmem:[%s4237 + $0x8] sm:$0xff]
    %v4240 = vld [vmem:[%s4237 + $0x10] sm:$0xff]
    %v4241 = vld [vmem:[%s4237 + $0x18] sm:$0xff]
    %v4242 = vld [vmem:[%s4237 + $0x20] sm:$0xff]
    %v4243 = vld [vmem:[%s4237 + $0x28] sm:$0xff]
    %v4244 = vld [vmem:[%s4237 + $0x30] sm:$0xff]
    %v4245 = vld [vmem:[%s4237 + $0x38] sm:$0xff]
    %v4246 = vld [vmem:[%s4237 + $0x40] sm:$0xff]
    %v4247 = vld [vmem:[%s4237 + $0x48] sm:$0xff]
    %v4248 = vld [vmem:[%s4237 + $0x50] sm:$0xff]
    %v4249 = vld [vmem:[%s4237 + $0x58] sm:$0xff]
    %v4250 = vld [vmem:[%s4237 + $0x60] sm:$0xff]
    %v4251 = vld [vmem:[%s4237 + $0x68] sm:$0xff]
    %v4252 = vld [vmem:[%s4237 + $0x70] sm:$0xff]
    %v4253 = vld [vmem:[%s4237 + $0x78] sm:$0xff]
    %v4254 = vld [vmem:[%s4237 + $0x80] sm:$0xff]
    %v4255 = vld [vmem:[%s4237 + $0x88] sm:$0xff]
    %v4256 = vld [vmem:[%s4237 + $0x90] sm:$0xff]
    %v4257 = vld [vmem:[%s4237 + $0x98] sm:$0xff]
    %v4258 = vld [vmem:[%s4237 + $0xa0] sm:$0xff]
    %v4259 = vld [vmem:[%s4237 + $0xa8] sm:$0xff]
    %v4260 = vld [vmem:[%s4237 + $0xb0] sm:$0xff]
    %v4261 = vld [vmem:[%s4237 + $0xb8] sm:$0xff]
    %v4262 = vld [vmem:[%s4237 + $0xc0] sm:$0xff]
    %v4263 = vld [vmem:[%s4237 + $0xc8] sm:$0xff]
    %v4264 = vld [vmem:[%s4237 + $0xd0] sm:$0xff]
    %v4265 = vld [vmem:[%s4237 + $0xd8] sm:$0xff]
    %v4266 = vld [vmem:[%s4237 + $0xe0] sm:$0xff]
    %v4267 = vld [vmem:[%s4237 + $0xe8] sm:$0xff]
    %v4268 = vld [vmem:[%s4237 + $0xf0] sm:$0xff]
    %v4269 = vld [vmem:[%s4237 + $0xf8] sm:$0xff]
    %4270 = vmatprep.subr.mxu0 %v4239
    %4271 = vmatpush1.msra.mxu0 %v4238
    %4272 = vmatprep.subr.mxu0 %v4241
    %4273 = vmatpush1.msra.mxu0 %v4240
    %4274 = vmatprep.subr.mxu0 %v4243
    %4275 = vmatpush1.msra.mxu0 %v4242
    %4276 = vmatprep.subr.mxu0 %v4245
    %4277 = vmatpush1.msra.mxu0 %v4244
    %4278 = vmatprep.subr.mxu0 %v4247
    %4279 = vmatpush1.msra.mxu0 %v4246
    %4280 = vmatprep.subr.mxu0 %v4249
    %4281 = vmatpush1.msra.mxu0 %v4248
    %4282 = vmatprep.subr.mxu0 %v4251
    %4283 = vmatpush1.msra.mxu0 %v4250
    %4284 = vmatprep.subr.mxu0 %v4253
    %4285 = vmatpush1.msra.mxu0 %v4252
    %4286 = vmatprep.subr.mxu0 %v4255
    %4287 = vmatpush1.msra.mxu0 %v4254
    %4288 = vmatprep.subr.mxu0 %v4257
    %4289 = vmatpush1.msra.mxu0 %v4256
    %4290 = vmatprep.subr.mxu0 %v4259
    %4291 = vmatpush1.msra.mxu0 %v4258
    %4292 = vmatprep.subr.mxu0 %v4261
    %4293 = vmatpush1.msra.mxu0 %v4260
    %4294 = vmatprep.subr.mxu0 %v4263
    %4295 = vmatpush1.msra.mxu0 %v4262
    %4296 = vmatprep.subr.mxu0 %v4265
    %4297 = vmatpush1.msra.mxu0 %v4264
    %4298 = vmatprep.subr.mxu0 %v4267
    %4299 = vmatpush1.msra.mxu0 %v4266
    %4300 = vmatprep.subr.mxu0 %v4269
    %4301 = vmatpush1.msra.mxu0 %v4268
    %4302 = vmatprep.subr.mxu0 0.0
    %4303 = vmatpush1.msra.mxu0 0.0
    %4304 = vmatprep.subr.mxu0 0.0
    %4305 = vmatpush1.msra.mxu0 0.0
    %4306 = vmatprep.subr.mxu0 0.0
    %4307 = vmatpush1.msra.mxu0 0.0
    %4308 = vmatprep.subr.mxu0 0.0
    %4309 = vmatpush1.msra.mxu0 0.0
    %4310 = vmatprep.subr.mxu0 0.0
    %4311 = vmatpush1.msra.mxu0 0.0
    %4312 = vmatprep.subr.mxu0 0.0
    %4313 = vmatpush1.msra.mxu0 0.0
    %4314 = vmatprep.subr.mxu0 0.0
    %4315 = vmatpush1.msra.mxu0 0.0
    %4316 = vmatprep.subr.mxu0 0.0
    %4317 = vmatpush1.msra.mxu0 0.0
    %4318 = vmatprep.subr.mxu0 0.0
    %4319 = vmatpush1.msra.mxu0 0.0
    %4320 = vmatprep.subr.mxu0 0.0
    %4321 = vmatpush1.msra.mxu0 0.0
    %4322 = vmatprep.subr.mxu0 0.0
    %4323 = vmatpush1.msra.mxu0 0.0
    %4324 = vmatprep.subr.mxu0 0.0
    %4325 = vmatpush1.msra.mxu0 0.0
    %4326 = vmatprep.subr.mxu0 0.0
    %4327 = vmatpush1.msra.mxu0 0.0
    %4328 = vmatprep.subr.mxu0 0.0
    %4329 = vmatpush1.msra.mxu0 0.0
    %4330 = vmatprep.subr.mxu0 0.0
    %4331 = vmatpush1.msra.mxu0 0.0
    %4332 = vmatprep.subr.mxu0 0.0
    %4333 = vmatpush1.msra.mxu0 0.0
    %4334 = vmatprep.mubr.f32.mxu0 0.0
    %4335 = vmatmul.mubr.f32.gmra.mrb[0].mxu0 %v4229
    %v4336 = vpop.f32.mrb[0].mxu0
    %v4337 = vadd.f32 0.0, %v4336
    %v4338 = vpop.f32.mrb[0].mxu0
    %v4339 = vadd.f32 0.0, %v4338
    %4340 = vmatprep.mubr.f32.mxu0 0.0
    %4341 = vmatmul.mubr.f32.gmra.mrb[0].mxu0 %v4230
    %v4342 = vpop.f32.mrb[0].mxu0
    %v4343 = vadd.f32 0.0, %v4342
    %v4344 = vpop.f32.mrb[0].mxu0
    %v4345 = vadd.f32 0.0, %v4344
    %4346 = vmatprep.mubr.f32.mxu0 0.0
    %4347 = vmatmul.mubr.f32.gmra.mrb[0].mxu0 %v4231
    %v4348 = vpop.f32.mrb[0].mxu0
    %v4349 = vadd.f32 0.0, %v4348
    %v4350 = vpop.f32.mrb[0].mxu0
    %v4351 = vadd.f32 0.0, %v4350
    %4352 = vmatprep.mubr.f32.mxu0 0.0
    %4353 = vmatmul.mubr.f32.gmra.mrb[0].mxu0 %v4232
    %v4354 = vpop.f32.mrb[0].mxu0
    %v4355 = vadd.f32 0.0, %v4354
    %v4356 = vpop.f32.mrb[0].mxu0
    %v4357 = vadd.f32 0.0, %v4356
    %4358 = vmatprep.mubr.f32.mxu0 0.0
    %4359 = vmatmul.mubr.f32.gmra.mrb[0].mxu0 %v4233
    %v4360 = vpop.f32.mrb[0].mxu0
    %v4361 = vadd.f32 0.0, %v4360
    %v4362 = vpop.f32.mrb[0].mxu0
    %v4363 = vadd.f32 0.0, %v4362
    %4364 = vmatprep.mubr.f32.mxu0 0.0
    %4365 = vmatmul.mubr.f32.gmra.mrb[0].mxu0 %v4234
    %v4366 = vpop.f32.mrb[0].mxu0
    %v4367 = vadd.f32 0.0, %v4366
    %v4368 = vpop.f32.mrb[0].mxu0
    %v4369 = vadd.f32 0.0, %v4368
    %4370 = vmatprep.mubr.f32.mxu0 0.0
    %4371 = vmatmul.mubr.f32.gmra.mrb[0].mxu0 %v4235
    %v4372 = vpop.f32.mrb[0].mxu0
    %v4373 = vadd.f32 0.0, %v4372
    %v4374 = vpop.f32.mrb[0].mxu0
    %v4375 = vadd.f32 0.0, %v4374
    %4376 = vmatprep.mubr.f32.mxu0 0.0
    %4377 = vmatmul.mubr.f32.gmra.mrb[0].mxu0 %v4236
    %v4378 = vpop.f32.mrb[0].mxu0
    %v4379 = vadd.f32 0.0, %v4378
    %v4380 = vpop.f32.mrb[0].mxu0
    %v4381 = vadd.f32 0.0, %v4380
    %4382 = vdwg.mxu0
    %v4383 = vadd.f32 %v4337, %v4343
    %v4384 = vadd.f32 %v4383, %v4349
    %v4385 = vadd.f32 %v4384, %v4355
    %v4386 = vadd.f32 %v4385, %v4361
    %v4387 = vadd.f32 %v4386, %v4367
    %v4388 = vadd.f32 %v4387, %v4373
    %v4389 = vadd.f32 %v4388, %v4379
    %v4390 = vrot.slane %v4389, 4
    %v4391 = vadd.f32 %v4389, %v4390
    %v4392 = vrot.slane %v4391, 2
    %v4393 = vadd.f32 %v4391, %v4392
    %v4394 = vrot.slane %v4393, 1
    %v4395 = vadd.f32 %v4393, %v4394
    %v4396 = vadd.f32 %v4339, %v4345
    %v4397 = vadd.f32 %v4396, %v4351
    %v4398 = vadd.f32 %v4397, %v4357
    %v4399 = vadd.f32 %v4398, %v4363
    %v4400 = vadd.f32 %v4399, %v4369
    %v4401 = vadd.f32 %v4400, %v4375
    %v4402 = vadd.f32 %v4401, %v4381
    %v4403 = vrot.slane %v4402, 4
    %v4404 = vadd.f32 %v4402, %v4403
    %v4405 = vrot.slane %v4404, 2
    %v4406 = vadd.f32 %v4404, %v4405
    %v4407 = vrot.slane %v4406, 1
    %v4408 = vadd.f32 %v4406, %v4407
    %v4409 = vmul.f32 %v4395, %v724
    %v4410 = vmul.f32 %v4408, %v724
    %v4411 = vsub.f32 %v4337, %v4409
    %v4412 = vsub.f32 %v4339, %v4410
    %v4413 = vsub.f32 %v4343, %v4409
    %v4414 = vsub.f32 %v4345, %v4410
    %v4415 = vsub.f32 %v4349, %v4409
    %v4416 = vsub.f32 %v4351, %v4410
    %v4417 = vsub.f32 %v4355, %v4409
    %v4418 = vsub.f32 %v4357, %v4410
    %v4419 = vsub.f32 %v4361, %v4409
    %v4420 = vsub.f32 %v4363, %v4410
    %v4421 = vsub.f32 %v4367, %v4409
    %v4422 = vsub.f32 %v4369, %v4410
    %v4423 = vsub.f32 %v4373, %v4409
    %v4424 = vsub.f32 %v4375, %v4410
    %v4425 = vsub.f32 %v4379, %v4409
    %v4426 = vsub.f32 %v4381, %v4410
    %v4427 = vmul.f32 %v4411, %v4411
    %v4428 = vmul.f32 %v4412, %v4412
    %v4429 = vmul.f32 %v4413, %v4413
    %v4430 = vmul.f32 %v4414, %v4414
    %v4431 = vmul.f32 %v4415, %v4415
    %v4432 = vmul.f32 %v4416, %v4416
    %v4433 = vmul.f32 %v4417, %v4417
    %v4434 = vmul.f32 %v4418, %v4418
    %v4435 = vmul.f32 %v4419, %v4419
    %v4436 = vmul.f32 %v4420, %v4420
    %v4437 = vmul.f32 %v4421, %v4421
    %v4438 = vmul.f32 %v4422, %v4422
    %v4439 = vmul.f32 %v4423, %v4423
    %v4440 = vmul.f32 %v4424, %v4424
    %v4441 = vmul.f32 %v4425, %v4425
    %v4442 = vmul.f32 %v4426, %v4426
    %v4443 = vadd.f32 %v4427, %v4429
    %v4444 = vadd.f32 %v4443, %v4431
    %v4445 = vadd.f32 %v4444, %v4433
    %v4446 = vadd.f32 %v4445, %v4435
    %v4447 = vadd.f32 %v4446, %v4437
    %v4448 = vadd.f32 %v4447, %v4439
    %v4449 = vadd.f32 %v4448, %v4441
    %v4450 = vrot.slane %v4449, 4
    %v4451 = vadd.f32 %v4449, %v4450
    %v4452 = vrot.slane %v4451, 2
    %v4453 = vadd.f32 %v4451, %v4452
    %v4454 = vrot.slane %v4453, 1
    %v4455 = vadd.f32 %v4453, %v4454
    %v4456 = vadd.f32 %v4428, %v4430
    %v4457 = vadd.f32 %v4456, %v4432
    %v4458 = vadd.f32 %v4457, %v4434
    %v4459 = vadd.f32 %v4458, %v4436
    %v4460 = vadd.f32 %v4459, %v4438
    %v4461 = vadd.f32 %v4460, %v4440
    %v4462 = vadd.f32 %v4461, %v4442
    %v4463 = vrot.slane %v4462, 4
    %v4464 = vadd.f32 %v4462, %v4463
    %v4465 = vrot.slane %v4464, 2
    %v4466 = vadd.f32 %v4464, %v4465
    %v4467 = vrot.slane %v4466, 1
    %v4468 = vadd.f32 %v4466, %v4467
    %v4469 = vmul.f32 %v4455, %v724
    %v4470 = vmul.f32 %v4468, %v724
    %v4471 = vadd.f32 %v4469, 1e-05
    %v4472 = vadd.f32 %v4470, 1e-05
    %v4473 = vrsqrt.pop %v4471
    %v4474 = vrsqrt.pop %v4472
    %v4475 = vmul.f32 %v4411, %v4473
    %v4476 = vmul.f32 %v4412, %v4474
    %v4477 = vmul.f32 %v4413, %v4473
    %v4478 = vmul.f32 %v4414, %v4474
    %v4479 = vmul.f32 %v4415, %v4473
    %v4480 = vmul.f32 %v4416, %v4474
    %v4481 = vmul.f32 %v4417, %v4473
    %v4482 = vmul.f32 %v4418, %v4474
    %v4483 = vmul.f32 %v4419, %v4473
    %v4484 = vmul.f32 %v4420, %v4474
    %v4485 = vmul.f32 %v4421, %v4473
    %v4486 = vmul.f32 %v4422, %v4474
    %v4487 = vmul.f32 %v4423, %v4473
    %v4488 = vmul.f32 %v4424, %v4474
    %v4489 = vmul.f32 %v4425, %v4473
    %v4490 = vmul.f32 %v4426, %v4474
    %s4491 = scalar_lea.vmem %s4, 8
    %v4492 = vld [vmem:[%s4491] sm:$0x3]
    %v4494 = vlaneseq
    %v4495 = vshrl.u32 %v4494, 7
    %v4496 = vsub.s32 0, %v4495
    %v4497 = vrot.slane %v4492, %v4496
    %v4498 = vlaneseq
    %v4499 = vshrl.u32 %v4498, 7
    %v4500 = vsub.s32 1, %v4499
    %v4501 = vrot.slane %v4492, %v4500
    %v4504 = vmul.f32 %v4475, %v4497
    %v4505 = vmul.f32 %v4476, %v4501
    %v4506 = vmul.f32 %v4477, %v4497
    %v4507 = vmul.f32 %v4478, %v4501
    %v4508 = vmul.f32 %v4479, %v4497
    %v4509 = vmul.f32 %v4480, %v4501
    %v4510 = vmul.f32 %v4481, %v4497
    %v4511 = vmul.f32 %v4482, %v4501
    %v4512 = vmul.f32 %v4483, %v4497
    %v4513 = vmul.f32 %v4484, %v4501
    %v4514 = vmul.f32 %v4485, %v4497
    %v4515 = vmul.f32 %v4486, %v4501
    %v4516 = vmul.f32 %v4487, %v4497
    %v4517 = vmul.f32 %v4488, %v4501
    %v4518 = vmul.f32 %v4489, %v4497
    %v4519 = vmul.f32 %v4490, %v4501
    %s4520 = scalar_lea.vmem %s5, 8
    %v4521 = vld [vmem:[%s4520] sm:$0x3]
    %v4523 = vlaneseq
    %v4524 = vshrl.u32 %v4523, 7
    %v4525 = vsub.s32 0, %v4524
    %v4526 = vrot.slane %v4521, %v4525
    %v4527 = vlaneseq
    %v4528 = vshrl.u32 %v4527, 7
    %v4529 = vsub.s32 1, %v4528
    %v4530 = vrot.slane %v4521, %v4529
    %v4533 = vadd.f32 %v4504, %v4526
    %v4534 = vadd.f32 %v4505, %v4530
    %v4535 = vadd.f32 %v4506, %v4526
    %v4536 = vadd.f32 %v4507, %v4530
    %v4537 = vadd.f32 %v4508, %v4526
    %v4538 = vadd.f32 %v4509, %v4530
    %v4539 = vadd.f32 %v4510, %v4526
    %v4540 = vadd.f32 %v4511, %v4530
    %v4541 = vadd.f32 %v4512, %v4526
    %v4542 = vadd.f32 %v4513, %v4530
    %v4543 = vadd.f32 %v4514, %v4526
    %v4544 = vadd.f32 %v4515, %v4530
    %v4545 = vadd.f32 %v4516, %v4526
    %v4546 = vadd.f32 %v4517, %v4530
    %v4547 = vadd.f32 %v4518, %v4526
    %v4548 = vadd.f32 %v4519, %v4530
    %v4549 = vmax.f32 %v4533, 0.0
    %v4550 = vmax.f32 %v4534, 0.0
    %v4551 = vmax.f32 %v4535, 0.0
    %v4552 = vmax.f32 %v4536, 0.0
    %v4553 = vmax.f32 %v4537, 0.0
    %v4554 = vmax.f32 %v4538, 0.0
    %v4555 = vmax.f32 %v4539, 0.0
    %v4556 = vmax.f32 %v4540, 0.0
    %v4557 = vmax.f32 %v4541, 0.0
    %v4558 = vmax.f32 %v4542, 0.0
    %v4559 = vmax.f32 %v4543, 0.0
    %v4560 = vmax.f32 %v4544, 0.0
    %v4561 = vmax.f32 %v4545, 0.0
    %v4562 = vmax.f32 %v4546, 0.0
    %v4563 = vmax.f32 %v4547, 0.0
    %v4564 = vmax.f32 %v4548, 0.0
    %s4565 = scalar_lea.vmem [#allocation6], 1024
    %v4566 = vld [vmem:[%s4565] sm:$0xff]
    %v4567 = vld [vmem:[%s4565 + $0x8] sm:$0xff]
    %v4568 = vld [vmem:[%s4565 + $0x10] sm:$0xff]
    %v4569 = vld [vmem:[%s4565 + $0x18] sm:$0xff]
    %v4570 = vld [vmem:[%s4565 + $0x20] sm:$0xff]
    %v4571 = vld [vmem:[%s4565 + $0x28] sm:$0xff]
    %v4572 = vld [vmem:[%s4565 + $0x30] sm:$0xff]
    %v4573 = vld [vmem:[%s4565 + $0x38] sm:$0xff]
    %v4574 = vld [vmem:[%s4565 + $0x40] sm:$0xff]
    %v4575 = vld [vmem:[%s4565 + $0x48] sm:$0xff]
    %v4576 = vld [vmem:[%s4565 + $0x50] sm:$0xff]
    %v4577 = vld [vmem:[%s4565 + $0x58] sm:$0xff]
    %v4578 = vld [vmem:[%s4565 + $0x60] sm:$0xff]
    %v4579 = vld [vmem:[%s4565 + $0x68] sm:$0xff]
    %v4580 = vld [vmem:[%s4565 + $0x70] sm:$0xff]
    %v4581 = vld [vmem:[%s4565 + $0x78] sm:$0xff]
    %v4582 = vld [vmem:[%s4565 + $0x80] sm:$0xff]
    %v4583 = vld [vmem:[%s4565 + $0x88] sm:$0xff]
    %v4584 = vld [vmem:[%s4565 + $0x90] sm:$0xff]
    %v4585 = vld [vmem:[%s4565 + $0x98] sm:$0xff]
    %v4586 = vld [vmem:[%s4565 + $0xa0] sm:$0xff]
    %v4587 = vld [vmem:[%s4565 + $0xa8] sm:$0xff]
    %v4588 = vld [vmem:[%s4565 + $0xb0] sm:$0xff]
    %v4589 = vld [vmem:[%s4565 + $0xb8] sm:$0xff]
    %v4590 = vld [vmem:[%s4565 + $0xc0] sm:$0xff]
    %v4591 = vld [vmem:[%s4565 + $0xc8] sm:$0xff]
    %v4592 = vld [vmem:[%s4565 + $0xd0] sm:$0xff]
    %v4593 = vld [vmem:[%s4565 + $0xd8] sm:$0xff]
    %v4594 = vld [vmem:[%s4565 + $0xe0] sm:$0xff]
    %v4595 = vld [vmem:[%s4565 + $0xe8] sm:$0xff]
    %v4596 = vld [vmem:[%s4565 + $0xf0] sm:$0xff]
    %v4597 = vld [vmem:[%s4565 + $0xf8] sm:$0xff]
    %s4598 = scalar_lea.vmem %s7, 4
    %v4599 = vld [vmem:[%s4598] sm:$0x1]
    %v4601 = vlaneseq
    %v4602 = vshrl.u32 %v4601, 7
    %v4603 = vsub.s32 0, %v4602
    %v4604 = vrot.slane %v4599, %v4603
    %4606 = vmatprep.subr.mxu0 0.0
    %4607 = vmatpush1.msra.mxu0 %v4566
    %4608 = vmatprep.subr.mxu0 0.0
    %4609 = vmatpush1.msra.mxu0 %v4567
    %4610 = vmatprep.subr.mxu0 0.0
    %4611 = vmatpush1.msra.mxu0 %v4568
    %4612 = vmatprep.subr.mxu0 0.0
    %4613 = vmatpush1.msra.mxu0 %v4569
    %4614 = vmatprep.subr.mxu0 0.0
    %4615 = vmatpush1.msra.mxu0 %v4570
    %4616 = vmatprep.subr.mxu0 0.0
    %4617 = vmatpush1.msra.mxu0 %v4571
    %4618 = vmatprep.subr.mxu0 0.0
    %4619 = vmatpush1.msra.mxu0 %v4572
    %4620 = vmatprep.subr.mxu0 0.0
    %4621 = vmatpush1.msra.mxu0 %v4573
    %4622 = vmatprep.subr.mxu0 0.0
    %4623 = vmatpush1.msra.mxu0 %v4574
    %4624 = vmatprep.subr.mxu0 0.0
    %4625 = vmatpush1.msra.mxu0 %v4575
    %4626 = vmatprep.subr.mxu0 0.0
    %4627 = vmatpush1.msra.mxu0 %v4576
    %4628 = vmatprep.subr.mxu0 0.0
    %4629 = vmatpush1.msra.mxu0 %v4577
    %4630 = vmatprep.subr.mxu0 0.0
    %4631 = vmatpush1.msra.mxu0 %v4578
    %4632 = vmatprep.subr.mxu0 0.0
    %4633 = vmatpush1.msra.mxu0 %v4579
    %4634 = vmatprep.subr.mxu0 0.0
    %4635 = vmatpush1.msra.mxu0 %v4580
    %4636 = vmatprep.subr.mxu0 0.0
    %4637 = vmatpush1.msra.mxu0 %v4581
    %4638 = vmatprep.subr.mxu0 0.0
    %4639 = vmatpush1.msra.mxu0 %v4582
    %4640 = vmatprep.subr.mxu0 0.0
    %4641 = vmatpush1.msra.mxu0 %v4583
    %4642 = vmatprep.subr.mxu0 0.0
    %4643 = vmatpush1.msra.mxu0 %v4584
    %4644 = vmatprep.subr.mxu0 0.0
    %4645 = vmatpush1.msra.mxu0 %v4585
    %4646 = vmatprep.subr.mxu0 0.0
    %4647 = vmatpush1.msra.mxu0 %v4586
    %4648 = vmatprep.subr.mxu0 0.0
    %4649 = vmatpush1.msra.mxu0 %v4587
    %4650 = vmatprep.subr.mxu0 0.0
    %4651 = vmatpush1.msra.mxu0 %v4588
    %4652 = vmatprep.subr.mxu0 0.0
    %4653 = vmatpush1.msra.mxu0 %v4589
    %4654 = vmatprep.subr.mxu0 0.0
    %4655 = vmatpush1.msra.mxu0 %v4590
    %4656 = vmatprep.subr.mxu0 0.0
    %4657 = vmatpush1.msra.mxu0 %v4591
    %4658 = vmatprep.subr.mxu0 0.0
    %4659 = vmatpush1.msra.mxu0 %v4592
    %4660 = vmatprep.subr.mxu0 0.0
    %4661 = vmatpush1.msra.mxu0 %v4593
    %4662 = vmatprep.subr.mxu0 0.0
    %4663 = vmatpush1.msra.mxu0 %v4594
    %4664 = vmatprep.subr.mxu0 0.0
    %4665 = vmatpush1.msra.mxu0 %v4595
    %4666 = vmatprep.subr.mxu0 0.0
    %4667 = vmatpush1.msra.mxu0 %v4596
    %4668 = vmatprep.subr.mxu0 0.0
    %4669 = vmatpush1.msra.mxu0 %v4597
    %4670 = vmatprep.mubr.f32.mxu0 %v4550
    %4671 = vmatmul.mubr.f32.gmra.mrb[0].mxu0 %v4549
    %v4672 = vpop.f32.mrb[0].mxu0
    %v4673 = vadd.f32 %v4604, %v4672
    %v4674 = vpop.f32.mrb[0].mxu0
    %4675 = vmatprep.mubr.f32.mxu0 %v4552
    %4676 = vmatmul.mubr.f32.gmra.mrb[0].mxu0 %v4551
    %v4677 = vpop.f32.mrb[0].mxu0
    %v4678 = vadd.f32 %v4604, %v4677
    %v4679 = vpop.f32.mrb[0].mxu0
    %4680 = vmatprep.mubr.f32.mxu0 %v4554
    %4681 = vmatmul.mubr.f32.gmra.mrb[0].mxu0 %v4553
    %v4682 = vpop.f32.mrb[0].mxu0
    %v4683 = vadd.f32 %v4604, %v4682
    %v4684 = vpop.f32.mrb[0].mxu0
    %4685 = vmatprep.mubr.f32.mxu0 %v4556
    %4686 = vmatmul.mubr.f32.gmra.mrb[0].mxu0 %v4555
    %v4687 = vpop.f32.mrb[0].mxu0
    %v4688 = vadd.f32 %v4604, %v4687
    %v4689 = vpop.f32.mrb[0].mxu0
    %4690 = vmatprep.mubr.f32.mxu0 %v4558
    %4691 = vmatmul.mubr.f32.gmra.mrb[0].mxu0 %v4557
    %v4692 = vpop.f32.mrb[0].mxu0
    %v4693 = vadd.f32 %v4604, %v4692
    %v4694 = vpop.f32.mrb[0].mxu0
    %4695 = vmatprep.mubr.f32.mxu0 %v4560
    %4696 = vmatmul.mubr.f32.gmra.mrb[0].mxu0 %v4559
    %v4697 = vpop.f32.mrb[0].mxu0
    %v4698 = vadd.f32 %v4604, %v4697
    %v4699 = vpop.f32.mrb[0].mxu0
    %4700 = vmatprep.mubr.f32.mxu0 %v4562
    %4701 = vmatmul.mubr.f32.gmra.mrb[0].mxu0 %v4561
    %v4702 = vpop.f32.mrb[0].mxu0
    %v4703 = vadd.f32 %v4604, %v4702
    %v4704 = vpop.f32.mrb[0].mxu0
    %4705 = vmatprep.mubr.f32.mxu0 %v4564
    %4706 = vmatmul.mubr.f32.gmra.mrb[0].mxu0 %v4563
    %v4707 = vpop.f32.mrb[0].mxu0
    %v4708 = vadd.f32 %v4604, %v4707
    %v4709 = vpop.f32.mrb[0].mxu0
    %4710 = vdwg.mxu0
    %v4711 = vadd.f32 %v4673, %v4678
    %v4712 = vadd.f32 %v4711, %v4683
    %v4713 = vadd.f32 %v4712, %v4688
    %v4714 = vadd.f32 %v4713, %v4693
    %v4715 = vadd.f32 %v4714, %v4698
    %v4716 = vadd.f32 %v4715, %v4703
    %v4717 = vadd.f32 %v4716, %v4708
    %v4718 = vrot.slane %v4717, 4
    %v4719 = vadd.f32 %v4717, %v4718
    %v4720 = vrot.slane %v4719, 2
    %v4721 = vadd.f32 %v4719, %v4720
    %v4722 = vrot.slane %v4721, 1
    %v4723 = vadd.f32 %v4721, %v4722
    %v4724 = vmul.f32 %v4723, %v724
    %v4725 = vsub.f32 %v4673, %v4724
    %v4726 = vsub.f32 %v4678, %v4724
    %v4727 = vsub.f32 %v4683, %v4724
    %v4728 = vsub.f32 %v4688, %v4724
    %v4729 = vsub.f32 %v4693, %v4724
    %v4730 = vsub.f32 %v4698, %v4724
    %v4731 = vsub.f32 %v4703, %v4724
    %v4732 = vsub.f32 %v4708, %v4724
    %v4733 = vmul.f32 %v4725, %v4725
    %v4734 = vmul.f32 %v4726, %v4726
    %v4735 = vmul.f32 %v4727, %v4727
    %v4736 = vmul.f32 %v4728, %v4728
    %v4737 = vmul.f32 %v4729, %v4729
    %v4738 = vmul.f32 %v4730, %v4730
    %v4739 = vmul.f32 %v4731, %v4731
    %v4740 = vmul.f32 %v4732, %v4732
    %4741 = vadd.xlane.f32.xlu0 %v4733
    %v4742 = vpop.xlane.xlu0 %4741
    %4743 = vadd.xlane.f32.xlu0 %v4734
    %v4744 = vpop.xlane.xlu0 %4743
    %4745 = vadd.xlane.f32.xlu0 %v4735
    %v4746 = vpop.xlane.xlu0 %4745
    %4747 = vadd.xlane.f32.xlu0 %v4736
    %v4748 = vpop.xlane.xlu0 %4747
    %4749 = vadd.xlane.f32.xlu0 %v4737
    %v4750 = vpop.xlane.xlu0 %4749
    %4751 = vadd.xlane.f32.xlu0 %v4738
    %v4752 = vpop.xlane.xlu0 %4751
    %4753 = vadd.xlane.f32.xlu0 %v4739
    %v4754 = vpop.xlane.xlu0 %4753
    %4755 = vadd.xlane.f32.xlu0 %v4740
    %v4756 = vpop.xlane.xlu0 %4755
    %v4757 = vadd.f32 %v4742, %v4744
    %v4758 = vadd.f32 %v4757, %v4746
    %v4759 = vadd.f32 %v4758, %v4748
    %v4760 = vadd.f32 %v4759, %v4750
    %v4761 = vadd.f32 %v4760, %v4752
    %v4762 = vadd.f32 %v4761, %v4754
    %v4763 = vadd.f32 %v4762, %v4756
    %v4764 = vrot.slane %v4763, 4
    %v4765 = vadd.f32 %v4763, %v4764
    %v4766 = vrot.slane %v4765, 2
    %v4767 = vadd.f32 %v4765, %v4766
    %v4768 = vrot.slane %v4767, 1
    %v4769 = vadd.f32 %v4767, %v4768
    %v4770 = vmul.f32 %v4769, %v724
    %v4771 = vadd.f32 %v4770, 1e-05
    %v4772 = vrsqrt.pop %v4771
    %v4773 = vmul.f32 %v4771, %v4772
    %vm4774 = vcmp.eq.f32.partialorder %v4771, inf
    %v4775 = vsel %vm4774, %v4771, %v4773
    %vm4776 = vcmp.eq.f32.partialorder %v4771, 0.0
    %v4777 = vand.u32 %v4771, 2147483648
    %v4778 = vsel %vm4776, %v4777, %v4775
    %v4779 = vrcp.pop %v4778
    %v4780 = vmul.f32 %v4725, %v4779
    %v4781 = vmul.f32 %v4726, %v4779
    %v4782 = vmul.f32 %v4727, %v4779
    %v4783 = vmul.f32 %v4728, %v4779
    %v4784 = vmul.f32 %v4729, %v4779
    %v4785 = vmul.f32 %v4730, %v4779
    %v4786 = vmul.f32 %v4731, %v4779
    %v4787 = vmul.f32 %v4732, %v4779
    %v4788 = vmax.f32 %v4780, 0.0
    %v4789 = vmax.f32 %v4781, 0.0
    %v4790 = vmax.f32 %v4782, 0.0
    %v4791 = vmax.f32 %v4783, 0.0
    %v4792 = vmax.f32 %v4784, 0.0
    %v4793 = vmax.f32 %v4785, 0.0
    %v4794 = vmax.f32 %v4786, 0.0
    %v4795 = vmax.f32 %v4787, 0.0
    %v4796 = vadd.f32 %v4788, %v3872
    %v4797 = vadd.f32 %v4789, %v3873
    %v4798 = vadd.f32 %v4790, %v3874
    %v4799 = vadd.f32 %v4791, %v3875
    %v4800 = vadd.f32 %v4792, %v3876
    %v4801 = vadd.f32 %v4793, %v3877
    %v4802 = vadd.f32 %v4794, %v3878
    %v4803 = vadd.f32 %v4795, %v3879
    %4804 = vst [vmem:[#allocation9] sm:$0xff] %v4796
    %4805 = vst [vmem:[#allocation9 + $0x8] sm:$0xff] %v4797
    %4806 = vst [vmem:[#allocation9 + $0x10] sm:$0xff] %v4798
    %4807 = vst [vmem:[#allocation9 + $0x18] sm:$0xff] %v4799
    %4808 = vst [vmem:[#allocation9 + $0x20] sm:$0xff] %v4800
    %4809 = vst [vmem:[#allocation9 + $0x28] sm:$0xff] %v4801
    %4810 = vst [vmem:[#allocation9 + $0x30] sm:$0xff] %v4802
    %4811 = vst [vmem:[#allocation9 + $0x38] sm:$0xff] %v4803
    // Predicated region
    $region50: #{tpu_custom_call.1} parent=1 // pred_check
      _
    $region51: #{tpu_custom_call.1} parent=1 // pred_check_branch
      %4813 = sbr.rel (0) target = $region53
    $region52: #{tpu_custom_call.1} parent=1 // pred_region
      %s4815 = ssub.s32 1024, 1024
      %4816 = vsyncadd [#allocation4], %s4815
      %s4817 = sshll.u32 [#allocation9], 4
      %s4818 = int_to_ptr.vmem [resolvable:$true] %s4817
      %4823 = dma.vmem_to_hbm [thread:$0]  %s4818, 1024, %s9, [#allocation4], 128, 128, 8
    $region53: #{tpu_custom_call.1} parent=1 // pred_fallthru
      _
    // Predicated region
    $region54: #{tpu_custom_call.1} parent=1 // pred_check
      _
    $region55: #{tpu_custom_call.1} parent=1 // pred_check_branch
      %4825 = sbr.rel (0) target = $region57
    $region56: #{tpu_custom_call.1} parent=1 // pred_region
      %4826 = dma.done [#allocation4], 1024
    $region57: #{tpu_custom_call.1} parent=1 // pred_fallthru
      _
    %4827 = vsyncpa [#allocation3], 1
    %4828 = vsyncpa [#allocation7], 1
    %4829 = vsyncpa [#allocation4], 1
    %4830 = vsyncpa [#allocation5], 1

</llo_original>
